<compile_context>
chip_gen: v6e
topology: v6e:2x2x1
jax: 0.10.0
libtpu: 0.0.40
codegen_flags: <defaults>
</compile_context>

<pallas_src>
import functools
import math

import jax
import jax.numpy as jnp
from jax.experimental import pallas as pl
from jax.experimental.pallas import tpu as pltpu

_SELU_ALPHA = 1.6732632423543772
_SELU_SCALE = 1.0507009873554805
_GELU_C = 0.7978845608028654  # sqrt(2/pi)
_LN_EPS = 1e-5
_LANES = 512
_VMEM_LIMIT = 32 * 1024 * 1024
_EW_BLOCK_BYTES = 4 * 1024 * 1024        # per-buffer budget, single-input paths
_EW_BLOCK_BYTES_MULTI = 2 * 1024 * 1024  # per-buffer budget, 3+ operand paths


# ----------------------------- tiling helpers --------------------------------
def _sublanes(dtype):
    # f32 -> 8, bf16/fp16 -> 16, int8/fp8 -> 32 (packed sublane count).
    return max(8, 32 // jnp.dtype(dtype).itemsize)


def _row_tile(m, cap, sub=8):
    """Largest row tile <= cap; prefer an exact divisor of m (multiple of sub)."""
    if m <= cap:
        return m  # full-extent block: always legal regardless of divisibility
    cap = max(sub, (cap // sub) * sub)
    t = cap
    while t >= sub:
        if m % t == 0:
            return t
        t -= sub
    return cap  # overhanging last block: rows are independent -> masked write is safe


def _col_tile(dim, cap=512):
    assert dim % 128 == 0, f"dimension {dim} must be a multiple of 128"
    t = min(cap, dim)
    t -= t % 128
    while dim % t:
        t -= 128
    return t


def _ew_row_tile(m, cols, dtype, budget=_EW_BLOCK_BYTES):
    sub = _sublanes(dtype)
    per_row = max(1, cols * jnp.dtype(dtype).itemsize)
    cap = max(sub, (budget // per_row) // sub * sub)
    return _row_tile(m, cap, sub)


def _prelu_scalar(prelu_weight):
    if prelu_weight is None:
        return jnp.full((1,), 0.25, jnp.float32)  # nn.PReLU() default init
    pw = jnp.asarray(prelu_weight)
    if pw.size != 1:
        # TODO(synk): per-channel PReLU (num_parameters=C) not implemented.
        raise NotImplementedError(
            "Only PyTorch-default scalar PReLU (num_parameters=1) is supported.")
    return pw.reshape((1,)).astype(jnp.float32)


# ----------------------------- activation epilogue ---------------------------
def _apply_act(y, act, prelu_w=None):
    """Activation epilogue. Every supported act maps 0 -> 0."""
    if act is None:
        return y
    if act == "relu":
        return jnp.maximum(y, 0)
    if act == "gelu":
        # tanh approximation (tanh goes to the EUP slot).  PyTorch nn.GELU()
        # default is exact erf; max deviation ~1e-3, accepted per perf review.
        return 0.5 * y * (1.0 + jnp.tanh(_GELU_C * (y + 0.044715 * (y * y * y))))
    if act == "selu":
        # exp(x)-1 (guaranteed Mosaic lowering).  Overflow on the untaken
        # positive branch is discarded by the where (no NaN); abs error vs
        # expm1 near 0 is < 1e-7 in f32.
        return _SELU_SCALE * jnp.where(y > 0, y, _SELU_ALPHA * (jnp.exp(y) - 1.0))
    if act == "prelu":
        zero = jnp.zeros((), y.dtype)
        return jnp.maximum(y, zero) + prelu_w * jnp.minimum(y, zero)
    raise ValueError(f"unsupported activation {act}")


# ------------------------ fused matmul (+epilogue) kernels --------------------
def _mm_act_kernel(x_ref, w_ref, b_ref, o_ref, acc_ref, *, act):
    k = pl.program_id(2)

    @pl.when(k == 0)
    def _():
        acc_ref[...] = jnp.zeros_like(acc_ref)

    acc_ref[...] += jnp.dot(x_ref[...], w_ref[...],
                            preferred_element_type=jnp.float32)

    @pl.when(k == pl.num_programs(2) - 1)
    def _():
        y = acc_ref[...] + b_ref[...].astype(jnp.float32)
        o_ref[...] = _apply_act(y, act).astype(o_ref.dtype)


def _mm_prelu_kernel(pw_ref, x_ref, w_ref, b_ref, o_ref, acc_ref):
    k = pl.program_id(2)

    @pl.when(k == 0)
    def _():
        acc_ref[...] = jnp.zeros_like(acc_ref)

    acc_ref[...] += jnp.dot(x_ref[...], w_ref[...],
                            preferred_element_type=jnp.float32)

    @pl.when(k == pl.num_programs(2) - 1)
    def _():
        y = acc_ref[...] + b_ref[...].astype(jnp.float32)
        o_ref[...] = _apply_act(y, "prelu", pw_ref[0]).astype(o_ref.dtype)


def _mm_glu_kernel(x_ref, wa_ref, wb_ref, ba_ref, bb_ref, o_ref,
                   acca_ref, accb_ref):
    k = pl.program_id(2)

    @pl.when(k == 0)
    def _():
        acca_ref[...] = jnp.zeros_like(acca_ref)
        accb_ref[...] = jnp.zeros_like(accb_ref)

    x = x_ref[...]
    acca_ref[...] += jnp.dot(x, wa_ref[...], preferred_element_type=jnp.float32)
    accb_ref[...] += jnp.dot(x, wb_ref[...], preferred_element_type=jnp.float32)

    @pl.when(k == pl.num_programs(2) - 1)
    def _():
        a = acca_ref[...] + ba_ref[...].astype(jnp.float32)
        g = accb_ref[...] + bb_ref[...].astype(jnp.float32)
        o_ref[...] = (a * jax.nn.sigmoid(g)).astype(o_ref.dtype)


def _mm_residual_kernel(x_ref, w_ref, b_ref, r_ref, o_ref, acc_ref):
    k = pl.program_id(2)

    @pl.when(k == 0)
    def _():
        acc_ref[...] = jnp.zeros_like(acc_ref)

    acc_ref[...] += jnp.dot(x_ref[...], w_ref[...],
                            preferred_element_type=jnp.float32)

    @pl.when(k == pl.num_programs(2) - 1)
    def _():
        y = (acc_ref[...] + b_ref[...].astype(jnp.float32)
             + r_ref[...].astype(jnp.float32))
        o_ref[...] = y.astype(o_ref.dtype)


# --------------------------- matmul runners ----------------------------------
def _mm_call(kernel, args, in_specs, M, N, tm, tn, grid, out_dtype, n_acc,
             flops, transcendentals, bytes_accessed):
    o_spec = pl.BlockSpec((tm, tn), lambda i, j, k: (i, j))
    scratch = [pltpu.VMEM((tm, tn), jnp.float32) for _ in range(n_acc)]
    return pl.pallas_call(
        kernel,
        out_shape=jax.ShapeDtypeStruct((M, N), out_dtype),
        grid_spec=pltpu.PrefetchScalarGridSpec(
            num_scalar_prefetch=0, grid=grid,
            in_specs=in_specs, out_specs=o_spec, scratch_shapes=scratch),
        compiler_params=pltpu.CompilerParams(
            dimension_semantics=("parallel", "parallel", "arbitrary"),
            vmem_limit_bytes=_VMEM_LIMIT),
        cost_estimate=pl.CostEstimate(
            flops=int(flops), transcendentals=int(transcendentals),
            bytes_accessed=int(bytes_accessed)),
    )(*args)


def _linear_act(x2d, w, b, act, prelu_w=None):
    """act(x2d @ w + b) with the activation fused into the matmul epilogue."""
    M, K = x2d.shape
    Kw, N = w.shape
    assert K == Kw
    tm = _row_tile(M, 256)
    tk = _col_tile(K)
    tn = _col_tile(N)
    grid = (pl.cdiv(M, tm), pl.cdiv(N, tn), K // tk)
    x_spec = pl.BlockSpec((tm, tk), lambda i, j, k: (i, k))
    w_spec = pl.BlockSpec((tk, tn), lambda i, j, k: (k, j))
    b_spec = pl.BlockSpec((1, tn), lambda i, j, k: (0, j))
    b2 = b.reshape(1, N)
    itemsize = jnp.dtype(x2d.dtype).itemsize
    bytes_accessed = (M * K + K * N + N + M * N) * itemsize
    if act == "prelu":
        kernel = _mm_prelu_kernel
        in_specs = [pl.BlockSpec(memory_space=pltpu.MemorySpace.SMEM),
                    x_spec, w_spec, b_spec]
        args = (prelu_w, x2d, w, b2)
        trans = 0
    else:
        kernel = functools.partial(_mm_act_kernel, act=act)
        in_specs = [x_spec, w_spec, b_spec]
        args = (x2d, w, b2)
        trans = M * N if act in ("gelu", "selu") else 0
    return _mm_call(kernel, args, in_specs, M, N, tm, tn, grid, x2d.dtype,
                    n_acc=1, flops=2 * M * K * N, transcendentals=trans,
                    bytes_accessed=bytes_accessed)


def _linear_glu(x2d, w, b):
    """GLU(x2d @ w + b) fused: two weight halves, two accumulators, one pass of x."""
    M, K = x2d.shape
    Kw, F = w.shape
    assert K == Kw and F % 2 == 0
    h = F // 2
    assert h % 128 == 0, "fused GLU needs feedforward dim % 256 == 0"
    # Only the small, static weight/bias are split -- not the activations.
    wa, wb = w[:, :h], w[:, h:]
    ba, bb = b[:h].reshape(1, h), b[h:].reshape(1, h)
    tm = _row_tile(M, 256)
    tk = _col_tile(K)
    tn = _col_tile(h)
    grid = (pl.cdiv(M, tm), pl.cdiv(h, tn), K // tk)
    x_spec = pl.BlockSpec((tm, tk), lambda i, j, k: (i, k))
    w_spec = pl.BlockSpec((tk, tn), lambda i, j, k: (k, j))
    b_spec = pl.BlockSpec((1, tn), lambda i, j, k: (0, j))
    itemsize = jnp.dtype(x2d.dtype).itemsize
    bytes_accessed = (M * K + K * F + F + M * h) * itemsize
    return _mm_call(_mm_glu_kernel, (x2d, wa, wb, ba, bb),
                    [x_spec, w_spec, w_spec, b_spec, b_spec],
                    M, h, tm, tn, grid, x2d.dtype, n_acc=2,
                    flops=2 * M * K * F, transcendentals=M * h,
                    bytes_accessed=bytes_accessed)


def _linear_residual(x2d, w, b, res2d):
    """res2d + (x2d @ w + b): bias and residual add fused into the epilogue."""
    M, K = x2d.shape
    Kw, N = w.shape
    assert K == Kw and res2d.shape == (M, N)
    tm = _row_tile(M, 256)
    tk = _col_tile(K)
    tn = _col_tile(N)
    grid = (pl.cdiv(M, tm), pl.cdiv(N, tn), K // tk)
    x_spec = pl.BlockSpec((tm, tk), lambda i, j, k: (i, k))
    w_spec = pl.BlockSpec((tk, tn), lambda i, j, k: (k, j))
    b_spec = pl.BlockSpec((1, tn), lambda i, j, k: (0, j))
    r_spec = pl.BlockSpec((tm, tn), lambda i, j, k: (i, j))
    itemsize = jnp.dtype(res2d.dtype).itemsize
    bytes_accessed = (M * K + K * N + N + 2 * M * N) * itemsize
    return _mm_call(_mm_residual_kernel, (x2d, w, b.reshape(1, N), res2d),
                    [x_spec, w_spec, b_spec, r_spec],
                    M, N, tm, tn, grid, res2d.dtype, n_acc=1,
                    flops=2 * M * K * N, transcendentals=0,
                    bytes_accessed=bytes_accessed)


# ------------------------------ LayerNorm -------------------------------------
def _layernorm_kernel(x_ref, g_ref, b_ref, o_ref, *, eps):
    x = x_ref[...].astype(jnp.float32)
    mu = jnp.mean(x, axis=-1, keepdims=True)
    xc = x - mu
    var = jnp.mean(xc * xc, axis=-1, keepdims=True)
    y = xc * jax.lax.rsqrt(var + eps)
    o_ref[...] = (y * g_ref[...].astype(jnp.float32)
                  + b_ref[...].astype(jnp.float32)).astype(o_ref.dtype)


def _add_layernorm_kernel(x_ref, r_ref, g_ref, b_ref, o_ref, *, eps):
    x = x_ref[...].astype(jnp.float32) + r_ref[...].astype(jnp.float32)
    mu = jnp.mean(x, axis=-1, keepdims=True)
    xc = x - mu
    var = jnp.mean(xc * xc, axis=-1, keepdims=True)
    y = xc * jax.lax.rsqrt(var + eps)
    o_ref[...] = (y * g_ref[...].astype(jnp.float32)
                  + b_ref[...].astype(jnp.float32)).astype(o_ref.dtype)


def _layer_norm(x2d, gamma, beta, residual2d=None, eps=_LN_EPS):
    M, C = x2d.shape
    tm = _ew_row_tile(M, C, x2d.dtype, budget=_EW_BLOCK_BYTES_MULTI)
    grid = (pl.cdiv(M, tm),)
    row_spec = pl.BlockSpec((tm, C), lambda i: (i, 0))
    par_spec = pl.BlockSpec((1, C), lambda i: (0, 0))
    g2, b2 = gamma.reshape(1, C), beta.reshape(1, C)
    itemsize = jnp.dtype(x2d.dtype).itemsize
    if residual2d is None:
        kernel = functools.partial(_layernorm_kernel, eps=eps)
        in_specs = [row_spec, par_spec, par_spec]
        args = (x2d, g2, b2)
        bytes_accessed = (2 * M * C + 2 * C) * itemsize
    else:
        kernel = functools.partial(_add_layernorm_kernel, eps=eps)
        in_specs = [row_spec, row_spec, par_spec, par_spec]
        args = (x2d, residual2d, g2, b2)
        bytes_accessed = (3 * M * C + 2 * C) * itemsize
    return pl.pallas_call(
        kernel,
        out_shape=jax.ShapeDtypeStruct((M, C), x2d.dtype),
        grid_spec=pltpu.PrefetchScalarGridSpec(
            num_scalar_prefetch=0, grid=grid,
            in_specs=in_specs, out_specs=row_spec),
        compiler_params=pltpu.CompilerParams(
            dimension_semantics=("parallel",),
            vmem_limit_bytes=_VMEM_LIMIT),
        cost_estimate=pl.CostEstimate(
            flops=8 * M * C, transcendentals=M,
            bytes_accessed=int(bytes_accessed)),
    )(*args)


# ----------------------- standalone elementwise activation -------------------
def _ew_act_kernel(x_ref, o_ref, *, act):
    # Native-dtype compute (bf16 VPU/EUP on v6e/v7x); 0 -> 0 for all acts.
    o_ref[...] = _apply_act(x_ref[...], act).astype(o_ref.dtype)


def _ew_prelu_kernel(pw_ref, x_ref, o_ref):
    x = x_ref[...]
    o_ref[...] = _apply_act(x, "prelu", pw_ref[0].astype(x.dtype))


def _glu_ew_kernel(a_ref, b_ref, o_ref):
    o_ref[...] = a_ref[...] * jax.nn.sigmoid(b_ref[...])


def _ew_call(x2d, act, prelu_w=None):
    M, C = x2d.shape
    tm = _ew_row_tile(M, C, x2d.dtype)
    grid = (pl.cdiv(M, tm),)
    spec = pl.BlockSpec((tm, C), lambda i: (i, 0))
    n = M * C
    itemsize = jnp.dtype(x2d.dtype).itemsize
    if act == "prelu":
        kernel = _ew_prelu_kernel
        in_specs = [pl.BlockSpec(memory_space=pltpu.MemorySpace.SMEM), spec]
        args = (prelu_w, x2d)
    else:
        kernel = functools.partial(_ew_act_kernel, act=act)
        in_specs = [spec]
        args = (x2d,)
    return pl.pallas_call(
        kernel,
        out_shape=jax.ShapeDtypeStruct((M, C), x2d.dtype),
        grid_spec=pltpu.PrefetchScalarGridSpec(
            num_scalar_prefetch=0, grid=grid,
            in_specs=in_specs, out_specs=spec),
        compiler_params=pltpu.CompilerParams(
            dimension_semantics=("parallel",),
            vmem_limit_bytes=_VMEM_LIMIT),
        cost_estimate=pl.CostEstimate(
            flops=4 * n,
            transcendentals=n if act in ("gelu", "selu") else 0,
            bytes_accessed=2 * n * itemsize),
    )(*args)


def _glu_call(x_a, x_b, h, b_col_block):
    """out = A * sigmoid(B); A = column-block 0 of x_a, B = column-block
    `b_col_block` of x_b (x_a is x_b for the same-array halves path)."""
    M = x_a.shape[0]
    tm = _ew_row_tile(M, h, x_a.dtype, budget=_EW_BLOCK_BYTES_MULTI)
    grid = (pl.cdiv(M, tm),)
    a_spec = pl.BlockSpec((tm, h), lambda i: (i, 0))
    b_spec = pl.BlockSpec((tm, h), lambda i: (i, b_col_block))
    o_spec = pl.BlockSpec((tm, h), lambda i: (i, 0))
    n = M * h
    itemsize = jnp.dtype(x_a.dtype).itemsize
    return pl.pallas_call(
        _glu_ew_kernel,
        out_shape=jax.ShapeDtypeStruct((M, h), x_a.dtype),
        grid_spec=pltpu.PrefetchScalarGridSpec(
            num_scalar_prefetch=0, grid=grid,
            in_specs=[a_spec, b_spec], out_specs=o_spec),
        compiler_params=pltpu.CompilerParams(
            dimension_semantics=("parallel",),
            vmem_limit_bytes=_VMEM_LIMIT),
        cost_estimate=pl.CostEstimate(
            flops=2 * n, transcendentals=n,
            bytes_accessed=3 * n * itemsize),
    )(x_a, x_b)


# ------------------------------- public API ----------------------------------
@functools.partial(jax.jit, static_argnames=("act_type",))
def activation_block(x, act_type="relu", prelu_weight=None):
    """Pallas ActivationBlock.forward(x) (standalone / non-fused path)."""
    assert act_type in ("relu", "gelu", "glu", "prelu", "selu"), \
        "Unsupport activation function!"
    orig_shape = x.shape
    C = orig_shape[-1]

    if act_type == "glu":
        assert C % 2 == 0, "GLU needs an even last dim"
        h = C // 2
        if h % 128 == 0:
            # Direct path: both halves pulled straight from HBM by two
            # BlockSpecs on the same array -- no split, pad or output slice.
            x2d = x.reshape(-1, C)
            y = _glu_call(x2d, x2d, h, 1)
            return y.reshape(orig_shape[:-1] + (h,))
        # Ragged fallback (tiny <_LANES-element pad, output slice).
        a = x[..., :h].reshape(-1)
        b = x[..., h:].reshape(-1)
        n = a.size
        rows = pl.cdiv(n, _LANES)
        pad = rows * _LANES - n
        a2 = jnp.pad(a, (0, pad)).reshape(rows, _LANES)
        b2 = jnp.pad(b, (0, pad)).reshape(rows, _LANES)
        y = _glu_call(a2, b2, _LANES, 0)
        return y.reshape(-1)[:n].reshape(orig_shape[:-1] + (h,))

    pw = _prelu_scalar(prelu_weight) if act_type == "prelu" else None
    if C % 128 == 0:
        # Direct lane-dense tiling of the original (tokens, C) view: no pad,
        # no output slice (C = 256 / 1024 / 2048 in the deformable transformer).
        x2d = x.reshape(-1, C)
        y = _ew_call(x2d, act_type, pw)
        return y.reshape(orig_shape)

    # Ragged fallback: <_LANES-element pad to a (rows, 512) lane-dense slab.
    # All supported acts map 0 -> 0 and the pad is sliced off anyway.
    flat = x.reshape(-1)
    n = flat.size
    rows = pl.cdiv(n, _LANES)
    pad = rows * _LANES - n
    x2d = jnp.pad(flat, (0, pad)).reshape(rows, _LANES)
    y = _ew_call(x2d, act_type, pw)
    return y.reshape(-1)[:n].reshape(orig_shape)


@functools.partial(jax.jit, static_argnames=("act_type",))
def forward_ffn(src, w1, b1, w2, b2, ln_weight, ln_bias,
                act_type="relu", prelu_weight=None):
    """DeformableTransformerEncoderLayer.forward_ffn (inference):
        src2 = linear2(dropout2(act(linear1(src))))
        src  = norm2(src + dropout3(src2))
    Weights use (in, out) layout (transpose of torch.nn.Linear.weight).
    For act_type='glu', linear2 must have in_features = feedforward_planes // 2.
    """
    C = src.shape[-1]
    x2d = src.reshape(-1, C)
    if act_type == "glu":
        h = _linear_glu(x2d, w1, b1)
    elif act_type == "prelu":
        h = _linear_act(x2d, w1, b1, "prelu", _prelu_scalar(prelu_weight))
    else:
        assert act_type in ("relu", "gelu", "selu")
        h = _linear_act(x2d, w1, b1, act_type)
    y = _linear_residual(h, w2, b2, x2d)       # linear2 + bias + residual add
    out = _layer_norm(y, ln_weight, ln_bias)   # norm2
    return out.reshape(src.shape)


@functools.partial(jax.jit, static_argnames=("act_type",))
def encoder_layer_post_attention(src, attn_out, ln1_weight, ln1_bias,
                                 w1, b1, w2, b2, ln2_weight, ln2_bias,
                                 act_type="relu", prelu_weight=None):
    """Encoder layer AFTER self-attention:
        src = norm1(src + dropout1(attn_out));  src = forward_ffn(src)
    (MSDeformAttn itself is not implemented -- see module-level TODO.)"""
    C = src.shape[-1]
    s2d = src.reshape(-1, C)
    a2d = attn_out.reshape(-1, C)
    src1 = _layer_norm(s2d, ln1_weight, ln1_bias, residual2d=a2d)
    out = forward_ffn(src1, w1, b1, w2, b2, ln2_weight, ln2_bias,
                      act_type=act_type, prelu_weight=prelu_weight)
    return out.reshape(src.shape)


# ---------------------------- pure-JAX references -----------------------------
def _act_reference(x, act, prelu_w=None):
    if act == "relu":
        return jax.nn.relu(x)
    if act == "gelu":
        return jax.nn.gelu(x, approximate=True)  # kernel uses the tanh form
    if act == "glu":
        a, b = jnp.split(x, 2, axis=-1)
        return a * jax.nn.sigmoid(b)
    if act == "prelu":
        w = jnp.float32(0.25) if prelu_w is None else prelu_w.reshape(())
        return jnp.where(x >= 0, x, w * x)
    if act == "selu":
        return _SELU_SCALE * jnp.where(x > 0, x, _SELU_ALPHA * jnp.expm1(x))
    raise ValueError(act)


def _ffn_reference(src, w1, b1, w2, b2, g, beta, act, prelu_w=None):
    C = src.shape[-1]
    x = src.reshape(-1, C).astype(jnp.float32)
    h = x @ w1 + b1
    h = _act_reference(h, act, prelu_w)
    y = x + (h @ w2 + b2)
    mu = y.mean(-1, keepdims=True)
    var = ((y - mu) ** 2).mean(-1, keepdims=True)
    out = (y - mu) / jnp.sqrt(var + _LN_EPS) * g + beta
    return out.reshape(src.shape).astype(src.dtype)


# ----------------------------------- test -------------------------------------
if __name__ == "__main__":
    key = jax.random.PRNGKey(0)
    keys = jax.random.split(key, 10)
    B, N, C, F = 2, 64, 256, 512  # small but model-consistent (C, F multiples of 128)

    src = 0.5 * jax.random.normal(keys[0], (B, N, C), jnp.float32)
    w1 = jax.random.normal(keys[1], (C, F), jnp.float32) / math.sqrt(C)
    b1 = 0.5 * jax.random.normal(keys[2], (F,), jnp.float32)
    w2 = jax.random.normal(keys[3], (F, C), jnp.float32) / math.sqrt(F)
    w2g = jax.random.normal(keys[4], (F // 2, C), jnp.float32) / math.sqrt(F // 2)
    b2 = 0.5 * jax.random.normal(keys[5], (C,), jnp.float32)
    ln1_w = 1.0 + 0.1 * jax.random.normal(keys[6], (C,), jnp.float32)
    ln1_b = 0.1 * jax.random.normal(keys[7], (C,), jnp.float32)
    ln2_w = 1.0 + 0.1 * jax.random.normal(keys[8], (C,), jnp.float32)
    ln2_b = 0.1 * jax.random.normal(keys[9], (C,), jnp.float32)
    prelu_w = jnp.full((1,), 0.25, jnp.float32)

    def _check(name, got, want, atol, rtol):
        got = jax.block_until_ready(got)
        good = (got.shape == want.shape) and bool(
            jnp.allclose(got, want, atol=atol, rtol=rtol))
        if not good:
            err = (float(jnp.max(jnp.abs(got - want)))
                   if got.shape == want.shape else float("nan"))
            print(f"MISMATCH {name}: max_abs_err={err}")
        return good

    ok = True

    # Fused FFN: linear1 + activation epilogue, linear2 + residual, LayerNorm.
    for act in ("relu", "gelu", "glu", "prelu", "selu"):
        w2a = w2g if act == "glu" else w2
        pw = prelu_w if act == "prelu" else None
        y = forward_ffn(src, w1, b1, w2a, b2, ln2_w, ln2_b,
                        act_type=act, prelu_weight=pw)
        y_ref = _ffn_reference(src, w1, b1, w2a, b2, ln2_w, ln2_b, act, pw)
        ok &= _check(f"ffn[{act}]", y, y_ref, 3e-2, 3e-2)

    # norm1 + FFN composition (the post-attention part of the encoder layer).
    attn_out = 0.5 * jax.random.normal(jax.random.PRNGKey(1), (B, N, C), jnp.float32)
    y = encoder_layer_post_attention(src, attn_out, ln1_w, ln1_b,
                                     w1, b1, w2, b2, ln2_w, ln2_b,
                                     act_type="relu")
    s_ref = src.reshape(-1, C) + attn_out.reshape(-1, C)
    mu = s_ref.mean(-1, keepdims=True)
    var = ((s_ref - mu) ** 2).mean(-1, keepdims=True)
    s_ref = ((s_ref - mu) / jnp.sqrt(var + _LN_EPS) * ln1_w + ln1_b).reshape(B, N, C)
    y_ref = _ffn_reference(s_ref, w1, b1, w2, b2, ln2_w, ln2_b, "relu")
    ok &= _check("encoder_post_attn[relu]", y, y_ref, 3e-2, 3e-2)

    # Standalone ActivationBlock (lane-aligned direct path, no pad/slice).
    xa = jax.random.normal(jax.random.PRNGKey(2), (B, N, C), jnp.float32)
    for act in ("relu", "gelu", "glu", "prelu", "selu"):
        pw = prelu_w if act == "prelu" else None
        y = activation_block(xa, act_type=act, prelu_weight=pw)
        ok &= _check(f"act[{act}]", y, _act_reference(xa, act, pw), 1e-4, 1e-4)

    # Standalone ActivationBlock (ragged-last-dim fallback path).
    xr = jax.random.normal(jax.random.PRNGKey(3), (2, 3, 37, 30), jnp.float32)
    ok &= _check("act_ragged[selu]", activation_block(xr, act_type="selu"),
                 _act_reference(xr, "selu"), 1e-4, 1e-4)
    ok &= _check("act_ragged[glu]", activation_block(xr, act_type="glu"),
                 _act_reference(xr, "glu"), 1e-4, 1e-4)

    if ok:
        print("KERNEL_OK")
</pallas_src>

<mosaic_0001>
module attributes {stable_mosaic.version = 11 : i64} {
  func.func @_mm_residual_kernel(%arg0: i32, %arg1: i32, %arg2: i32, %arg3: memref<128x512xf32, #tpu.memory_space<vmem>>, %arg4: memref<512x256xf32, #tpu.memory_space<vmem>>, %arg5: memref<1x256xf32, #tpu.memory_space<vmem>>, %arg6: memref<128x256xf32, #tpu.memory_space<vmem>>, %arg7: memref<128x256xf32, #tpu.memory_space<vmem>>, %arg8: memref<128x256xf32, #tpu.memory_space<vmem>>) attributes {dimension_semantics = [#tpu.dimension_semantics<parallel>, #tpu.dimension_semantics<parallel>, #tpu.dimension_semantics<arbitrary>], iteration_bounds = array<i64: 1, 1, 1>, scalar_prefetch = 0 : i64, scratch_operands = 1 : i64, tpu.core_type = #tpu.core_type<tc>, window_params = [{transform_indices = @transform_0, window_bounds = array<i64: 128, 512>}, {transform_indices = @transform_1, window_bounds = array<i64: 512, 256>}, {transform_indices = @transform_2, window_bounds = array<i64: 1, 256>}, {transform_indices = @transform_3, window_bounds = array<i64: 128, 256>}, {transform_indices = @transform_4, window_bounds = array<i64: 128, 256>}]} {
    %c0_i32 = arith.constant 0 : i32
    %0 = arith.cmpi eq, %arg2, %c0_i32 : i32
    %1 = arith.extui %0 : i1 to i32
    %c0_i32_0 = arith.constant 0 : i32
    %2 = arith.cmpi ne, %1, %c0_i32_0 : i32
    scf.if %2 {
      %cst_10 = arith.constant 0.000000e+00 : f32
      %12 = vector.broadcast %cst_10 : f32 to vector<128x256xf32>
      %c0_11 = arith.constant 0 : index
      %c0_12 = arith.constant 0 : index
      %13 = vector.load %arg8[%c0_11, %c0_12] : memref<128x256xf32, #tpu.memory_space<vmem>>, vector<128x256xf32>
      tpu.vector_store %arg8[%c0_11, %c0_12], %12 {strides = array<i32>} : memref<128x256xf32, #tpu.memory_space<vmem>>, vector<128x256xf32>,
    } else {
    }
    %c0 = arith.constant 0 : index
    %c0_1 = arith.constant 0 : index
    %3 = vector.load %arg8[%c0, %c0_1] : memref<128x256xf32, #tpu.memory_space<vmem>>, vector<128x256xf32>
    %c0_2 = arith.constant 0 : index
    %c0_3 = arith.constant 0 : index
    %4 = vector.load %arg3[%c0_2, %c0_3] : memref<128x512xf32, #tpu.memory_space<vmem>>, vector<128x512xf32>
    %c0_4 = arith.constant 0 : index
    %c0_5 = arith.constant 0 : index
    %5 = vector.load %arg4[%c0_4, %c0_5] : memref<512x256xf32, #tpu.memory_space<vmem>>, vector<512x256xf32>
    %cst = arith.constant dense<0.000000e+00> : vector<128x256xf32>
    %6 = tpu.matmul %4, %5, %cst {dimension_numbers = #tpu.dot_dimension_numbers<[1], [0], [0], [1], [0, 0, 1, 1], [], []>} : vector<128x512xf32>, vector<512x256xf32>, vector<128x256xf32> -> vector<128x256xf32>
    %7 = arith.addf %3, %6 : vector<128x256xf32>
    %c0_6 = arith.constant 0 : index
    %c0_7 = arith.constant 0 : index
    %8 = vector.load %arg8[%c0_6, %c0_7] : memref<128x256xf32, #tpu.memory_space<vmem>>, vector<128x256xf32>
    tpu.vector_store %arg8[%c0_6, %c0_7], %7 {strides = array<i32>} : memref<128x256xf32, #tpu.memory_space<vmem>>, vector<128x256xf32>,
    %c0_i32_8 = arith.constant 0 : i32
    %9 = arith.cmpi eq, %arg2, %c0_i32_8 : i32
    %10 = arith.extui %9 : i1 to i32
    %c0_i32_9 = arith.constant 0 : i32
    %11 = arith.cmpi ne, %10, %c0_i32_9 : i32
    scf.if %11 {
      %c0_10 = arith.constant 0 : index
      %c0_11 = arith.constant 0 : index
      %12 = vector.load %arg8[%c0_10, %c0_11] : memref<128x256xf32, #tpu.memory_space<vmem>>, vector<128x256xf32>
      %c0_12 = arith.constant 0 : index
      %c0_13 = arith.constant 0 : index
      %13 = vector.load %arg5[%c0_12, %c0_13] : memref<1x256xf32, #tpu.memory_space<vmem>>, vector<1x256xf32>
      %14 = vector.broadcast %13 : vector<1x256xf32> to vector<128x256xf32>
      %15 = arith.addf %12, %14 : vector<128x256xf32>
      %c0_14 = arith.constant 0 : index
      %c0_15 = arith.constant 0 : index
      %16 = vector.load %arg6[%c0_14, %c0_15] : memref<128x256xf32, #tpu.memory_space<vmem>>, vector<128x256xf32>
      %17 = arith.addf %15, %16 : vector<128x256xf32>
      %c0_16 = arith.constant 0 : index
      %c0_17 = arith.constant 0 : index
      %18 = vector.load %arg7[%c0_16, %c0_17] : memref<128x256xf32, #tpu.memory_space<vmem>>, vector<128x256xf32>
      tpu.vector_store %arg7[%c0_16, %c0_17], %17 {strides = array<i32>} : memref<128x256xf32, #tpu.memory_space<vmem>>, vector<128x256xf32>,
    } else {
    }
    return
  }
  func.func @transform_0(%arg0: i32, %arg1: i32, %arg2: i32) -> (i32, i32) {
    %c0_i32 = arith.constant 0 : i32
    return %arg0, %arg2 : i32, i32
  }
  func.func @transform_1(%arg0: i32, %arg1: i32, %arg2: i32) -> (i32, i32) {
    %c0_i32 = arith.constant 0 : i32
    return %arg2, %arg1 : i32, i32
  }
  func.func @transform_2(%arg0: i32, %arg1: i32, %arg2: i32) -> (i32, i32) {
    %c0_i32 = arith.constant 0 : i32
    %c0_i32_0 = arith.constant 0 : i32
    return %c0_i32, %arg1 : i32, i32
  }
  func.func @transform_3(%arg0: i32, %arg1: i32, %arg2: i32) -> (i32, i32) {
    %c0_i32 = arith.constant 0 : i32
    return %arg0, %arg1 : i32, i32
  }
  func.func @transform_4(%arg0: i32, %arg1: i32, %arg2: i32) -> (i32, i32) {
    %c0_i32 = arith.constant 0 : i32
    return %arg0, %arg1 : i32, i32
  }
}

module attributes {stable_mosaic.version = 11 : i64} {
  func.func @_layernorm_kernel(%arg0: i32, %arg1: memref<128x256xf32, #tpu.memory_space<vmem>>, %arg2: memref<1x256xf32, #tpu.memory_space<vmem>>, %arg3: memref<1x256xf32, #tpu.memory_space<vmem>>, %arg4: memref<128x256xf32, #tpu.memory_space<vmem>>) attributes {dimension_semantics = [#tpu.dimension_semantics<parallel>], iteration_bounds = array<i64: 1>, scalar_prefetch = 0 : i64, scratch_operands = 0 : i64, tpu.core_type = #tpu.core_type<tc>, window_params = [{transform_indices = @transform_0, window_bounds = array<i64: 128, 256>}, {pipeline_mode = #tpu.pipeline_mode<synchronous>, transform_indices = @transform_1, window_bounds = array<i64: 1, 256>}, {pipeline_mode = #tpu.pipeline_mode<synchronous>, transform_indices = @transform_2, window_bounds = array<i64: 1, 256>}, {transform_indices = @transform_3, window_bounds = array<i64: 128, 256>}]} {
    %c0 = arith.constant 0 : index
    %c0_0 = arith.constant 0 : index
    %0 = vector.load %arg1[%c0, %c0_0] : memref<128x256xf32, #tpu.memory_space<vmem>>, vector<128x256xf32>
    %cst = arith.constant dense<0.000000e+00> : vector<128xf32>
    %1 = vector.multi_reduction <add>, %0, %cst [1] : vector<128x256xf32> to vector<128xf32>
    %2 = vector.shape_cast %1 : vector<128xf32> to vector<128x1xf32>
    %cst_1 = arith.constant 2.560000e+02 : f32
    %3 = vector.broadcast %cst_1 : f32 to vector<128x1xf32>
    %4 = arith.divf %2, %3 : vector<128x1xf32>
    %5 = vector.broadcast %4 : vector<128x1xf32> to vector<128x256xf32>
    %6 = arith.subf %0, %5 : vector<128x256xf32>
    %7 = arith.mulf %6, %6 : vector<128x256xf32>
    %cst_2 = arith.constant dense<0.000000e+00> : vector<128xf32>
    %8 = vector.multi_reduction <add>, %7, %cst_2 [1] : vector<128x256xf32> to vector<128xf32>
    %9 = vector.shape_cast %8 : vector<128xf32> to vector<128x1xf32>
    %cst_3 = arith.constant 2.560000e+02 : f32
    %10 = vector.broadcast %cst_3 : f32 to vector<128x1xf32>
    %11 = arith.divf %9, %10 : vector<128x1xf32>
    %cst_4 = arith.constant 9.99999974E-6 : f32
    %12 = vector.broadcast %cst_4 : f32 to vector<128x1xf32>
    %13 = arith.addf %11, %12 : vector<128x1xf32>
    %14 = math.rsqrt %13 : vector<128x1xf32>
    %15 = vector.broadcast %14 : vector<128x1xf32> to vector<128x256xf32>
    %16 = arith.mulf %6, %15 : vector<128x256xf32>
    %c0_5 = arith.constant 0 : index
    %c0_6 = arith.constant 0 : index
    %17 = vector.load %arg2[%c0_5, %c0_6] : memref<1x256xf32, #tpu.memory_space<vmem>>, vector<1x256xf32>
    %18 = vector.broadcast %17 : vector<1x256xf32> to vector<128x256xf32>
    %19 = arith.mulf %16, %18 : vector<128x256xf32>
    %c0_7 = arith.constant 0 : index
    %c0_8 = arith.constant 0 : index
    %20 = vector.load %arg3[%c0_7, %c0_8] : memref<1x256xf32, #tpu.memory_space<vmem>>, vector<1x256xf32>
    %21 = vector.broadcast %20 : vector<1x256xf32> to vector<128x256xf32>
    %22 = arith.addf %19, %21 : vector<128x256xf32>
    %c0_9 = arith.constant 0 : index
    %c0_10 = arith.constant 0 : index
    %23 = vector.load %arg4[%c0_9, %c0_10] : memref<128x256xf32, #tpu.memory_space<vmem>>, vector<128x256xf32>
    tpu.vector_store %arg4[%c0_9, %c0_10], %22 {strides = array<i32>} : memref<128x256xf32, #tpu.memory_space<vmem>>, vector<128x256xf32>,
    return
  }
  func.func @transform_0(%arg0: i32) -> (i32, i32) {
    %c0_i32 = arith.constant 0 : i32
    %c0_i32_0 = arith.constant 0 : i32
    return %arg0, %c0_i32 : i32, i32
  }
  func.func @transform_1(%arg0: i32) -> (i32, i32) {
    %c0_i32 = arith.constant 0 : i32
    %c0_i32_0 = arith.constant 0 : i32
    %c0_i32_1 = arith.constant 0 : i32
    return %c0_i32, %c0_i32_0 : i32, i32
  }
  func.func @transform_2(%arg0: i32) -> (i32, i32) {
    %c0_i32 = arith.constant 0 : i32
    %c0_i32_0 = arith.constant 0 : i32
    %c0_i32_1 = arith.constant 0 : i32
    return %c0_i32, %c0_i32_0 : i32, i32
  }
  func.func @transform_3(%arg0: i32) -> (i32, i32) {
    %c0_i32 = arith.constant 0 : i32
    %c0_i32_0 = arith.constant 0 : i32
    return %arg0, %c0_i32 : i32, i32
  }
}

module attributes {stable_mosaic.version = 11 : i64} {
  func.func @_mm_act_kernel(%arg0: i32, %arg1: i32, %arg2: i32, %arg3: memref<128x256xf32, #tpu.memory_space<vmem>>, %arg4: memref<256x512xf32, #tpu.memory_space<vmem>>, %arg5: memref<1x512xf32, #tpu.memory_space<vmem>>, %arg6: memref<128x512xf32, #tpu.memory_space<vmem>>, %arg7: memref<128x512xf32, #tpu.memory_space<vmem>>) attributes {dimension_semantics = [#tpu.dimension_semantics<parallel>, #tpu.dimension_semantics<parallel>, #tpu.dimension_semantics<arbitrary>], iteration_bounds = array<i64: 1, 1, 1>, scalar_prefetch = 0 : i64, scratch_operands = 1 : i64, tpu.core_type = #tpu.core_type<tc>, window_params = [{transform_indices = @transform_0, window_bounds = array<i64: 128, 256>}, {transform_indices = @transform_1, window_bounds = array<i64: 256, 512>}, {transform_indices = @transform_2, window_bounds = array<i64: 1, 512>}, {transform_indices = @transform_3, window_bounds = array<i64: 128, 512>}]} {
    %c0_i32 = arith.constant 0 : i32
    %0 = arith.cmpi eq, %arg2, %c0_i32 : i32
    %1 = arith.extui %0 : i1 to i32
    %c0_i32_0 = arith.constant 0 : i32
    %2 = arith.cmpi ne, %1, %c0_i32_0 : i32
    scf.if %2 {
      %cst_10 = arith.constant 0.000000e+00 : f32
      %12 = vector.broadcast %cst_10 : f32 to vector<128x512xf32>
      %c0_11 = arith.constant 0 : index
      %c0_12 = arith.constant 0 : index
      %13 = vector.load %arg7[%c0_11, %c0_12] : memref<128x512xf32, #tpu.memory_space<vmem>>, vector<128x512xf32>
      tpu.vector_store %arg7[%c0_11, %c0_12], %12 {strides = array<i32>} : memref<128x512xf32, #tpu.memory_space<vmem>>, vector<128x512xf32>,
    } else {
    }
    %c0 = arith.constant 0 : index
    %c0_1 = arith.constant 0 : index
    %3 = vector.load %arg7[%c0, %c0_1] : memref<128x512xf32, #tpu.memory_space<vmem>>, vector<128x512xf32>
    %c0_2 = arith.constant 0 : index
    %c0_3 = arith.constant 0 : index
    %4 = vector.load %arg3[%c0_2, %c0_3] : memref<128x256xf32, #tpu.memory_space<vmem>>, vector<128x256xf32>
    %c0_4 = arith.constant 0 : index
    %c0_5 = arith.constant 0 : index
    %5 = vector.load %arg4[%c0_4, %c0_5] : memref<256x512xf32, #tpu.memory_space<vmem>>, vector<256x512xf32>
    %cst = arith.constant dense<0.000000e+00> : vector<128x512xf32>
    %6 = tpu.matmul %4, %5, %cst {dimension_numbers = #tpu.dot_dimension_numbers<[1], [0], [0], [1], [0, 0, 1, 1], [], []>} : vector<128x256xf32>, vector<256x512xf32>, vector<128x512xf32> -> vector<128x512xf32>
    %7 = arith.addf %3, %6 : vector<128x512xf32>
    %c0_6 = arith.constant 0 : index
    %c0_7 = arith.constant 0 : index
    %8 = vector.load %arg7[%c0_6, %c0_7] : memref<128x512xf32, #tpu.memory_space<vmem>>, vector<128x512xf32>
    tpu.vector_store %arg7[%c0_6, %c0_7], %7 {strides = array<i32>} : memref<128x512xf32, #tpu.memory_space<vmem>>, vector<128x512xf32>,
    %c0_i32_8 = arith.constant 0 : i32
    %9 = arith.cmpi eq, %arg2, %c0_i32_8 : i32
    %10 = arith.extui %9 : i1 to i32
    %c0_i32_9 = arith.constant 0 : i32
    %11 = arith.cmpi ne, %10, %c0_i32_9 : i32
    scf.if %11 {
      %c0_10 = arith.constant 0 : index
      %c0_11 = arith.constant 0 : index
      %12 = vector.load %arg7[%c0_10, %c0_11] : memref<128x512xf32, #tpu.memory_space<vmem>>, vector<128x512xf32>
      %c0_12 = arith.constant 0 : index
      %c0_13 = arith.constant 0 : index
      %13 = vector.load %arg5[%c0_12, %c0_13] : memref<1x512xf32, #tpu.memory_space<vmem>>, vector<1x512xf32>
      %14 = vector.broadcast %13 : vector<1x512xf32> to vector<128x512xf32>
      %15 = arith.addf %12, %14 : vector<128x512xf32>
      %cst_14 = arith.constant 0.000000e+00 : f32
      %16 = vector.broadcast %cst_14 : f32 to vector<128x512xf32>
      %17 = arith.maximumf %15, %16 : vector<128x512xf32>
      %c0_15 = arith.constant 0 : index
      %c0_16 = arith.constant 0 : index
      %18 = vector.load %arg6[%c0_15, %c0_16] : memref<128x512xf32, #tpu.memory_space<vmem>>, vector<128x512xf32>
      tpu.vector_store %arg6[%c0_15, %c0_16], %17 {strides = array<i32>} : memref<128x512xf32, #tpu.memory_space<vmem>>, vector<128x512xf32>,
    } else {
    }
    return
  }
  func.func @transform_0(%arg0: i32, %arg1: i32, %arg2: i32) -> (i32, i32) {
    %c0_i32 = arith.constant 0 : i32
    return %arg0, %arg2 : i32, i32
  }
  func.func @transform_1(%arg0: i32, %arg1: i32, %arg2: i32) -> (i32, i32) {
    %c0_i32 = arith.constant 0 : i32
    return %arg2, %arg1 : i32, i32
  }
  func.func @transform_2(%arg0: i32, %arg1: i32, %arg2: i32) -> (i32, i32) {
    %c0_i32 = arith.constant 0 : i32
    %c0_i32_0 = arith.constant 0 : i32
    return %c0_i32, %arg1 : i32, i32
  }
  func.func @transform_3(%arg0: i32, %arg1: i32, %arg2: i32) -> (i32, i32) {
    %c0_i32 = arith.constant 0 : i32
    return %arg0, %arg1 : i32, i32
  }
}

</mosaic_0001>

<llo_original>
// kernel: forward_ffn.5
$region0: #{forward_ffn.5}
  #allocation0 [shape = 'u32[]', space=smem, size = 0x4, offset = 0x4, fixed_abs, tag = 'smem constant byte address 0x4 - core index']
  #allocation1 [shape = 'u32[144,128]{1,0:T(1,128)}', space=vmem, size = 0x12000, scoped, tag = 'internal scratch']
  %s0 = inlined_call_operand.vmem [shape: f32[128,256], index: 0, kind: input, shape index: {}]
  %s1 = inlined_call_operand.vmem [shape: f32[1,256], index: 1, kind: input, shape index: {}]
  %s2 = inlined_call_operand.vmem [shape: f32[1,256], index: 2, kind: input, shape index: {}]
  %s3 = inlined_call_operand.hbm [shape: f32[128,256], index: 3, kind: output, shape index: {}]
  %s4 = sld [smem:[#allocation0]]
  $region22: #{forward_ffn.5} parent=0
    _
  %s6 = ssub.s32 1, %s4
  %s7 = scalar_select 0, %s6, %s4
  $region1: #{forward_ffn.5} parent=0
    #allocation2 [shape = 'u8[131072]{0}', space=vmem, size = 0x20000, scoped, tag = 'output window, operand 0, single buffered']
    #allocation3 [shape = 's32[1]{0}', space=sflag, size = 0x4, scoped, tag = 'scoped memory for forward_ffn.5']
    %8 = vsyncpa [#allocation3], 0
    // Predicated region
    $region2: #{forward_ffn.5} parent=1 // pred_check
      _
    $region3: #{forward_ffn.5} parent=1 // pred_check_branch
      %10 = sbr.rel (0) target = $region5
    $region4: #{forward_ffn.5} parent=1 // pred_region
      _
    $region5: #{forward_ffn.5} parent=1 // pred_fallthru
      _
    // Predicated region
    $region6: #{forward_ffn.5} parent=1 // pred_check
      _
    $region7: #{forward_ffn.5} parent=1 // pred_check_branch
      %12 = sbr.rel (0) target = $region9
    $region8: #{forward_ffn.5} parent=1 // pred_region
      _
    $region9: #{forward_ffn.5} parent=1 // pred_fallthru
      _
    // Predicated region
    $region10: #{forward_ffn.5} parent=1 // pred_check
      _
    $region11: #{forward_ffn.5} parent=1 // pred_check_branch
      %14 = sbr.rel (0) target = $region13
    $region12: #{forward_ffn.5} parent=1 // pred_region
      _
    $region13: #{forward_ffn.5} parent=1 // pred_fallthru
      _
    %v15 = vld [vmem:[%s0] sm:$0xff]
    %v16 = vld [vmem:[%s0 + $0x8] sm:$0xff]
    %v17 = vld [vmem:[%s0 + $0x10] sm:$0xff]
    %v18 = vld [vmem:[%s0 + $0x18] sm:$0xff]
    %v19 = vld [vmem:[%s0 + $0x20] sm:$0xff]
    %v20 = vld [vmem:[%s0 + $0x28] sm:$0xff]
    %v21 = vld [vmem:[%s0 + $0x30] sm:$0xff]
    %v22 = vld [vmem:[%s0 + $0x38] sm:$0xff]
    %v23 = vld [vmem:[%s0 + $0x40] sm:$0xff]
    %v24 = vld [vmem:[%s0 + $0x48] sm:$0xff]
    %v25 = vld [vmem:[%s0 + $0x50] sm:$0xff]
    %v26 = vld [vmem:[%s0 + $0x58] sm:$0xff]
    %v27 = vld [vmem:[%s0 + $0x60] sm:$0xff]
    %v28 = vld [vmem:[%s0 + $0x68] sm:$0xff]
    %v29 = vld [vmem:[%s0 + $0x70] sm:$0xff]
    %v30 = vld [vmem:[%s0 + $0x78] sm:$0xff]
    %v31 = vld [vmem:[%s0 + $0x80] sm:$0xff]
    %v32 = vld [vmem:[%s0 + $0x88] sm:$0xff]
    %v33 = vld [vmem:[%s0 + $0x90] sm:$0xff]
    %v34 = vld [vmem:[%s0 + $0x98] sm:$0xff]
    %v35 = vld [vmem:[%s0 + $0xa0] sm:$0xff]
    %v36 = vld [vmem:[%s0 + $0xa8] sm:$0xff]
    %v37 = vld [vmem:[%s0 + $0xb0] sm:$0xff]
    %v38 = vld [vmem:[%s0 + $0xb8] sm:$0xff]
    %v39 = vld [vmem:[%s0 + $0xc0] sm:$0xff]
    %v40 = vld [vmem:[%s0 + $0xc8] sm:$0xff]
    %v41 = vld [vmem:[%s0 + $0xd0] sm:$0xff]
    %v42 = vld [vmem:[%s0 + $0xd8] sm:$0xff]
    %v43 = vld [vmem:[%s0 + $0xe0] sm:$0xff]
    %v44 = vld [vmem:[%s0 + $0xe8] sm:$0xff]
    %v45 = vld [vmem:[%s0 + $0xf0] sm:$0xff]
    %v46 = vld [vmem:[%s0 + $0xf8] sm:$0xff]
    %v47 = vadd.f32 %v15, %v16
    %48 = vadd.xlane.f32.xlu0 %v47
    %v49 = vpop.xlane.xlu0 %48
    %v50 = vadd.f32 %v17, %v18
    %51 = vadd.xlane.f32.xlu0 %v50
    %v52 = vpop.xlane.xlu0 %51
    %v53 = vadd.f32 %v19, %v20
    %54 = vadd.xlane.f32.xlu0 %v53
    %v55 = vpop.xlane.xlu0 %54
    %v56 = vadd.f32 %v21, %v22
    %57 = vadd.xlane.f32.xlu0 %v56
    %v58 = vpop.xlane.xlu0 %57
    %v59 = vadd.f32 %v23, %v24
    %60 = vadd.xlane.f32.xlu0 %v59
    %v61 = vpop.xlane.xlu0 %60
    %v62 = vadd.f32 %v25, %v26
    %63 = vadd.xlane.f32.xlu0 %v62
    %v64 = vpop.xlane.xlu0 %63
    %v65 = vadd.f32 %v27, %v28
    %66 = vadd.xlane.f32.xlu0 %v65
    %v67 = vpop.xlane.xlu0 %66
    %v68 = vadd.f32 %v29, %v30
    %69 = vadd.xlane.f32.xlu0 %v68
    %v70 = vpop.xlane.xlu0 %69
    %v71 = vadd.f32 %v31, %v32
    %72 = vadd.xlane.f32.xlu0 %v71
    %v73 = vpop.xlane.xlu0 %72
    %v74 = vadd.f32 %v33, %v34
    %75 = vadd.xlane.f32.xlu0 %v74
    %v76 = vpop.xlane.xlu0 %75
    %v77 = vadd.f32 %v35, %v36
    %78 = vadd.xlane.f32.xlu0 %v77
    %v79 = vpop.xlane.xlu0 %78
    %v80 = vadd.f32 %v37, %v38
    %81 = vadd.xlane.f32.xlu0 %v80
    %v82 = vpop.xlane.xlu0 %81
    %v83 = vadd.f32 %v39, %v40
    %84 = vadd.xlane.f32.xlu0 %v83
    %v85 = vpop.xlane.xlu0 %84
    %v86 = vadd.f32 %v41, %v42
    %87 = vadd.xlane.f32.xlu0 %v86
    %v88 = vpop.xlane.xlu0 %87
    %v89 = vadd.f32 %v43, %v44
    %90 = vadd.xlane.f32.xlu0 %v89
    %v91 = vpop.xlane.xlu0 %90
    %v92 = vadd.f32 %v45, %v46
    %93 = vadd.xlane.f32.xlu0 %v92
    %v94 = vpop.xlane.xlu0 %93
    %v95 = vrcp.pop 256.0
    %v96 = vmul.f32 %v49, %v95
    %v97 = vmul.f32 %v52, %v95
    %v98 = vmul.f32 %v55, %v95
    %v99 = vmul.f32 %v58, %v95
    %v100 = vmul.f32 %v61, %v95
    %v101 = vmul.f32 %v64, %v95
    %v102 = vmul.f32 %v67, %v95
    %v103 = vmul.f32 %v70, %v95
    %v104 = vmul.f32 %v73, %v95
    %v105 = vmul.f32 %v76, %v95
    %v106 = vmul.f32 %v79, %v95
    %v107 = vmul.f32 %v82, %v95
    %v108 = vmul.f32 %v85, %v95
    %v109 = vmul.f32 %v88, %v95
    %v110 = vmul.f32 %v91, %v95
    %v111 = vmul.f32 %v94, %v95
    %v112 = vsub.f32 %v15, %v96
    %v113 = vsub.f32 %v16, %v96
    %v114 = vsub.f32 %v17, %v97
    %v115 = vsub.f32 %v18, %v97
    %v116 = vsub.f32 %v19, %v98
    %v117 = vsub.f32 %v20, %v98
    %v118 = vsub.f32 %v21, %v99
    %v119 = vsub.f32 %v22, %v99
    %v120 = vsub.f32 %v23, %v100
    %v121 = vsub.f32 %v24, %v100
    %v122 = vsub.f32 %v25, %v101
    %v123 = vsub.f32 %v26, %v101
    %v124 = vsub.f32 %v27, %v102
    %v125 = vsub.f32 %v28, %v102
    %v126 = vsub.f32 %v29, %v103
    %v127 = vsub.f32 %v30, %v103
    %v128 = vsub.f32 %v31, %v104
    %v129 = vsub.f32 %v32, %v104
    %v130 = vsub.f32 %v33, %v105
    %v131 = vsub.f32 %v34, %v105
    %v132 = vsub.f32 %v35, %v106
    %v133 = vsub.f32 %v36, %v106
    %v134 = vsub.f32 %v37, %v107
    %v135 = vsub.f32 %v38, %v107
    %v136 = vsub.f32 %v39, %v108
    %v137 = vsub.f32 %v40, %v108
    %v138 = vsub.f32 %v41, %v109
    %v139 = vsub.f32 %v42, %v109
    %v140 = vsub.f32 %v43, %v110
    %v141 = vsub.f32 %v44, %v110
    %v142 = vsub.f32 %v45, %v111
    %v143 = vsub.f32 %v46, %v111
    %v144 = vmul.f32 %v112, %v112
    %v145 = vmul.f32 %v113, %v113
    %v146 = vmul.f32 %v114, %v114
    %v147 = vmul.f32 %v115, %v115
    %v148 = vmul.f32 %v116, %v116
    %v149 = vmul.f32 %v117, %v117
    %v150 = vmul.f32 %v118, %v118
    %v151 = vmul.f32 %v119, %v119
    %v152 = vmul.f32 %v120, %v120
    %v153 = vmul.f32 %v121, %v121
    %v154 = vmul.f32 %v122, %v122
    %v155 = vmul.f32 %v123, %v123
    %v156 = vmul.f32 %v124, %v124
    %v157 = vmul.f32 %v125, %v125
    %v158 = vmul.f32 %v126, %v126
    %v159 = vmul.f32 %v127, %v127
    %v160 = vmul.f32 %v128, %v128
    %v161 = vmul.f32 %v129, %v129
    %v162 = vmul.f32 %v130, %v130
    %v163 = vmul.f32 %v131, %v131
    %v164 = vmul.f32 %v132, %v132
    %v165 = vmul.f32 %v133, %v133
    %v166 = vmul.f32 %v134, %v134
    %v167 = vmul.f32 %v135, %v135
    %v168 = vmul.f32 %v136, %v136
    %v169 = vmul.f32 %v137, %v137
    %v170 = vmul.f32 %v138, %v138
    %v171 = vmul.f32 %v139, %v139
    %v172 = vmul.f32 %v140, %v140
    %v173 = vmul.f32 %v141, %v141
    %v174 = vmul.f32 %v142, %v142
    %v175 = vmul.f32 %v143, %v143
    %v176 = vadd.f32 %v144, %v145
    %177 = vadd.xlane.f32.xlu0 %v176
    %v178 = vpop.xlane.xlu0 %177
    %v179 = vadd.f32 %v146, %v147
    %180 = vadd.xlane.f32.xlu0 %v179
    %v181 = vpop.xlane.xlu0 %180
    %v182 = vadd.f32 %v148, %v149
    %183 = vadd.xlane.f32.xlu0 %v182
    %v184 = vpop.xlane.xlu0 %183
    %v185 = vadd.f32 %v150, %v151
    %186 = vadd.xlane.f32.xlu0 %v185
    %v187 = vpop.xlane.xlu0 %186
    %v188 = vadd.f32 %v152, %v153
    %189 = vadd.xlane.f32.xlu0 %v188
    %v190 = vpop.xlane.xlu0 %189
    %v191 = vadd.f32 %v154, %v155
    %192 = vadd.xlane.f32.xlu0 %v191
    %v193 = vpop.xlane.xlu0 %192
    %v194 = vadd.f32 %v156, %v157
    %195 = vadd.xlane.f32.xlu0 %v194
    %v196 = vpop.xlane.xlu0 %195
    %v197 = vadd.f32 %v158, %v159
    %198 = vadd.xlane.f32.xlu0 %v197
    %v199 = vpop.xlane.xlu0 %198
    %v200 = vadd.f32 %v160, %v161
    %201 = vadd.xlane.f32.xlu0 %v200
    %v202 = vpop.xlane.xlu0 %201
    %v203 = vadd.f32 %v162, %v163
    %204 = vadd.xlane.f32.xlu0 %v203
    %v205 = vpop.xlane.xlu0 %204
    %v206 = vadd.f32 %v164, %v165
    %207 = vadd.xlane.f32.xlu0 %v206
    %v208 = vpop.xlane.xlu0 %207
    %v209 = vadd.f32 %v166, %v167
    %210 = vadd.xlane.f32.xlu0 %v209
    %v211 = vpop.xlane.xlu0 %210
    %v212 = vadd.f32 %v168, %v169
    %213 = vadd.xlane.f32.xlu0 %v212
    %v214 = vpop.xlane.xlu0 %213
    %v215 = vadd.f32 %v170, %v171
    %216 = vadd.xlane.f32.xlu0 %v215
    %v217 = vpop.xlane.xlu0 %216
    %v218 = vadd.f32 %v172, %v173
    %219 = vadd.xlane.f32.xlu0 %v218
    %v220 = vpop.xlane.xlu0 %219
    %v221 = vadd.f32 %v174, %v175
    %222 = vadd.xlane.f32.xlu0 %v221
    %v223 = vpop.xlane.xlu0 %222
    %v224 = vmul.f32 %v178, %v95
    %v225 = vmul.f32 %v181, %v95
    %v226 = vmul.f32 %v184, %v95
    %v227 = vmul.f32 %v187, %v95
    %v228 = vmul.f32 %v190, %v95
    %v229 = vmul.f32 %v193, %v95
    %v230 = vmul.f32 %v196, %v95
    %v231 = vmul.f32 %v199, %v95
    %v232 = vmul.f32 %v202, %v95
    %v233 = vmul.f32 %v205, %v95
    %v234 = vmul.f32 %v208, %v95
    %v235 = vmul.f32 %v211, %v95
    %v236 = vmul.f32 %v214, %v95
    %v237 = vmul.f32 %v217, %v95
    %v238 = vmul.f32 %v220, %v95
    %v239 = vmul.f32 %v223, %v95
    %v240 = vadd.f32 %v224, 1e-05
    %v241 = vadd.f32 %v225, 1e-05
    %v242 = vadd.f32 %v226, 1e-05
    %v243 = vadd.f32 %v227, 1e-05
    %v244 = vadd.f32 %v228, 1e-05
    %v245 = vadd.f32 %v229, 1e-05
    %v246 = vadd.f32 %v230, 1e-05
    %v247 = vadd.f32 %v231, 1e-05
    %v248 = vadd.f32 %v232, 1e-05
    %v249 = vadd.f32 %v233, 1e-05
    %v250 = vadd.f32 %v234, 1e-05
    %v251 = vadd.f32 %v235, 1e-05
    %v252 = vadd.f32 %v236, 1e-05
    %v253 = vadd.f32 %v237, 1e-05
    %v254 = vadd.f32 %v238, 1e-05
    %v255 = vadd.f32 %v239, 1e-05
    %v256 = vrsqrt.pop %v240
    %v257 = vrsqrt.pop %v241
    %v258 = vrsqrt.pop %v242
    %v259 = vrsqrt.pop %v243
    %v260 = vrsqrt.pop %v244
    %v261 = vrsqrt.pop %v245
    %v262 = vrsqrt.pop %v246
    %v263 = vrsqrt.pop %v247
    %v264 = vrsqrt.pop %v248
    %v265 = vrsqrt.pop %v249
    %v266 = vrsqrt.pop %v250
    %v267 = vrsqrt.pop %v251
    %v268 = vrsqrt.pop %v252
    %v269 = vrsqrt.pop %v253
    %v270 = vrsqrt.pop %v254
    %v271 = vrsqrt.pop %v255
    %v272 = vmul.f32 %v112, %v256
    %v273 = vmul.f32 %v113, %v256
    %v274 = vmul.f32 %v114, %v257
    %v275 = vmul.f32 %v115, %v257
    %v276 = vmul.f32 %v116, %v258
    %v277 = vmul.f32 %v117, %v258
    %v278 = vmul.f32 %v118, %v259
    %v279 = vmul.f32 %v119, %v259
    %v280 = vmul.f32 %v120, %v260
    %v281 = vmul.f32 %v121, %v260
    %v282 = vmul.f32 %v122, %v261
    %v283 = vmul.f32 %v123, %v261
    %v284 = vmul.f32 %v124, %v262
    %v285 = vmul.f32 %v125, %v262
    %v286 = vmul.f32 %v126, %v263
    %v287 = vmul.f32 %v127, %v263
    %v288 = vmul.f32 %v128, %v264
    %v289 = vmul.f32 %v129, %v264
    %v290 = vmul.f32 %v130, %v265
    %v291 = vmul.f32 %v131, %v265
    %v292 = vmul.f32 %v132, %v266
    %v293 = vmul.f32 %v133, %v266
    %v294 = vmul.f32 %v134, %v267
    %v295 = vmul.f32 %v135, %v267
    %v296 = vmul.f32 %v136, %v268
    %v297 = vmul.f32 %v137, %v268
    %v298 = vmul.f32 %v138, %v269
    %v299 = vmul.f32 %v139, %v269
    %v300 = vmul.f32 %v140, %v270
    %v301 = vmul.f32 %v141, %v270
    %v302 = vmul.f32 %v142, %v271
    %v303 = vmul.f32 %v143, %v271
    %v304 = vld [vmem:[%s1] sm:$0x3]
    %v306 = vlaneseq
    %v307 = vshrl.u32 %v306, 7
    %v308 = vsub.s32 0, %v307
    %v309 = vrot.slane %v304, %v308
    %v310 = vlaneseq
    %v311 = vshrl.u32 %v310, 7
    %v312 = vsub.s32 1, %v311
    %v313 = vrot.slane %v304, %v312
    %v316 = vmul.f32 %v272, %v309
    %v317 = vmul.f32 %v273, %v313
    %v318 = vmul.f32 %v274, %v309
    %v319 = vmul.f32 %v275, %v313
    %v320 = vmul.f32 %v276, %v309
    %v321 = vmul.f32 %v277, %v313
    %v322 = vmul.f32 %v278, %v309
    %v323 = vmul.f32 %v279, %v313
    %v324 = vmul.f32 %v280, %v309
    %v325 = vmul.f32 %v281, %v313
    %v326 = vmul.f32 %v282, %v309
    %v327 = vmul.f32 %v283, %v313
    %v328 = vmul.f32 %v284, %v309
    %v329 = vmul.f32 %v285, %v313
    %v330 = vmul.f32 %v286, %v309
    %v331 = vmul.f32 %v287, %v313
    %v332 = vmul.f32 %v288, %v309
    %v333 = vmul.f32 %v289, %v313
    %v334 = vmul.f32 %v290, %v309
    %v335 = vmul.f32 %v291, %v313
    %v336 = vmul.f32 %v292, %v309
    %v337 = vmul.f32 %v293, %v313
    %v338 = vmul.f32 %v294, %v309
    %v339 = vmul.f32 %v295, %v313
    %v340 = vmul.f32 %v296, %v309
    %v341 = vmul.f32 %v297, %v313
    %v342 = vmul.f32 %v298, %v309
    %v343 = vmul.f32 %v299, %v313
    %v344 = vmul.f32 %v300, %v309
    %v345 = vmul.f32 %v301, %v313
    %v346 = vmul.f32 %v302, %v309
    %v347 = vmul.f32 %v303, %v313
    %v348 = vld [vmem:[%s2] sm:$0x3]
    %v350 = vlaneseq
    %v351 = vshrl.u32 %v350, 7
    %v352 = vsub.s32 0, %v351
    %v353 = vrot.slane %v348, %v352
    %v354 = vlaneseq
    %v355 = vshrl.u32 %v354, 7
    %v356 = vsub.s32 1, %v355
    %v357 = vrot.slane %v348, %v356
    %v360 = vadd.f32 %v316, %v353
    %v361 = vadd.f32 %v317, %v357
    %v362 = vadd.f32 %v318, %v353
    %v363 = vadd.f32 %v319, %v357
    %v364 = vadd.f32 %v320, %v353
    %v365 = vadd.f32 %v321, %v357
    %v366 = vadd.f32 %v322, %v353
    %v367 = vadd.f32 %v323, %v357
    %v368 = vadd.f32 %v324, %v353
    %v369 = vadd.f32 %v325, %v357
    %v370 = vadd.f32 %v326, %v353
    %v371 = vadd.f32 %v327, %v357
    %v372 = vadd.f32 %v328, %v353
    %v373 = vadd.f32 %v329, %v357
    %v374 = vadd.f32 %v330, %v353
    %v375 = vadd.f32 %v331, %v357
    %v376 = vadd.f32 %v332, %v353
    %v377 = vadd.f32 %v333, %v357
    %v378 = vadd.f32 %v334, %v353
    %v379 = vadd.f32 %v335, %v357
    %v380 = vadd.f32 %v336, %v353
    %v381 = vadd.f32 %v337, %v357
    %v382 = vadd.f32 %v338, %v353
    %v383 = vadd.f32 %v339, %v357
    %v384 = vadd.f32 %v340, %v353
    %v385 = vadd.f32 %v341, %v357
    %v386 = vadd.f32 %v342, %v353
    %v387 = vadd.f32 %v343, %v357
    %v388 = vadd.f32 %v344, %v353
    %v389 = vadd.f32 %v345, %v357
    %v390 = vadd.f32 %v346, %v353
    %v391 = vadd.f32 %v347, %v357
    %392 = vst [vmem:[#allocation2] sm:$0xff] %v360
    %393 = vst [vmem:[#allocation2 + $0x8] sm:$0xff] %v361
    %394 = vst [vmem:[#allocation2 + $0x10] sm:$0xff] %v362
    %395 = vst [vmem:[#allocation2 + $0x18] sm:$0xff] %v363
    %396 = vst [vmem:[#allocation2 + $0x20] sm:$0xff] %v364
    %397 = vst [vmem:[#allocation2 + $0x28] sm:$0xff] %v365
    %398 = vst [vmem:[#allocation2 + $0x30] sm:$0xff] %v366
    %399 = vst [vmem:[#allocation2 + $0x38] sm:$0xff] %v367
    %400 = vst [vmem:[#allocation2 + $0x40] sm:$0xff] %v368
    %401 = vst [vmem:[#allocation2 + $0x48] sm:$0xff] %v369
    %402 = vst [vmem:[#allocation2 + $0x50] sm:$0xff] %v370
    %403 = vst [vmem:[#allocation2 + $0x58] sm:$0xff] %v371
    %404 = vst [vmem:[#allocation2 + $0x60] sm:$0xff] %v372
    %405 = vst [vmem:[#allocation2 + $0x68] sm:$0xff] %v373
    %406 = vst [vmem:[#allocation2 + $0x70] sm:$0xff] %v374
    %407 = vst [vmem:[#allocation2 + $0x78] sm:$0xff] %v375
    %408 = vst [vmem:[#allocation2 + $0x80] sm:$0xff] %v376
    %409 = vst [vmem:[#allocation2 + $0x88] sm:$0xff] %v377
    %410 = vst [vmem:[#allocation2 + $0x90] sm:$0xff] %v378
    %411 = vst [vmem:[#allocation2 + $0x98] sm:$0xff] %v379
    %412 = vst [vmem:[#allocation2 + $0xa0] sm:$0xff] %v380
    %413 = vst [vmem:[#allocation2 + $0xa8] sm:$0xff] %v381
    %414 = vst [vmem:[#allocation2 + $0xb0] sm:$0xff] %v382
    %415 = vst [vmem:[#allocation2 + $0xb8] sm:$0xff] %v383
    %416 = vst [vmem:[#allocation2 + $0xc0] sm:$0xff] %v384
    %417 = vst [vmem:[#allocation2 + $0xc8] sm:$0xff] %v385
    %418 = vst [vmem:[#allocation2 + $0xd0] sm:$0xff] %v386
    %419 = vst [vmem:[#allocation2 + $0xd8] sm:$0xff] %v387
    %420 = vst [vmem:[#allocation2 + $0xe0] sm:$0xff] %v388
    %421 = vst [vmem:[#allocation2 + $0xe8] sm:$0xff] %v389
    %422 = vst [vmem:[#allocation2 + $0xf0] sm:$0xff] %v390
    %423 = vst [vmem:[#allocation2 + $0xf8] sm:$0xff] %v391
    // Predicated region
    $region14: #{forward_ffn.5} parent=1 // pred_check
      _
    $region15: #{forward_ffn.5} parent=1 // pred_check_branch
      %425 = sbr.rel (0) target = $region17
    $region16: #{forward_ffn.5} parent=1 // pred_region
      %s427 = ssub.s32 4096, 4096
      %428 = vsyncadd [#allocation3], %s427
      %s429 = sshll.u32 [#allocation2], 4
      %s430 = int_to_ptr.vmem [resolvable:$true] %s429
      %435 = dma.vmem_to_hbm [thread:$0]  %s430, 4096, %s3, [#allocation3], 256, 256, 16
    $region17: #{forward_ffn.5} parent=1 // pred_fallthru
      _
    // Predicated region
    $region18: #{forward_ffn.5} parent=1 // pred_check
      _
    $region19: #{forward_ffn.5} parent=1 // pred_check_branch
      %437 = sbr.rel (0) target = $region21
    $region20: #{forward_ffn.5} parent=1 // pred_region
      %438 = dma.done [#allocation3], 4096
    $region21: #{forward_ffn.5} parent=1 // pred_fallthru
      _
    %439 = vsyncpa [#allocation3], 1

// kernel: forward_ffn.4
$region0: #{forward_ffn.4}
  #allocation0 [shape = 'u32[]', space=smem, size = 0x4, offset = 0x4, fixed_abs, tag = 'smem constant byte address 0x4 - core index']
  #allocation1 [shape = 'u32[144,128]{1,0:T(1,128)}', space=vmem, size = 0x12000, scoped, tag = 'internal scratch']
  #allocation2 [shape = 'f32[128,256]{1,0:T(8,128)}', space=vmem, size = 0x20000, scoped, tag = 'scratch operand']
  %s0 = inlined_call_operand.vmem [shape: f32[128,512], index: 0, kind: input, shape index: {}]
  %s1 = inlined_call_operand.vmem [shape: f32[512,256], index: 1, kind: input, shape index: {}]
  %s2 = inlined_call_operand.vmem [shape: f32[1,256], index: 2, kind: input, shape index: {}]
  %s3 = inlined_call_operand.vmem [shape: f32[128,256], index: 3, kind: input, shape index: {}]
  %s4 = inlined_call_operand.vmem [shape: f32[128,256], index: 4, kind: output, shape index: {}]
  %s5 = sld [smem:[#allocation0]]
  $region34: #{forward_ffn.4} parent=0
    _
  %s7 = ssub.s32 1, %s5
  %s8 = scalar_select 0, %s7, %s5
  // Predicated region
  $region2: #{forward_ffn.4} parent=0 // pred_check
    _
  $region3: #{forward_ffn.4} parent=0 // pred_check_branch
    %10 = sbr.rel (0) target = $region5
  $region4: #{forward_ffn.4} parent=0 // pred_region
    _
  $region5: #{forward_ffn.4} parent=0 // pred_fallthru
    _
  // Predicated region
  $region6: #{forward_ffn.4} parent=0 // pred_check
    _
  $region7: #{forward_ffn.4} parent=0 // pred_check_branch
    %12 = sbr.rel (0) target = $region9
  $region8: #{forward_ffn.4} parent=0 // pred_region
    _
  $region9: #{forward_ffn.4} parent=0 // pred_fallthru
    _
  // Predicated region
  $region10: #{forward_ffn.4} parent=0 // pred_check
    _
  $region11: #{forward_ffn.4} parent=0 // pred_check_branch
    %14 = sbr.rel (0) target = $region13
  $region12: #{forward_ffn.4} parent=0 // pred_region
    _
  $region13: #{forward_ffn.4} parent=0 // pred_fallthru
    _
  // Predicated region
  $region14: #{forward_ffn.4} parent=0 // pred_check
    _
  $region15: #{forward_ffn.4} parent=0 // pred_check_branch
    %16 = sbr.rel (0) target = $region17
  $region16: #{forward_ffn.4} parent=0 // pred_region
    _
  $region17: #{forward_ffn.4} parent=0 // pred_fallthru
    _
  %p17 = scmp.eq.s32.totalorder 0, 0
  // Predicated region
  $region18: #{forward_ffn.4} parent=0 // pred_check
    %p18 = pneg %p17
  $region19: #{forward_ffn.4} parent=0 // pred_check_branch
    %20 = sbr.rel (%p18) target = $region21
  $region20: #{forward_ffn.4} parent=0 // pred_region
    %21 = vst [vmem:[#allocation2] sm:$0xff] 0.0
    %22 = vst [vmem:[#allocation2 + $0x8] sm:$0xff] 0.0
    %23 = vst [vmem:[#allocation2 + $0x10] sm:$0xff] 0.0
    %24 = vst [vmem:[#allocation2 + $0x18] sm:$0xff] 0.0
    %25 = vst [vmem:[#allocation2 + $0x20] sm:$0xff] 0.0
    %26 = vst [vmem:[#allocation2 + $0x28] sm:$0xff] 0.0
    %27 = vst [vmem:[#allocation2 + $0x30] sm:$0xff] 0.0
    %28 = vst [vmem:[#allocation2 + $0x38] sm:$0xff] 0.0
    %29 = vst [vmem:[#allocation2 + $0x40] sm:$0xff] 0.0
    %30 = vst [vmem:[#allocation2 + $0x48] sm:$0xff] 0.0
    %31 = vst [vmem:[#allocation2 + $0x50] sm:$0xff] 0.0
    %32 = vst [vmem:[#allocation2 + $0x58] sm:$0xff] 0.0
    %33 = vst [vmem:[#allocation2 + $0x60] sm:$0xff] 0.0
    %34 = vst [vmem:[#allocation2 + $0x68] sm:$0xff] 0.0
    %35 = vst [vmem:[#allocation2 + $0x70] sm:$0xff] 0.0
    %36 = vst [vmem:[#allocation2 + $0x78] sm:$0xff] 0.0
    %37 = vst [vmem:[#allocation2 + $0x80] sm:$0xff] 0.0
    %38 = vst [vmem:[#allocation2 + $0x88] sm:$0xff] 0.0
    %39 = vst [vmem:[#allocation2 + $0x90] sm:$0xff] 0.0
    %40 = vst [vmem:[#allocation2 + $0x98] sm:$0xff] 0.0
    %41 = vst [vmem:[#allocation2 + $0xa0] sm:$0xff] 0.0
    %42 = vst [vmem:[#allocation2 + $0xa8] sm:$0xff] 0.0
    %43 = vst [vmem:[#allocation2 + $0xb0] sm:$0xff] 0.0
    %44 = vst [vmem:[#allocation2 + $0xb8] sm:$0xff] 0.0
    %45 = vst [vmem:[#allocation2 + $0xc0] sm:$0xff] 0.0
    %46 = vst [vmem:[#allocation2 + $0xc8] sm:$0xff] 0.0
    %47 = vst [vmem:[#allocation2 + $0xd0] sm:$0xff] 0.0
    %48 = vst [vmem:[#allocation2 + $0xd8] sm:$0xff] 0.0
    %49 = vst [vmem:[#allocation2 + $0xe0] sm:$0xff] 0.0
    %50 = vst [vmem:[#allocation2 + $0xe8] sm:$0xff] 0.0
    %51 = vst [vmem:[#allocation2 + $0xf0] sm:$0xff] 0.0
    %52 = vst [vmem:[#allocation2 + $0xf8] sm:$0xff] 0.0
  $region21: #{forward_ffn.4} parent=0 // pred_fallthru
    _
  %v53 = vld [vmem:[#allocation2] sm:$0xff]
  %v54 = vld [vmem:[#allocation2 + $0x8] sm:$0xff]
  %v55 = vld [vmem:[#allocation2 + $0x10] sm:$0xff]
  %v56 = vld [vmem:[#allocation2 + $0x18] sm:$0xff]
  %v57 = vld [vmem:[#allocation2 + $0x20] sm:$0xff]
  %v58 = vld [vmem:[#allocation2 + $0x28] sm:$0xff]
  %v59 = vld [vmem:[#allocation2 + $0x30] sm:$0xff]
  %v60 = vld [vmem:[#allocation2 + $0x38] sm:$0xff]
  %v61 = vld [vmem:[#allocation2 + $0x40] sm:$0xff]
  %v62 = vld [vmem:[#allocation2 + $0x48] sm:$0xff]
  %v63 = vld [vmem:[#allocation2 + $0x50] sm:$0xff]
  %v64 = vld [vmem:[#allocation2 + $0x58] sm:$0xff]
  %v65 = vld [vmem:[#allocation2 + $0x60] sm:$0xff]
  %v66 = vld [vmem:[#allocation2 + $0x68] sm:$0xff]
  %v67 = vld [vmem:[#allocation2 + $0x70] sm:$0xff]
  %v68 = vld [vmem:[#allocation2 + $0x78] sm:$0xff]
  %v69 = vld [vmem:[#allocation2 + $0x80] sm:$0xff]
  %v70 = vld [vmem:[#allocation2 + $0x88] sm:$0xff]
  %v71 = vld [vmem:[#allocation2 + $0x90] sm:$0xff]
  %v72 = vld [vmem:[#allocation2 + $0x98] sm:$0xff]
  %v73 = vld [vmem:[#allocation2 + $0xa0] sm:$0xff]
  %v74 = vld [vmem:[#allocation2 + $0xa8] sm:$0xff]
  %v75 = vld [vmem:[#allocation2 + $0xb0] sm:$0xff]
  %v76 = vld [vmem:[#allocation2 + $0xb8] sm:$0xff]
  %v77 = vld [vmem:[#allocation2 + $0xc0] sm:$0xff]
  %v78 = vld [vmem:[#allocation2 + $0xc8] sm:$0xff]
  %v79 = vld [vmem:[#allocation2 + $0xd0] sm:$0xff]
  %v80 = vld [vmem:[#allocation2 + $0xd8] sm:$0xff]
  %v81 = vld [vmem:[#allocation2 + $0xe0] sm:$0xff]
  %v82 = vld [vmem:[#allocation2 + $0xe8] sm:$0xff]
  %v83 = vld [vmem:[#allocation2 + $0xf0] sm:$0xff]
  %v84 = vld [vmem:[#allocation2 + $0xf8] sm:$0xff]
  %v85 = vld [vmem:[%s0] sm:$0xff]
  %v86 = vld [vmem:[%s0 + $0x8] sm:$0xff]
  %v87 = vld [vmem:[%s0 + $0x10] sm:$0xff]
  %v88 = vld [vmem:[%s0 + $0x18] sm:$0xff]
  %v89 = vld [vmem:[%s0 + $0x20] sm:$0xff]
  %v90 = vld [vmem:[%s0 + $0x28] sm:$0xff]
  %v91 = vld [vmem:[%s0 + $0x30] sm:$0xff]
  %v92 = vld [vmem:[%s0 + $0x38] sm:$0xff]
  %v93 = vld [vmem:[%s0 + $0x40] sm:$0xff]
  %v94 = vld [vmem:[%s0 + $0x48] sm:$0xff]
  %v95 = vld [vmem:[%s0 + $0x50] sm:$0xff]
  %v96 = vld [vmem:[%s0 + $0x58] sm:$0xff]
  %v97 = vld [vmem:[%s0 + $0x60] sm:$0xff]
  %v98 = vld [vmem:[%s0 + $0x68] sm:$0xff]
  %v99 = vld [vmem:[%s0 + $0x70] sm:$0xff]
  %v100 = vld [vmem:[%s0 + $0x78] sm:$0xff]
  %v101 = vld [vmem:[%s0 + $0x80] sm:$0xff]
  %v102 = vld [vmem:[%s0 + $0x88] sm:$0xff]
  %v103 = vld [vmem:[%s0 + $0x90] sm:$0xff]
  %v104 = vld [vmem:[%s0 + $0x98] sm:$0xff]
  %v105 = vld [vmem:[%s0 + $0xa0] sm:$0xff]
  %v106 = vld [vmem:[%s0 + $0xa8] sm:$0xff]
  %v107 = vld [vmem:[%s0 + $0xb0] sm:$0xff]
  %v108 = vld [vmem:[%s0 + $0xb8] sm:$0xff]
  %v109 = vld [vmem:[%s0 + $0xc0] sm:$0xff]
  %v110 = vld [vmem:[%s0 + $0xc8] sm:$0xff]
  %v111 = vld [vmem:[%s0 + $0xd0] sm:$0xff]
  %v112 = vld [vmem:[%s0 + $0xd8] sm:$0xff]
  %v113 = vld [vmem:[%s0 + $0xe0] sm:$0xff]
  %v114 = vld [vmem:[%s0 + $0xe8] sm:$0xff]
  %v115 = vld [vmem:[%s0 + $0xf0] sm:$0xff]
  %v116 = vld [vmem:[%s0 + $0xf8] sm:$0xff]
  %v117 = vld [vmem:[%s0 + $0x100] sm:$0xff]
  %v118 = vld [vmem:[%s0 + $0x108] sm:$0xff]
  %v119 = vld [vmem:[%s0 + $0x110] sm:$0xff]
  %v120 = vld [vmem:[%s0 + $0x118] sm:$0xff]
  %v121 = vld [vmem:[%s0 + $0x120] sm:$0xff]
  %v122 = vld [vmem:[%s0 + $0x128] sm:$0xff]
  %v123 = vld [vmem:[%s0 + $0x130] sm:$0xff]
  %v124 = vld [vmem:[%s0 + $0x138] sm:$0xff]
  %v125 = vld [vmem:[%s0 + $0x140] sm:$0xff]
  %v126 = vld [vmem:[%s0 + $0x148] sm:$0xff]
  %v127 = vld [vmem:[%s0 + $0x150] sm:$0xff]
  %v128 = vld [vmem:[%s0 + $0x158] sm:$0xff]
  %v129 = vld [vmem:[%s0 + $0x160] sm:$0xff]
  %v130 = vld [vmem:[%s0 + $0x168] sm:$0xff]
  %v131 = vld [vmem:[%s0 + $0x170] sm:$0xff]
  %v132 = vld [vmem:[%s0 + $0x178] sm:$0xff]
  %v133 = vld [vmem:[%s0 + $0x180] sm:$0xff]
  %v134 = vld [vmem:[%s0 + $0x188] sm:$0xff]
  %v135 = vld [vmem:[%s0 + $0x190] sm:$0xff]
  %v136 = vld [vmem:[%s0 + $0x198] sm:$0xff]
  %v137 = vld [vmem:[%s0 + $0x1a0] sm:$0xff]
  %v138 = vld [vmem:[%s0 + $0x1a8] sm:$0xff]
  %v139 = vld [vmem:[%s0 + $0x1b0] sm:$0xff]
  %v140 = vld [vmem:[%s0 + $0x1b8] sm:$0xff]
  %v141 = vld [vmem:[%s0 + $0x1c0] sm:$0xff]
  %v142 = vld [vmem:[%s0 + $0x1c8] sm:$0xff]
  %v143 = vld [vmem:[%s0 + $0x1d0] sm:$0xff]
  %v144 = vld [vmem:[%s0 + $0x1d8] sm:$0xff]
  %v145 = vld [vmem:[%s0 + $0x1e0] sm:$0xff]
  %v146 = vld [vmem:[%s0 + $0x1e8] sm:$0xff]
  %v147 = vld [vmem:[%s0 + $0x1f0] sm:$0xff]
  %v148 = vld [vmem:[%s0 + $0x1f8] sm:$0xff]
  %v149 = vld [vmem:[%s1] sm:$0xff]
  %v150 = vld [vmem:[%s1 + $0x8] sm:$0xff]
  %v151 = vld [vmem:[%s1 + $0x10] sm:$0xff]
  %v152 = vld [vmem:[%s1 + $0x18] sm:$0xff]
  %v153 = vld [vmem:[%s1 + $0x20] sm:$0xff]
  %v154 = vld [vmem:[%s1 + $0x28] sm:$0xff]
  %v155 = vld [vmem:[%s1 + $0x30] sm:$0xff]
  %v156 = vld [vmem:[%s1 + $0x38] sm:$0xff]
  %v157 = vld [vmem:[%s1 + $0x40] sm:$0xff]
  %v158 = vld [vmem:[%s1 + $0x48] sm:$0xff]
  %v159 = vld [vmem:[%s1 + $0x50] sm:$0xff]
  %v160 = vld [vmem:[%s1 + $0x58] sm:$0xff]
  %v161 = vld [vmem:[%s1 + $0x60] sm:$0xff]
  %v162 = vld [vmem:[%s1 + $0x68] sm:$0xff]
  %v163 = vld [vmem:[%s1 + $0x70] sm:$0xff]
  %v164 = vld [vmem:[%s1 + $0x78] sm:$0xff]
  %v165 = vld [vmem:[%s1 + $0x80] sm:$0xff]
  %v166 = vld [vmem:[%s1 + $0x88] sm:$0xff]
  %v167 = vld [vmem:[%s1 + $0x90] sm:$0xff]
  %v168 = vld [vmem:[%s1 + $0x98] sm:$0xff]
  %v169 = vld [vmem:[%s1 + $0xa0] sm:$0xff]
  %v170 = vld [vmem:[%s1 + $0xa8] sm:$0xff]
  %v171 = vld [vmem:[%s1 + $0xb0] sm:$0xff]
  %v172 = vld [vmem:[%s1 + $0xb8] sm:$0xff]
  %v173 = vld [vmem:[%s1 + $0xc0] sm:$0xff]
  %v174 = vld [vmem:[%s1 + $0xc8] sm:$0xff]
  %v175 = vld [vmem:[%s1 + $0xd0] sm:$0xff]
  %v176 = vld [vmem:[%s1 + $0xd8] sm:$0xff]
  %v177 = vld [vmem:[%s1 + $0xe0] sm:$0xff]
  %v178 = vld [vmem:[%s1 + $0xe8] sm:$0xff]
  %v179 = vld [vmem:[%s1 + $0xf0] sm:$0xff]
  %v180 = vld [vmem:[%s1 + $0xf8] sm:$0xff]
  %v181 = vld [vmem:[%s1 + $0x100] sm:$0xff]
  %v182 = vld [vmem:[%s1 + $0x108] sm:$0xff]
  %v183 = vld [vmem:[%s1 + $0x110] sm:$0xff]
  %v184 = vld [vmem:[%s1 + $0x118] sm:$0xff]
  %v185 = vld [vmem:[%s1 + $0x120] sm:$0xff]
  %v186 = vld [vmem:[%s1 + $0x128] sm:$0xff]
  %v187 = vld [vmem:[%s1 + $0x130] sm:$0xff]
  %v188 = vld [vmem:[%s1 + $0x138] sm:$0xff]
  %v189 = vld [vmem:[%s1 + $0x140] sm:$0xff]
  %v190 = vld [vmem:[%s1 + $0x148] sm:$0xff]
  %v191 = vld [vmem:[%s1 + $0x150] sm:$0xff]
  %v192 = vld [vmem:[%s1 + $0x158] sm:$0xff]
  %v193 = vld [vmem:[%s1 + $0x160] sm:$0xff]
  %v194 = vld [vmem:[%s1 + $0x168] sm:$0xff]
  %v195 = vld [vmem:[%s1 + $0x170] sm:$0xff]
  %v196 = vld [vmem:[%s1 + $0x178] sm:$0xff]
  %v197 = vld [vmem:[%s1 + $0x180] sm:$0xff]
  %v198 = vld [vmem:[%s1 + $0x188] sm:$0xff]
  %v199 = vld [vmem:[%s1 + $0x190] sm:$0xff]
  %v200 = vld [vmem:[%s1 + $0x198] sm:$0xff]
  %v201 = vld [vmem:[%s1 + $0x1a0] sm:$0xff]
  %v202 = vld [vmem:[%s1 + $0x1a8] sm:$0xff]
  %v203 = vld [vmem:[%s1 + $0x1b0] sm:$0xff]
  %v204 = vld [vmem:[%s1 + $0x1b8] sm:$0xff]
  %v205 = vld [vmem:[%s1 + $0x1c0] sm:$0xff]
  %v206 = vld [vmem:[%s1 + $0x1c8] sm:$0xff]
  %v207 = vld [vmem:[%s1 + $0x1d0] sm:$0xff]
  %v208 = vld [vmem:[%s1 + $0x1d8] sm:$0xff]
  %v209 = vld [vmem:[%s1 + $0x1e0] sm:$0xff]
  %v210 = vld [vmem:[%s1 + $0x1e8] sm:$0xff]
  %v211 = vld [vmem:[%s1 + $0x1f0] sm:$0xff]
  %v212 = vld [vmem:[%s1 + $0x1f8] sm:$0xff]
  %v213 = vld [vmem:[%s1 + $0x200] sm:$0xff]
  %v214 = vld [vmem:[%s1 + $0x208] sm:$0xff]
  %v215 = vld [vmem:[%s1 + $0x210] sm:$0xff]
  %v216 = vld [vmem:[%s1 + $0x218] sm:$0xff]
  %v217 = vld [vmem:[%s1 + $0x220] sm:$0xff]
  %v218 = vld [vmem:[%s1 + $0x228] sm:$0xff]
  %v219 = vld [vmem:[%s1 + $0x230] sm:$0xff]
  %v220 = vld [vmem:[%s1 + $0x238] sm:$0xff]
  %v221 = vld [vmem:[%s1 + $0x240] sm:$0xff]
  %v222 = vld [vmem:[%s1 + $0x248] sm:$0xff]
  %v223 = vld [vmem:[%s1 + $0x250] sm:$0xff]
  %v224 = vld [vmem:[%s1 + $0x258] sm:$0xff]
  %v225 = vld [vmem:[%s1 + $0x260] sm:$0xff]
  %v226 = vld [vmem:[%s1 + $0x268] sm:$0xff]
  %v227 = vld [vmem:[%s1 + $0x270] sm:$0xff]
  %v228 = vld [vmem:[%s1 + $0x278] sm:$0xff]
  %v229 = vld [vmem:[%s1 + $0x280] sm:$0xff]
  %v230 = vld [vmem:[%s1 + $0x288] sm:$0xff]
  %v231 = vld [vmem:[%s1 + $0x290] sm:$0xff]
  %v232 = vld [vmem:[%s1 + $0x298] sm:$0xff]
  %v233 = vld [vmem:[%s1 + $0x2a0] sm:$0xff]
  %v234 = vld [vmem:[%s1 + $0x2a8] sm:$0xff]
  %v235 = vld [vmem:[%s1 + $0x2b0] sm:$0xff]
  %v236 = vld [vmem:[%s1 + $0x2b8] sm:$0xff]
  %v237 = vld [vmem:[%s1 + $0x2c0] sm:$0xff]
  %v238 = vld [vmem:[%s1 + $0x2c8] sm:$0xff]
  %v239 = vld [vmem:[%s1 + $0x2d0] sm:$0xff]
  %v240 = vld [vmem:[%s1 + $0x2d8] sm:$0xff]
  %v241 = vld [vmem:[%s1 + $0x2e0] sm:$0xff]
  %v242 = vld [vmem:[%s1 + $0x2e8] sm:$0xff]
  %v243 = vld [vmem:[%s1 + $0x2f0] sm:$0xff]
  %v244 = vld [vmem:[%s1 + $0x2f8] sm:$0xff]
  %v245 = vld [vmem:[%s1 + $0x300] sm:$0xff]
  %v246 = vld [vmem:[%s1 + $0x308] sm:$0xff]
  %v247 = vld [vmem:[%s1 + $0x310] sm:$0xff]
  %v248 = vld [vmem:[%s1 + $0x318] sm:$0xff]
  %v249 = vld [vmem:[%s1 + $0x320] sm:$0xff]
  %v250 = vld [vmem:[%s1 + $0x328] sm:$0xff]
  %v251 = vld [vmem:[%s1 + $0x330] sm:$0xff]
  %v252 = vld [vmem:[%s1 + $0x338] sm:$0xff]
  %v253 = vld [vmem:[%s1 + $0x340] sm:$0xff]
  %v254 = vld [vmem:[%s1 + $0x348] sm:$0xff]
  %v255 = vld [vmem:[%s1 + $0x350] sm:$0xff]
  %v256 = vld [vmem:[%s1 + $0x358] sm:$0xff]
  %v257 = vld [vmem:[%s1 + $0x360] sm:$0xff]
  %v258 = vld [vmem:[%s1 + $0x368] sm:$0xff]
  %v259 = vld [vmem:[%s1 + $0x370] sm:$0xff]
  %v260 = vld [vmem:[%s1 + $0x378] sm:$0xff]
  %v261 = vld [vmem:[%s1 + $0x380] sm:$0xff]
  %v262 = vld [vmem:[%s1 + $0x388] sm:$0xff]
  %v263 = vld [vmem:[%s1 + $0x390] sm:$0xff]
  %v264 = vld [vmem:[%s1 + $0x398] sm:$0xff]
  %v265 = vld [vmem:[%s1 + $0x3a0] sm:$0xff]
  %v266 = vld [vmem:[%s1 + $0x3a8] sm:$0xff]
  %v267 = vld [vmem:[%s1 + $0x3b0] sm:$0xff]
  %v268 = vld [vmem:[%s1 + $0x3b8] sm:$0xff]
  %v269 = vld [vmem:[%s1 + $0x3c0] sm:$0xff]
  %v270 = vld [vmem:[%s1 + $0x3c8] sm:$0xff]
  %v271 = vld [vmem:[%s1 + $0x3d0] sm:$0xff]
  %v272 = vld [vmem:[%s1 + $0x3d8] sm:$0xff]
  %v273 = vld [vmem:[%s1 + $0x3e0] sm:$0xff]
  %v274 = vld [vmem:[%s1 + $0x3e8] sm:$0xff]
  %v275 = vld [vmem:[%s1 + $0x3f0] sm:$0xff]
  %v276 = vld [vmem:[%s1 + $0x3f8] sm:$0xff]
  %277 = vmatprep.subr.mxu0 %v180
  %278 = vmatpush1.msra.mxu0 %v179
  %279 = vmatprep.subr.mxu0 %v178
  %280 = vmatpush1.msra.mxu0 %v177
  %281 = vmatprep.subr.mxu0 %v176
  %282 = vmatpush1.msra.mxu0 %v175
  %283 = vmatprep.subr.mxu0 %v174
  %284 = vmatpush1.msra.mxu0 %v173
  %285 = vmatprep.subr.mxu0 %v172
  %286 = vmatpush1.msra.mxu0 %v171
  %287 = vmatprep.subr.mxu0 %v170
  %288 = vmatpush1.msra.mxu0 %v169
  %289 = vmatprep.subr.mxu0 %v168
  %290 = vmatpush1.msra.mxu0 %v167
  %291 = vmatprep.subr.mxu0 %v166
  %292 = vmatpush1.msra.mxu0 %v165
  %293 = vmatprep.subr.mxu0 %v164
  %294 = vmatpush1.msra.mxu0 %v163
  %295 = vmatprep.subr.mxu0 %v162
  %296 = vmatpush1.msra.mxu0 %v161
  %297 = vmatprep.subr.mxu0 %v160
  %298 = vmatpush1.msra.mxu0 %v159
  %299 = vmatprep.subr.mxu0 %v158
  %300 = vmatpush1.msra.mxu0 %v157
  %301 = vmatprep.subr.mxu0 %v156
  %302 = vmatpush1.msra.mxu0 %v155
  %303 = vmatprep.subr.mxu0 %v154
  %304 = vmatpush1.msra.mxu0 %v153
  %305 = vmatprep.subr.mxu0 %v152
  %306 = vmatpush1.msra.mxu0 %v151
  %307 = vmatprep.subr.mxu0 %v150
  %308 = vmatpush1.msra.mxu0 %v149
  %309 = vmatprep.subr.mxu0 %v212
  %310 = vmatpush2.msra.mxu0 %v211
  %311 = vmatprep.subr.mxu0 %v210
  %312 = vmatpush2.msra.mxu0 %v209
  %313 = vmatprep.subr.mxu0 %v208
  %314 = vmatpush2.msra.mxu0 %v207
  %315 = vmatprep.subr.mxu0 %v206
  %316 = vmatpush2.msra.mxu0 %v205
  %317 = vmatprep.subr.mxu0 %v204
  %318 = vmatpush2.msra.mxu0 %v203
  %319 = vmatprep.subr.mxu0 %v202
  %320 = vmatpush2.msra.mxu0 %v201
  %321 = vmatprep.subr.mxu0 %v200
  %322 = vmatpush2.msra.mxu0 %v199
  %323 = vmatprep.subr.mxu0 %v198
  %324 = vmatpush2.msra.mxu0 %v197
  %325 = vmatprep.subr.mxu0 %v196
  %326 = vmatpush2.msra.mxu0 %v195
  %327 = vmatprep.subr.mxu0 %v194
  %328 = vmatpush2.msra.mxu0 %v193
  %329 = vmatprep.subr.mxu0 %v192
  %330 = vmatpush2.msra.mxu0 %v191
  %331 = vmatprep.subr.mxu0 %v190
  %332 = vmatpush2.msra.mxu0 %v189
  %333 = vmatprep.subr.mxu0 %v188
  %334 = vmatpush2.msra.mxu0 %v187
  %335 = vmatprep.subr.mxu0 %v186
  %336 = vmatpush2.msra.mxu0 %v185
  %337 = vmatprep.subr.mxu0 %v184
  %338 = vmatpush2.msra.mxu0 %v183
  %339 = vmatprep.subr.mxu0 %v182
  %340 = vmatpush2.msra.mxu0 %v181
  %341 = vmatprep.mubr.f32.mxu0 %v86
  %342 = vmatmul.mubr.f32.gmra.mxu0 %v85
  %v343 = vpop.f32.mrf.mxu0
  %v344 = vadd.f32 0.0, %v343
  %v345 = vpop.f32.mrf.mxu0
  %v346 = vadd.f32 0.0, %v345
  %347 = vmatprep.mubr.f32.mxu0 %v90
  %348 = vmatmul.mubr.f32.gmra.mxu0 %v89
  %v349 = vpop.f32.mrf.mxu0
  %v350 = vadd.f32 0.0, %v349
  %v351 = vpop.f32.mrf.mxu0
  %v352 = vadd.f32 0.0, %v351
  %353 = vmatprep.mubr.f32.mxu0 %v94
  %354 = vmatmul.mubr.f32.gmra.mxu0 %v93
  %v355 = vpop.f32.mrf.mxu0
  %v356 = vadd.f32 0.0, %v355
  %v357 = vpop.f32.mrf.mxu0
  %v358 = vadd.f32 0.0, %v357
  %359 = vmatprep.mubr.f32.mxu0 %v98
  %360 = vmatmul.mubr.f32.gmra.mxu0 %v97
  %v361 = vpop.f32.mrf.mxu0
  %v362 = vadd.f32 0.0, %v361
  %v363 = vpop.f32.mrf.mxu0
  %v364 = vadd.f32 0.0, %v363
  %365 = vmatprep.mubr.f32.mxu0 %v102
  %366 = vmatmul.mubr.f32.gmra.mxu0 %v101
  %v367 = vpop.f32.mrf.mxu0
  %v368 = vadd.f32 0.0, %v367
  %v369 = vpop.f32.mrf.mxu0
  %v370 = vadd.f32 0.0, %v369
  %371 = vmatprep.mubr.f32.mxu0 %v106
  %372 = vmatmul.mubr.f32.gmra.mxu0 %v105
  %v373 = vpop.f32.mrf.mxu0
  %v374 = vadd.f32 0.0, %v373
  %v375 = vpop.f32.mrf.mxu0
  %v376 = vadd.f32 0.0, %v375
  %377 = vmatprep.mubr.f32.mxu0 %v110
  %378 = vmatmul.mubr.f32.gmra.mxu0 %v109
  %v379 = vpop.f32.mrf.mxu0
  %v380 = vadd.f32 0.0, %v379
  %v381 = vpop.f32.mrf.mxu0
  %v382 = vadd.f32 0.0, %v381
  %383 = vmatprep.mubr.f32.mxu0 %v114
  %384 = vmatmul.mubr.f32.gmra.mxu0 %v113
  %v385 = vpop.f32.mrf.mxu0
  %v386 = vadd.f32 0.0, %v385
  %v387 = vpop.f32.mrf.mxu0
  %v388 = vadd.f32 0.0, %v387
  %389 = vmatprep.mubr.f32.mxu0 %v118
  %390 = vmatmul.mubr.f32.gmra.mxu0 %v117
  %v391 = vpop.f32.mrf.mxu0
  %v392 = vadd.f32 0.0, %v391
  %v393 = vpop.f32.mrf.mxu0
  %v394 = vadd.f32 0.0, %v393
  %395 = vmatprep.mubr.f32.mxu0 %v122
  %396 = vmatmul.mubr.f32.gmra.mxu0 %v121
  %v397 = vpop.f32.mrf.mxu0
  %v398 = vadd.f32 0.0, %v397
  %v399 = vpop.f32.mrf.mxu0
  %v400 = vadd.f32 0.0, %v399
  %401 = vmatprep.mubr.f32.mxu0 %v126
  %402 = vmatmul.mubr.f32.gmra.mxu0 %v125
  %v403 = vpop.f32.mrf.mxu0
  %v404 = vadd.f32 0.0, %v403
  %v405 = vpop.f32.mrf.mxu0
  %v406 = vadd.f32 0.0, %v405
  %407 = vmatprep.mubr.f32.mxu0 %v130
  %408 = vmatmul.mubr.f32.gmra.mxu0 %v129
  %v409 = vpop.f32.mrf.mxu0
  %v410 = vadd.f32 0.0, %v409
  %v411 = vpop.f32.mrf.mxu0
  %v412 = vadd.f32 0.0, %v411
  %413 = vmatprep.mubr.f32.mxu0 %v134
  %414 = vmatmul.mubr.f32.gmra.mxu0 %v133
  %v415 = vpop.f32.mrf.mxu0
  %v416 = vadd.f32 0.0, %v415
  %v417 = vpop.f32.mrf.mxu0
  %v418 = vadd.f32 0.0, %v417
  %419 = vmatprep.mubr.f32.mxu0 %v138
  %420 = vmatmul.mubr.f32.gmra.mxu0 %v137
  %v421 = vpop.f32.mrf.mxu0
  %v422 = vadd.f32 0.0, %v421
  %v423 = vpop.f32.mrf.mxu0
  %v424 = vadd.f32 0.0, %v423
  %425 = vmatprep.mubr.f32.mxu0 %v142
  %426 = vmatmul.mubr.f32.gmra.mxu0 %v141
  %v427 = vpop.f32.mrf.mxu0
  %v428 = vadd.f32 0.0, %v427
  %v429 = vpop.f32.mrf.mxu0
  %v430 = vadd.f32 0.0, %v429
  %431 = vmatprep.mubr.f32.mxu0 %v146
  %432 = vmatmul.mubr.f32.gmra.mxu0 %v145
  %v433 = vpop.f32.mrf.mxu0
  %v434 = vadd.f32 0.0, %v433
  %v435 = vpop.f32.mrf.mxu0
  %v436 = vadd.f32 0.0, %v435
  %437 = vdwg.mxu0
  %438 = vmatprep.subr.mxu0 %v244
  %439 = vmatpush1.msra.mxu0 %v243
  %440 = vmatprep.subr.mxu0 %v242
  %441 = vmatpush1.msra.mxu0 %v241
  %442 = vmatprep.subr.mxu0 %v240
  %443 = vmatpush1.msra.mxu0 %v239
  %444 = vmatprep.subr.mxu0 %v238
  %445 = vmatpush1.msra.mxu0 %v237
  %446 = vmatprep.subr.mxu0 %v236
  %447 = vmatpush1.msra.mxu0 %v235
  %448 = vmatprep.subr.mxu0 %v234
  %449 = vmatpush1.msra.mxu0 %v233
  %450 = vmatprep.subr.mxu0 %v232
  %451 = vmatpush1.msra.mxu0 %v231
  %452 = vmatprep.subr.mxu0 %v230
  %453 = vmatpush1.msra.mxu0 %v229
  %454 = vmatprep.subr.mxu0 %v228
  %455 = vmatpush1.msra.mxu0 %v227
  %456 = vmatprep.subr.mxu0 %v226
  %457 = vmatpush1.msra.mxu0 %v225
  %458 = vmatprep.subr.mxu0 %v224
  %459 = vmatpush1.msra.mxu0 %v223
  %460 = vmatprep.subr.mxu0 %v222
  %461 = vmatpush1.msra.mxu0 %v221
  %462 = vmatprep.subr.mxu0 %v220
  %463 = vmatpush1.msra.mxu0 %v219
  %464 = vmatprep.subr.mxu0 %v218
  %465 = vmatpush1.msra.mxu0 %v217
  %466 = vmatprep.subr.mxu0 %v216
  %467 = vmatpush1.msra.mxu0 %v215
  %468 = vmatprep.subr.mxu0 %v214
  %469 = vmatpush1.msra.mxu0 %v213
  %470 = vmatprep.subr.mxu0 %v276
  %471 = vmatpush2.msra.mxu0 %v275
  %472 = vmatprep.subr.mxu0 %v274
  %473 = vmatpush2.msra.mxu0 %v273
  %474 = vmatprep.subr.mxu0 %v272
  %475 = vmatpush2.msra.mxu0 %v271
  %476 = vmatprep.subr.mxu0 %v270
  %477 = vmatpush2.msra.mxu0 %v269
  %478 = vmatprep.subr.mxu0 %v268
  %479 = vmatpush2.msra.mxu0 %v267
  %480 = vmatprep.subr.mxu0 %v266
  %481 = vmatpush2.msra.mxu0 %v265
  %482 = vmatprep.subr.mxu0 %v264
  %483 = vmatpush2.msra.mxu0 %v263
  %484 = vmatprep.subr.mxu0 %v262
  %485 = vmatpush2.msra.mxu0 %v261
  %486 = vmatprep.subr.mxu0 %v260
  %487 = vmatpush2.msra.mxu0 %v259
  %488 = vmatprep.subr.mxu0 %v258
  %489 = vmatpush2.msra.mxu0 %v257
  %490 = vmatprep.subr.mxu0 %v256
  %491 = vmatpush2.msra.mxu0 %v255
  %492 = vmatprep.subr.mxu0 %v254
  %493 = vmatpush2.msra.mxu0 %v253
  %494 = vmatprep.subr.mxu0 %v252
  %495 = vmatpush2.msra.mxu0 %v251
  %496 = vmatprep.subr.mxu0 %v250
  %497 = vmatpush2.msra.mxu0 %v249
  %498 = vmatprep.subr.mxu0 %v248
  %499 = vmatpush2.msra.mxu0 %v247
  %500 = vmatprep.subr.mxu0 %v246
  %501 = vmatpush2.msra.mxu0 %v245
  %502 = vmatprep.mubr.f32.mxu0 %v88
  %503 = vmatmul.mubr.f32.gmra.mxu0 %v87
  %v504 = vpop.f32.mrf.mxu0
  %v505 = vadd.f32 %v344, %v504
  %v506 = vpop.f32.mrf.mxu0
  %v507 = vadd.f32 %v346, %v506
  %508 = vmatprep.mubr.f32.mxu0 %v92
  %509 = vmatmul.mubr.f32.gmra.mxu0 %v91
  %v510 = vpop.f32.mrf.mxu0
  %v511 = vadd.f32 %v350, %v510
  %v512 = vpop.f32.mrf.mxu0
  %v513 = vadd.f32 %v352, %v512
  %514 = vmatprep.mubr.f32.mxu0 %v96
  %515 = vmatmul.mubr.f32.gmra.mxu0 %v95
  %v516 = vpop.f32.mrf.mxu0
  %v517 = vadd.f32 %v356, %v516
  %v518 = vpop.f32.mrf.mxu0
  %v519 = vadd.f32 %v358, %v518
  %520 = vmatprep.mubr.f32.mxu0 %v100
  %521 = vmatmul.mubr.f32.gmra.mxu0 %v99
  %v522 = vpop.f32.mrf.mxu0
  %v523 = vadd.f32 %v362, %v522
  %v524 = vpop.f32.mrf.mxu0
  %v525 = vadd.f32 %v364, %v524
  %526 = vmatprep.mubr.f32.mxu0 %v104
  %527 = vmatmul.mubr.f32.gmra.mxu0 %v103
  %v528 = vpop.f32.mrf.mxu0
  %v529 = vadd.f32 %v368, %v528
  %v530 = vpop.f32.mrf.mxu0
  %v531 = vadd.f32 %v370, %v530
  %532 = vmatprep.mubr.f32.mxu0 %v108
  %533 = vmatmul.mubr.f32.gmra.mxu0 %v107
  %v534 = vpop.f32.mrf.mxu0
  %v535 = vadd.f32 %v374, %v534
  %v536 = vpop.f32.mrf.mxu0
  %v537 = vadd.f32 %v376, %v536
  %538 = vmatprep.mubr.f32.mxu0 %v112
  %539 = vmatmul.mubr.f32.gmra.mxu0 %v111
  %v540 = vpop.f32.mrf.mxu0
  %v541 = vadd.f32 %v380, %v540
  %v542 = vpop.f32.mrf.mxu0
  %v543 = vadd.f32 %v382, %v542
  %544 = vmatprep.mubr.f32.mxu0 %v116
  %545 = vmatmul.mubr.f32.gmra.mxu0 %v115
  %v546 = vpop.f32.mrf.mxu0
  %v547 = vadd.f32 %v386, %v546
  %v548 = vpop.f32.mrf.mxu0
  %v549 = vadd.f32 %v388, %v548
  %550 = vmatprep.mubr.f32.mxu0 %v120
  %551 = vmatmul.mubr.f32.gmra.mxu0 %v119
  %v552 = vpop.f32.mrf.mxu0
  %v553 = vadd.f32 %v392, %v552
  %v554 = vpop.f32.mrf.mxu0
  %v555 = vadd.f32 %v394, %v554
  %556 = vmatprep.mubr.f32.mxu0 %v124
  %557 = vmatmul.mubr.f32.gmra.mxu0 %v123
  %v558 = vpop.f32.mrf.mxu0
  %v559 = vadd.f32 %v398, %v558
  %v560 = vpop.f32.mrf.mxu0
  %v561 = vadd.f32 %v400, %v560
  %562 = vmatprep.mubr.f32.mxu0 %v128
  %563 = vmatmul.mubr.f32.gmra.mxu0 %v127
  %v564 = vpop.f32.mrf.mxu0
  %v565 = vadd.f32 %v404, %v564
  %v566 = vpop.f32.mrf.mxu0
  %v567 = vadd.f32 %v406, %v566
  %568 = vmatprep.mubr.f32.mxu0 %v132
  %569 = vmatmul.mubr.f32.gmra.mxu0 %v131
  %v570 = vpop.f32.mrf.mxu0
  %v571 = vadd.f32 %v410, %v570
  %v572 = vpop.f32.mrf.mxu0
  %v573 = vadd.f32 %v412, %v572
  %574 = vmatprep.mubr.f32.mxu0 %v136
  %575 = vmatmul.mubr.f32.gmra.mxu0 %v135
  %v576 = vpop.f32.mrf.mxu0
  %v577 = vadd.f32 %v416, %v576
  %v578 = vpop.f32.mrf.mxu0
  %v579 = vadd.f32 %v418, %v578
  %580 = vmatprep.mubr.f32.mxu0 %v140
  %581 = vmatmul.mubr.f32.gmra.mxu0 %v139
  %v582 = vpop.f32.mrf.mxu0
  %v583 = vadd.f32 %v422, %v582
  %v584 = vpop.f32.mrf.mxu0
  %v585 = vadd.f32 %v424, %v584
  %586 = vmatprep.mubr.f32.mxu0 %v144
  %587 = vmatmul.mubr.f32.gmra.mxu0 %v143
  %v588 = vpop.f32.mrf.mxu0
  %v589 = vadd.f32 %v428, %v588
  %v590 = vpop.f32.mrf.mxu0
  %v591 = vadd.f32 %v430, %v590
  %592 = vmatprep.mubr.f32.mxu0 %v148
  %593 = vmatmul.mubr.f32.gmra.mxu0 %v147
  %v594 = vpop.f32.mrf.mxu0
  %v595 = vadd.f32 %v434, %v594
  %v596 = vpop.f32.mrf.mxu0
  %v597 = vadd.f32 %v436, %v596
  %598 = vdwg.mxu0
  %v599 = vadd.f32 %v53, %v505
  %v600 = vadd.f32 %v54, %v507
  %v601 = vadd.f32 %v55, %v511
  %v602 = vadd.f32 %v56, %v513
  %v603 = vadd.f32 %v57, %v517
  %v604 = vadd.f32 %v58, %v519
  %v605 = vadd.f32 %v59, %v523
  %v606 = vadd.f32 %v60, %v525
  %v607 = vadd.f32 %v61, %v529
  %v608 = vadd.f32 %v62, %v531
  %v609 = vadd.f32 %v63, %v535
  %v610 = vadd.f32 %v64, %v537
  %v611 = vadd.f32 %v65, %v541
  %v612 = vadd.f32 %v66, %v543
  %v613 = vadd.f32 %v67, %v547
  %v614 = vadd.f32 %v68, %v549
  %v615 = vadd.f32 %v69, %v553
  %v616 = vadd.f32 %v70, %v555
  %v617 = vadd.f32 %v71, %v559
  %v618 = vadd.f32 %v72, %v561
  %v619 = vadd.f32 %v73, %v565
  %v620 = vadd.f32 %v74, %v567
  %v621 = vadd.f32 %v75, %v571
  %v622 = vadd.f32 %v76, %v573
  %v623 = vadd.f32 %v77, %v577
  %v624 = vadd.f32 %v78, %v579
  %v625 = vadd.f32 %v79, %v583
  %v626 = vadd.f32 %v80, %v585
  %v627 = vadd.f32 %v81, %v589
  %v628 = vadd.f32 %v82, %v591
  %v629 = vadd.f32 %v83, %v595
  %v630 = vadd.f32 %v84, %v597
  %631 = vst [vmem:[#allocation2] sm:$0xff] %v599
  %632 = vst [vmem:[#allocation2 + $0x8] sm:$0xff] %v600
  %633 = vst [vmem:[#allocation2 + $0x10] sm:$0xff] %v601
  %634 = vst [vmem:[#allocation2 + $0x18] sm:$0xff] %v602
  %635 = vst [vmem:[#allocation2 + $0x20] sm:$0xff] %v603
  %636 = vst [vmem:[#allocation2 + $0x28] sm:$0xff] %v604
  %637 = vst [vmem:[#allocation2 + $0x30] sm:$0xff] %v605
  %638 = vst [vmem:[#allocation2 + $0x38] sm:$0xff] %v606
  %639 = vst [vmem:[#allocation2 + $0x40] sm:$0xff] %v607
  %640 = vst [vmem:[#allocation2 + $0x48] sm:$0xff] %v608
  %641 = vst [vmem:[#allocation2 + $0x50] sm:$0xff] %v609
  %642 = vst [vmem:[#allocation2 + $0x58] sm:$0xff] %v610
  %643 = vst [vmem:[#allocation2 + $0x60] sm:$0xff] %v611
  %644 = vst [vmem:[#allocation2 + $0x68] sm:$0xff] %v612
  %645 = vst [vmem:[#allocation2 + $0x70] sm:$0xff] %v613
  %646 = vst [vmem:[#allocation2 + $0x78] sm:$0xff] %v614
  %647 = vst [vmem:[#allocation2 + $0x80] sm:$0xff] %v615
  %648 = vst [vmem:[#allocation2 + $0x88] sm:$0xff] %v616
  %649 = vst [vmem:[#allocation2 + $0x90] sm:$0xff] %v617
  %650 = vst [vmem:[#allocation2 + $0x98] sm:$0xff] %v618
  %651 = vst [vmem:[#allocation2 + $0xa0] sm:$0xff] %v619
  %652 = vst [vmem:[#allocation2 + $0xa8] sm:$0xff] %v620
  %653 = vst [vmem:[#allocation2 + $0xb0] sm:$0xff] %v621
  %654 = vst [vmem:[#allocation2 + $0xb8] sm:$0xff] %v622
  %655 = vst [vmem:[#allocation2 + $0xc0] sm:$0xff] %v623
  %656 = vst [vmem:[#allocation2 + $0xc8] sm:$0xff] %v624
  %657 = vst [vmem:[#allocation2 + $0xd0] sm:$0xff] %v625
  %658 = vst [vmem:[#allocation2 + $0xd8] sm:$0xff] %v626
  %659 = vst [vmem:[#allocation2 + $0xe0] sm:$0xff] %v627
  %660 = vst [vmem:[#allocation2 + $0xe8] sm:$0xff] %v628
  %661 = vst [vmem:[#allocation2 + $0xf0] sm:$0xff] %v629
  %662 = vst [vmem:[#allocation2 + $0xf8] sm:$0xff] %v630
  // Predicated region
  $region22: #{forward_ffn.4} parent=0 // pred_check
    %p663 = pneg %p17
  $region23: #{forward_ffn.4} parent=0 // pred_check_branch
    %665 = sbr.rel (%p663) target = $region25
  $region24: #{forward_ffn.4} parent=0 // pred_region
    %v666 = vld [vmem:[#allocation2] sm:$0xff]
    %v667 = vld [vmem:[#allocation2 + $0x8] sm:$0xff]
    %v668 = vld [vmem:[#allocation2 + $0x10] sm:$0xff]
    %v669 = vld [vmem:[#allocation2 + $0x18] sm:$0xff]
    %v670 = vld [vmem:[#allocation2 + $0x20] sm:$0xff]
    %v671 = vld [vmem:[#allocation2 + $0x28] sm:$0xff]
    %v672 = vld [vmem:[#allocation2 + $0x30] sm:$0xff]
    %v673 = vld [vmem:[#allocation2 + $0x38] sm:$0xff]
    %v674 = vld [vmem:[#allocation2 + $0x40] sm:$0xff]
    %v675 = vld [vmem:[#allocation2 + $0x48] sm:$0xff]
    %v676 = vld [vmem:[#allocation2 + $0x50] sm:$0xff]
    %v677 = vld [vmem:[#allocation2 + $0x58] sm:$0xff]
    %v678 = vld [vmem:[#allocation2 + $0x60] sm:$0xff]
    %v679 = vld [vmem:[#allocation2 + $0x68] sm:$0xff]
    %v680 = vld [vmem:[#allocation2 + $0x70] sm:$0xff]
    %v681 = vld [vmem:[#allocation2 + $0x78] sm:$0xff]
    %v682 = vld [vmem:[#allocation2 + $0x80] sm:$0xff]
    %v683 = vld [vmem:[#allocation2 + $0x88] sm:$0xff]
    %v684 = vld [vmem:[#allocation2 + $0x90] sm:$0xff]
    %v685 = vld [vmem:[#allocation2 + $0x98] sm:$0xff]
    %v686 = vld [vmem:[#allocation2 + $0xa0] sm:$0xff]
    %v687 = vld [vmem:[#allocation2 + $0xa8] sm:$0xff]
    %v688 = vld [vmem:[#allocation2 + $0xb0] sm:$0xff]
    %v689 = vld [vmem:[#allocation2 + $0xb8] sm:$0xff]
    %v690 = vld [vmem:[#allocation2 + $0xc0] sm:$0xff]
    %v691 = vld [vmem:[#allocation2 + $0xc8] sm:$0xff]
    %v692 = vld [vmem:[#allocation2 + $0xd0] sm:$0xff]
    %v693 = vld [vmem:[#allocation2 + $0xd8] sm:$0xff]
    %v694 = vld [vmem:[#allocation2 + $0xe0] sm:$0xff]
    %v695 = vld [vmem:[#allocation2 + $0xe8] sm:$0xff]
    %v696 = vld [vmem:[#allocation2 + $0xf0] sm:$0xff]
    %v697 = vld [vmem:[#allocation2 + $0xf8] sm:$0xff]
    %v698 = vld [vmem:[%s2] sm:$0x3]
    %v700 = vlaneseq
    %v701 = vshrl.u32 %v700, 7
    %v702 = vsub.s32 0, %v701
    %v703 = vrot.slane %v698, %v702
    %v704 = vlaneseq
    %v705 = vshrl.u32 %v704, 7
    %v706 = vsub.s32 1, %v705
    %v707 = vrot.slane %v698, %v706
    %v710 = vadd.f32 %v666, %v703
    %v711 = vadd.f32 %v667, %v707
    %v712 = vadd.f32 %v668, %v703
    %v713 = vadd.f32 %v669, %v707
    %v714 = vadd.f32 %v670, %v703
    %v715 = vadd.f32 %v671, %v707
    %v716 = vadd.f32 %v672, %v703
    %v717 = vadd.f32 %v673, %v707
    %v718 = vadd.f32 %v674, %v703
    %v719 = vadd.f32 %v675, %v707
    %v720 = vadd.f32 %v676, %v703
    %v721 = vadd.f32 %v677, %v707
    %v722 = vadd.f32 %v678, %v703
    %v723 = vadd.f32 %v679, %v707
    %v724 = vadd.f32 %v680, %v703
    %v725 = vadd.f32 %v681, %v707
    %v726 = vadd.f32 %v682, %v703
    %v727 = vadd.f32 %v683, %v707
    %v728 = vadd.f32 %v684, %v703
    %v729 = vadd.f32 %v685, %v707
    %v730 = vadd.f32 %v686, %v703
    %v731 = vadd.f32 %v687, %v707
    %v732 = vadd.f32 %v688, %v703
    %v733 = vadd.f32 %v689, %v707
    %v734 = vadd.f32 %v690, %v703
    %v735 = vadd.f32 %v691, %v707
    %v736 = vadd.f32 %v692, %v703
    %v737 = vadd.f32 %v693, %v707
    %v738 = vadd.f32 %v694, %v703
    %v739 = vadd.f32 %v695, %v707
    %v740 = vadd.f32 %v696, %v703
    %v741 = vadd.f32 %v697, %v707
    %v742 = vld [vmem:[%s3] sm:$0xff]
    %v743 = vld [vmem:[%s3 + $0x8] sm:$0xff]
    %v744 = vld [vmem:[%s3 + $0x10] sm:$0xff]
    %v745 = vld [vmem:[%s3 + $0x18] sm:$0xff]
    %v746 = vld [vmem:[%s3 + $0x20] sm:$0xff]
    %v747 = vld [vmem:[%s3 + $0x28] sm:$0xff]
    %v748 = vld [vmem:[%s3 + $0x30] sm:$0xff]
    %v749 = vld [vmem:[%s3 + $0x38] sm:$0xff]
    %v750 = vld [vmem:[%s3 + $0x40] sm:$0xff]
    %v751 = vld [vmem:[%s3 + $0x48] sm:$0xff]
    %v752 = vld [vmem:[%s3 + $0x50] sm:$0xff]
    %v753 = vld [vmem:[%s3 + $0x58] sm:$0xff]
    %v754 = vld [vmem:[%s3 + $0x60] sm:$0xff]
    %v755 = vld [vmem:[%s3 + $0x68] sm:$0xff]
    %v756 = vld [vmem:[%s3 + $0x70] sm:$0xff]
    %v757 = vld [vmem:[%s3 + $0x78] sm:$0xff]
    %v758 = vld [vmem:[%s3 + $0x80] sm:$0xff]
    %v759 = vld [vmem:[%s3 + $0x88] sm:$0xff]
    %v760 = vld [vmem:[%s3 + $0x90] sm:$0xff]
    %v761 = vld [vmem:[%s3 + $0x98] sm:$0xff]
    %v762 = vld [vmem:[%s3 + $0xa0] sm:$0xff]
    %v763 = vld [vmem:[%s3 + $0xa8] sm:$0xff]
    %v764 = vld [vmem:[%s3 + $0xb0] sm:$0xff]
    %v765 = vld [vmem:[%s3 + $0xb8] sm:$0xff]
    %v766 = vld [vmem:[%s3 + $0xc0] sm:$0xff]
    %v767 = vld [vmem:[%s3 + $0xc8] sm:$0xff]
    %v768 = vld [vmem:[%s3 + $0xd0] sm:$0xff]
    %v769 = vld [vmem:[%s3 + $0xd8] sm:$0xff]
    %v770 = vld [vmem:[%s3 + $0xe0] sm:$0xff]
    %v771 = vld [vmem:[%s3 + $0xe8] sm:$0xff]
    %v772 = vld [vmem:[%s3 + $0xf0] sm:$0xff]
    %v773 = vld [vmem:[%s3 + $0xf8] sm:$0xff]
    %v774 = vadd.f32 %v710, %v742
    %v775 = vadd.f32 %v711, %v743
    %v776 = vadd.f32 %v712, %v744
    %v777 = vadd.f32 %v713, %v745
    %v778 = vadd.f32 %v714, %v746
    %v779 = vadd.f32 %v715, %v747
    %v780 = vadd.f32 %v716, %v748
    %v781 = vadd.f32 %v717, %v749
    %v782 = vadd.f32 %v718, %v750
    %v783 = vadd.f32 %v719, %v751
    %v784 = vadd.f32 %v720, %v752
    %v785 = vadd.f32 %v721, %v753
    %v786 = vadd.f32 %v722, %v754
    %v787 = vadd.f32 %v723, %v755
    %v788 = vadd.f32 %v724, %v756
    %v789 = vadd.f32 %v725, %v757
    %v790 = vadd.f32 %v726, %v758
    %v791 = vadd.f32 %v727, %v759
    %v792 = vadd.f32 %v728, %v760
    %v793 = vadd.f32 %v729, %v761
    %v794 = vadd.f32 %v730, %v762
    %v795 = vadd.f32 %v731, %v763
    %v796 = vadd.f32 %v732, %v764
    %v797 = vadd.f32 %v733, %v765
    %v798 = vadd.f32 %v734, %v766
    %v799 = vadd.f32 %v735, %v767
    %v800 = vadd.f32 %v736, %v768
    %v801 = vadd.f32 %v737, %v769
    %v802 = vadd.f32 %v738, %v770
    %v803 = vadd.f32 %v739, %v771
    %v804 = vadd.f32 %v740, %v772
    %v805 = vadd.f32 %v741, %v773
    %806 = vst [vmem:[%s4] sm:$0xff] %v774
    %807 = vst [vmem:[%s4 + $0x8] sm:$0xff] %v775
    %808 = vst [vmem:[%s4 + $0x10] sm:$0xff] %v776
    %809 = vst [vmem:[%s4 + $0x18] sm:$0xff] %v777
    %810 = vst [vmem:[%s4 + $0x20] sm:$0xff] %v778
    %811 = vst [vmem:[%s4 + $0x28] sm:$0xff] %v779
    %812 = vst [vmem:[%s4 + $0x30] sm:$0xff] %v780
    %813 = vst [vmem:[%s4 + $0x38] sm:$0xff] %v781
    %814 = vst [vmem:[%s4 + $0x40] sm:$0xff] %v782
    %815 = vst [vmem:[%s4 + $0x48] sm:$0xff] %v783
    %816 = vst [vmem:[%s4 + $0x50] sm:$0xff] %v784
    %817 = vst [vmem:[%s4 + $0x58] sm:$0xff] %v785
    %818 = vst [vmem:[%s4 + $0x60] sm:$0xff] %v786
    %819 = vst [vmem:[%s4 + $0x68] sm:$0xff] %v787
    %820 = vst [vmem:[%s4 + $0x70] sm:$0xff] %v788
    %821 = vst [vmem:[%s4 + $0x78] sm:$0xff] %v789
    %822 = vst [vmem:[%s4 + $0x80] sm:$0xff] %v790
    %823 = vst [vmem:[%s4 + $0x88] sm:$0xff] %v791
    %824 = vst [vmem:[%s4 + $0x90] sm:$0xff] %v792
    %825 = vst [vmem:[%s4 + $0x98] sm:$0xff] %v793
    %826 = vst [vmem:[%s4 + $0xa0] sm:$0xff] %v794
    %827 = vst [vmem:[%s4 + $0xa8] sm:$0xff] %v795
    %828 = vst [vmem:[%s4 + $0xb0] sm:$0xff] %v796
    %829 = vst [vmem:[%s4 + $0xb8] sm:$0xff] %v797
    %830 = vst [vmem:[%s4 + $0xc0] sm:$0xff] %v798
    %831 = vst [vmem:[%s4 + $0xc8] sm:$0xff] %v799
    %832 = vst [vmem:[%s4 + $0xd0] sm:$0xff] %v800
    %833 = vst [vmem:[%s4 + $0xd8] sm:$0xff] %v801
    %834 = vst [vmem:[%s4 + $0xe0] sm:$0xff] %v802
    %835 = vst [vmem:[%s4 + $0xe8] sm:$0xff] %v803
    %836 = vst [vmem:[%s4 + $0xf0] sm:$0xff] %v804
    %837 = vst [vmem:[%s4 + $0xf8] sm:$0xff] %v805
  $region25: #{forward_ffn.4} parent=0 // pred_fallthru
    _
  // Predicated region
  $region26: #{forward_ffn.4} parent=0 // pred_check
    _
  $region27: #{forward_ffn.4} parent=0 // pred_check_branch
    %839 = sbr.rel (0) target = $region29
  $region28: #{forward_ffn.4} parent=0 // pred_region
    _
  $region29: #{forward_ffn.4} parent=0 // pred_fallthru
    _
  // Predicated region
  $region30: #{forward_ffn.4} parent=0 // pred_check
    _
  $region31: #{forward_ffn.4} parent=0 // pred_check_branch
    %841 = sbr.rel (0) target = $region33
  $region32: #{forward_ffn.4} parent=0 // pred_region
    _
  $region33: #{forward_ffn.4} parent=0 // pred_fallthru
    _

// kernel: forward_ffn.3
$region0: #{forward_ffn.3}
  #allocation0 [shape = 'u32[]', space=smem, size = 0x4, offset = 0x4, fixed_abs, tag = 'smem constant byte address 0x4 - core index']
  #allocation1 [shape = 'u32[144,128]{1,0:T(1,128)}', space=vmem, size = 0x12000, scoped, tag = 'internal scratch']
  #allocation2 [shape = 'f32[128,512]{1,0:T(8,128)}', space=vmem, size = 0x40000, scoped, tag = 'scratch operand']
  %s0 = inlined_call_operand.hbm [shape: f32[128,256], index: 0, kind: input, shape index: {}]
  %s1 = inlined_call_operand.hbm [shape: f32[256,512], index: 1, kind: input, shape index: {}]
  %s2 = inlined_call_operand.hbm [shape: f32[1,512], index: 2, kind: input, shape index: {}]
  %s3 = inlined_call_operand.vmem [shape: f32[128,512], index: 3, kind: output, shape index: {}]
  %s4 = sld [smem:[#allocation0]]
  $region42: #{forward_ffn.3} parent=0
    _
  %s6 = ssub.s32 1, %s4
  %s7 = scalar_select 0, %s6, %s4
  $region1: #{forward_ffn.3} parent=0
    #allocation3 [shape = 'u8[131072]{0}', space=vmem, size = 0x20000, scoped, tag = 'input window, operand 0, single buffered']
    #allocation4 [shape = 's32[1]{0}', space=sflag, size = 0x4, scoped, tag = 'scoped memory for forward_ffn.3']
    #allocation5 [shape = 'u8[524288]{0}', space=vmem, size = 0x80000, scoped, tag = 'input window, operand 1, single buffered']
    #allocation6 [shape = 's32[1]{0}', space=sflag, size = 0x4, scoped, tag = 'scoped memory for forward_ffn.3']
    #allocation7 [shape = 'u8[2048]{0}', space=vmem, size = 0x800, scoped, tag = 'input window, operand 2, single buffered']
    %8 = vsyncpa [#allocation4], 0
    %9 = vsyncpa [#allocation6], 0
    // Predicated region
    $region2: #{forward_ffn.3} parent=1 // pred_check
      _
    $region3: #{forward_ffn.3} parent=1 // pred_check_branch
      %11 = sbr.rel (0) target = $region5
    $region4: #{forward_ffn.3} parent=1 // pred_region
      %s13 = ssub.s32 4096, 4096
      %14 = vsyncadd [#allocation4], %s13
      %s15 = sshll.u32 [#allocation3], 4
      %s16 = int_to_ptr.vmem [resolvable:$true] %s15
      %21 = dma.hbm_to_vmem [thread:$0]  %s0, 4096, %s16, [#allocation4], 256, 256, 16
    $region5: #{forward_ffn.3} parent=1 // pred_fallthru
      _
    // Predicated region
    $region6: #{forward_ffn.3} parent=1 // pred_check
      _
    $region7: #{forward_ffn.3} parent=1 // pred_check_branch
      %23 = sbr.rel (0) target = $region9
    $region8: #{forward_ffn.3} parent=1 // pred_region
      %s25 = ssub.s32 16384, 16384
      %26 = vsyncadd [#allocation6], %s25
      %s27 = sshll.u32 [#allocation5], 4
      %s28 = int_to_ptr.vmem [resolvable:$true] %s27
      %33 = dma.hbm_to_vmem [thread:$0]  %s1, 16384, %s28, [#allocation6], 512, 512, 32
    $region9: #{forward_ffn.3} parent=1 // pred_fallthru
      _
    // Predicated region
    $region10: #{forward_ffn.3} parent=1 // pred_check
      _
    $region11: #{forward_ffn.3} parent=1 // pred_check_branch
      %35 = sbr.rel (0) target = $region13
    $region12: #{forward_ffn.3} parent=1 // pred_region
      %s37 = ssub.s32 64, 64
      %38 = vsyncadd [#allocation6], %s37
      %s40 = sshll.u32 [#allocation7], 4
      %s41 = int_to_ptr.vmem [resolvable:$true] %s40
      %43 = dma.hbm_to_vmem [thread:$0]  %s2, 64, %s41, [#allocation6]
    $region13: #{forward_ffn.3} parent=1 // pred_fallthru
      _
    // Predicated region
    $region14: #{forward_ffn.3} parent=1 // pred_check
      _
    $region15: #{forward_ffn.3} parent=1 // pred_check_branch
      %45 = sbr.rel (0) target = $region17
    $region16: #{forward_ffn.3} parent=1 // pred_region
      %46 = dma.done [#allocation4], 4096
    $region17: #{forward_ffn.3} parent=1 // pred_fallthru
      _
    // Predicated region
    $region18: #{forward_ffn.3} parent=1 // pred_check
      _
    $region19: #{forward_ffn.3} parent=1 // pred_check_branch
      %48 = sbr.rel (0) target = $region21
    $region20: #{forward_ffn.3} parent=1 // pred_region
      %49 = dma.done [#allocation6], 16384
    $region21: #{forward_ffn.3} parent=1 // pred_fallthru
      _
    // Predicated region
    $region22: #{forward_ffn.3} parent=1 // pred_check
      _
    $region23: #{forward_ffn.3} parent=1 // pred_check_branch
      %51 = sbr.rel (0) target = $region25
    $region24: #{forward_ffn.3} parent=1 // pred_region
      %52 = dma.done [#allocation6], 64
    $region25: #{forward_ffn.3} parent=1 // pred_fallthru
      _
    %p53 = scmp.eq.s32.totalorder 0, 0
    // Predicated region
    $region26: #{forward_ffn.3} parent=1 // pred_check
      %p54 = pneg %p53
    $region27: #{forward_ffn.3} parent=1 // pred_check_branch
      %56 = sbr.rel (%p54) target = $region29
    $region28: #{forward_ffn.3} parent=1 // pred_region
      %57 = vst [vmem:[#allocation2] sm:$0xff] 0.0
      %58 = vst [vmem:[#allocation2 + $0x8] sm:$0xff] 0.0
      %59 = vst [vmem:[#allocation2 + $0x10] sm:$0xff] 0.0
      %60 = vst [vmem:[#allocation2 + $0x18] sm:$0xff] 0.0
      %61 = vst [vmem:[#allocation2 + $0x20] sm:$0xff] 0.0
      %62 = vst [vmem:[#allocation2 + $0x28] sm:$0xff] 0.0
      %63 = vst [vmem:[#allocation2 + $0x30] sm:$0xff] 0.0
      %64 = vst [vmem:[#allocation2 + $0x38] sm:$0xff] 0.0
      %65 = vst [vmem:[#allocation2 + $0x40] sm:$0xff] 0.0
      %66 = vst [vmem:[#allocation2 + $0x48] sm:$0xff] 0.0
      %67 = vst [vmem:[#allocation2 + $0x50] sm:$0xff] 0.0
      %68 = vst [vmem:[#allocation2 + $0x58] sm:$0xff] 0.0
      %69 = vst [vmem:[#allocation2 + $0x60] sm:$0xff] 0.0
      %70 = vst [vmem:[#allocation2 + $0x68] sm:$0xff] 0.0
      %71 = vst [vmem:[#allocation2 + $0x70] sm:$0xff] 0.0
      %72 = vst [vmem:[#allocation2 + $0x78] sm:$0xff] 0.0
      %73 = vst [vmem:[#allocation2 + $0x80] sm:$0xff] 0.0
      %74 = vst [vmem:[#allocation2 + $0x88] sm:$0xff] 0.0
      %75 = vst [vmem:[#allocation2 + $0x90] sm:$0xff] 0.0
      %76 = vst [vmem:[#allocation2 + $0x98] sm:$0xff] 0.0
      %77 = vst [vmem:[#allocation2 + $0xa0] sm:$0xff] 0.0
      %78 = vst [vmem:[#allocation2 + $0xa8] sm:$0xff] 0.0
      %79 = vst [vmem:[#allocation2 + $0xb0] sm:$0xff] 0.0
      %80 = vst [vmem:[#allocation2 + $0xb8] sm:$0xff] 0.0
      %81 = vst [vmem:[#allocation2 + $0xc0] sm:$0xff] 0.0
      %82 = vst [vmem:[#allocation2 + $0xc8] sm:$0xff] 0.0
      %83 = vst [vmem:[#allocation2 + $0xd0] sm:$0xff] 0.0
      %84 = vst [vmem:[#allocation2 + $0xd8] sm:$0xff] 0.0
      %85 = vst [vmem:[#allocation2 + $0xe0] sm:$0xff] 0.0
      %86 = vst [vmem:[#allocation2 + $0xe8] sm:$0xff] 0.0
      %87 = vst [vmem:[#allocation2 + $0xf0] sm:$0xff] 0.0
      %88 = vst [vmem:[#allocation2 + $0xf8] sm:$0xff] 0.0
      %89 = vst [vmem:[#allocation2 + $0x100] sm:$0xff] 0.0
      %90 = vst [vmem:[#allocation2 + $0x108] sm:$0xff] 0.0
      %91 = vst [vmem:[#allocation2 + $0x110] sm:$0xff] 0.0
      %92 = vst [vmem:[#allocation2 + $0x118] sm:$0xff] 0.0
      %93 = vst [vmem:[#allocation2 + $0x120] sm:$0xff] 0.0
      %94 = vst [vmem:[#allocation2 + $0x128] sm:$0xff] 0.0
      %95 = vst [vmem:[#allocation2 + $0x130] sm:$0xff] 0.0
      %96 = vst [vmem:[#allocation2 + $0x138] sm:$0xff] 0.0
      %97 = vst [vmem:[#allocation2 + $0x140] sm:$0xff] 0.0
      %98 = vst [vmem:[#allocation2 + $0x148] sm:$0xff] 0.0
      %99 = vst [vmem:[#allocation2 + $0x150] sm:$0xff] 0.0
      %100 = vst [vmem:[#allocation2 + $0x158] sm:$0xff] 0.0
      %101 = vst [vmem:[#allocation2 + $0x160] sm:$0xff] 0.0
      %102 = vst [vmem:[#allocation2 + $0x168] sm:$0xff] 0.0
      %103 = vst [vmem:[#allocation2 + $0x170] sm:$0xff] 0.0
      %104 = vst [vmem:[#allocation2 + $0x178] sm:$0xff] 0.0
      %105 = vst [vmem:[#allocation2 + $0x180] sm:$0xff] 0.0
      %106 = vst [vmem:[#allocation2 + $0x188] sm:$0xff] 0.0
      %107 = vst [vmem:[#allocation2 + $0x190] sm:$0xff] 0.0
      %108 = vst [vmem:[#allocation2 + $0x198] sm:$0xff] 0.0
      %109 = vst [vmem:[#allocation2 + $0x1a0] sm:$0xff] 0.0
      %110 = vst [vmem:[#allocation2 + $0x1a8] sm:$0xff] 0.0
      %111 = vst [vmem:[#allocation2 + $0x1b0] sm:$0xff] 0.0
      %112 = vst [vmem:[#allocation2 + $0x1b8] sm:$0xff] 0.0
      %113 = vst [vmem:[#allocation2 + $0x1c0] sm:$0xff] 0.0
      %114 = vst [vmem:[#allocation2 + $0x1c8] sm:$0xff] 0.0
      %115 = vst [vmem:[#allocation2 + $0x1d0] sm:$0xff] 0.0
      %116 = vst [vmem:[#allocation2 + $0x1d8] sm:$0xff] 0.0
      %117 = vst [vmem:[#allocation2 + $0x1e0] sm:$0xff] 0.0
      %118 = vst [vmem:[#allocation2 + $0x1e8] sm:$0xff] 0.0
      %119 = vst [vmem:[#allocation2 + $0x1f0] sm:$0xff] 0.0
      %120 = vst [vmem:[#allocation2 + $0x1f8] sm:$0xff] 0.0
    $region29: #{forward_ffn.3} parent=1 // pred_fallthru
      _
    %v121 = vld [vmem:[#allocation2] sm:$0xff]
    %v122 = vld [vmem:[#allocation2 + $0x8] sm:$0xff]
    %v123 = vld [vmem:[#allocation2 + $0x10] sm:$0xff]
    %v124 = vld [vmem:[#allocation2 + $0x18] sm:$0xff]
    %v125 = vld [vmem:[#allocation2 + $0x20] sm:$0xff]
    %v126 = vld [vmem:[#allocation2 + $0x28] sm:$0xff]
    %v127 = vld [vmem:[#allocation2 + $0x30] sm:$0xff]
    %v128 = vld [vmem:[#allocation2 + $0x38] sm:$0xff]
    %v129 = vld [vmem:[#allocation2 + $0x40] sm:$0xff]
    %v130 = vld [vmem:[#allocation2 + $0x48] sm:$0xff]
    %v131 = vld [vmem:[#allocation2 + $0x50] sm:$0xff]
    %v132 = vld [vmem:[#allocation2 + $0x58] sm:$0xff]
    %v133 = vld [vmem:[#allocation2 + $0x60] sm:$0xff]
    %v134 = vld [vmem:[#allocation2 + $0x68] sm:$0xff]
    %v135 = vld [vmem:[#allocation2 + $0x70] sm:$0xff]
    %v136 = vld [vmem:[#allocation2 + $0x78] sm:$0xff]
    %v137 = vld [vmem:[#allocation2 + $0x80] sm:$0xff]
    %v138 = vld [vmem:[#allocation2 + $0x88] sm:$0xff]
    %v139 = vld [vmem:[#allocation2 + $0x90] sm:$0xff]
    %v140 = vld [vmem:[#allocation2 + $0x98] sm:$0xff]
    %v141 = vld [vmem:[#allocation2 + $0xa0] sm:$0xff]
    %v142 = vld [vmem:[#allocation2 + $0xa8] sm:$0xff]
    %v143 = vld [vmem:[#allocation2 + $0xb0] sm:$0xff]
    %v144 = vld [vmem:[#allocation2 + $0xb8] sm:$0xff]
    %v145 = vld [vmem:[#allocation2 + $0xc0] sm:$0xff]
    %v146 = vld [vmem:[#allocation2 + $0xc8] sm:$0xff]
    %v147 = vld [vmem:[#allocation2 + $0xd0] sm:$0xff]
    %v148 = vld [vmem:[#allocation2 + $0xd8] sm:$0xff]
    %v149 = vld [vmem:[#allocation2 + $0xe0] sm:$0xff]
    %v150 = vld [vmem:[#allocation2 + $0xe8] sm:$0xff]
    %v151 = vld [vmem:[#allocation2 + $0xf0] sm:$0xff]
    %v152 = vld [vmem:[#allocation2 + $0xf8] sm:$0xff]
    %v153 = vld [vmem:[#allocation2 + $0x100] sm:$0xff]
    %v154 = vld [vmem:[#allocation2 + $0x108] sm:$0xff]
    %v155 = vld [vmem:[#allocation2 + $0x110] sm:$0xff]
    %v156 = vld [vmem:[#allocation2 + $0x118] sm:$0xff]
    %v157 = vld [vmem:[#allocation2 + $0x120] sm:$0xff]
    %v158 = vld [vmem:[#allocation2 + $0x128] sm:$0xff]
    %v159 = vld [vmem:[#allocation2 + $0x130] sm:$0xff]
    %v160 = vld [vmem:[#allocation2 + $0x138] sm:$0xff]
    %v161 = vld [vmem:[#allocation2 + $0x140] sm:$0xff]
    %v162 = vld [vmem:[#allocation2 + $0x148] sm:$0xff]
    %v163 = vld [vmem:[#allocation2 + $0x150] sm:$0xff]
    %v164 = vld [vmem:[#allocation2 + $0x158] sm:$0xff]
    %v165 = vld [vmem:[#allocation2 + $0x160] sm:$0xff]
    %v166 = vld [vmem:[#allocation2 + $0x168] sm:$0xff]
    %v167 = vld [vmem:[#allocation2 + $0x170] sm:$0xff]
    %v168 = vld [vmem:[#allocation2 + $0x178] sm:$0xff]
    %v169 = vld [vmem:[#allocation2 + $0x180] sm:$0xff]
    %v170 = vld [vmem:[#allocation2 + $0x188] sm:$0xff]
    %v171 = vld [vmem:[#allocation2 + $0x190] sm:$0xff]
    %v172 = vld [vmem:[#allocation2 + $0x198] sm:$0xff]
    %v173 = vld [vmem:[#allocation2 + $0x1a0] sm:$0xff]
    %v174 = vld [vmem:[#allocation2 + $0x1a8] sm:$0xff]
    %v175 = vld [vmem:[#allocation2 + $0x1b0] sm:$0xff]
    %v176 = vld [vmem:[#allocation2 + $0x1b8] sm:$0xff]
    %v177 = vld [vmem:[#allocation2 + $0x1c0] sm:$0xff]
    %v178 = vld [vmem:[#allocation2 + $0x1c8] sm:$0xff]
    %v179 = vld [vmem:[#allocation2 + $0x1d0] sm:$0xff]
    %v180 = vld [vmem:[#allocation2 + $0x1d8] sm:$0xff]
    %v181 = vld [vmem:[#allocation2 + $0x1e0] sm:$0xff]
    %v182 = vld [vmem:[#allocation2 + $0x1e8] sm:$0xff]
    %v183 = vld [vmem:[#allocation2 + $0x1f0] sm:$0xff]
    %v184 = vld [vmem:[#allocation2 + $0x1f8] sm:$0xff]
    %v185 = vld [vmem:[#allocation3] sm:$0xff]
    %v186 = vld [vmem:[#allocation3 + $0x8] sm:$0xff]
    %v187 = vld [vmem:[#allocation3 + $0x10] sm:$0xff]
    %v188 = vld [vmem:[#allocation3 + $0x18] sm:$0xff]
    %v189 = vld [vmem:[#allocation3 + $0x20] sm:$0xff]
    %v190 = vld [vmem:[#allocation3 + $0x28] sm:$0xff]
    %v191 = vld [vmem:[#allocation3 + $0x30] sm:$0xff]
    %v192 = vld [vmem:[#allocation3 + $0x38] sm:$0xff]
    %v193 = vld [vmem:[#allocation3 + $0x40] sm:$0xff]
    %v194 = vld [vmem:[#allocation3 + $0x48] sm:$0xff]
    %v195 = vld [vmem:[#allocation3 + $0x50] sm:$0xff]
    %v196 = vld [vmem:[#allocation3 + $0x58] sm:$0xff]
    %v197 = vld [vmem:[#allocation3 + $0x60] sm:$0xff]
    %v198 = vld [vmem:[#allocation3 + $0x68] sm:$0xff]
    %v199 = vld [vmem:[#allocation3 + $0x70] sm:$0xff]
    %v200 = vld [vmem:[#allocation3 + $0x78] sm:$0xff]
    %v201 = vld [vmem:[#allocation3 + $0x80] sm:$0xff]
    %v202 = vld [vmem:[#allocation3 + $0x88] sm:$0xff]
    %v203 = vld [vmem:[#allocation3 + $0x90] sm:$0xff]
    %v204 = vld [vmem:[#allocation3 + $0x98] sm:$0xff]
    %v205 = vld [vmem:[#allocation3 + $0xa0] sm:$0xff]
    %v206 = vld [vmem:[#allocation3 + $0xa8] sm:$0xff]
    %v207 = vld [vmem:[#allocation3 + $0xb0] sm:$0xff]
    %v208 = vld [vmem:[#allocation3 + $0xb8] sm:$0xff]
    %v209 = vld [vmem:[#allocation3 + $0xc0] sm:$0xff]
    %v210 = vld [vmem:[#allocation3 + $0xc8] sm:$0xff]
    %v211 = vld [vmem:[#allocation3 + $0xd0] sm:$0xff]
    %v212 = vld [vmem:[#allocation3 + $0xd8] sm:$0xff]
    %v213 = vld [vmem:[#allocation3 + $0xe0] sm:$0xff]
    %v214 = vld [vmem:[#allocation3 + $0xe8] sm:$0xff]
    %v215 = vld [vmem:[#allocation3 + $0xf0] sm:$0xff]
    %v216 = vld [vmem:[#allocation3 + $0xf8] sm:$0xff]
    %v217 = vld [vmem:[#allocation5] sm:$0xff]
    %v218 = vld [vmem:[#allocation5 + $0x8] sm:$0xff]
    %v219 = vld [vmem:[#allocation5 + $0x10] sm:$0xff]
    %v220 = vld [vmem:[#allocation5 + $0x18] sm:$0xff]
    %v221 = vld [vmem:[#allocation5 + $0x20] sm:$0xff]
    %v222 = vld [vmem:[#allocation5 + $0x28] sm:$0xff]
    %v223 = vld [vmem:[#allocation5 + $0x30] sm:$0xff]
    %v224 = vld [vmem:[#allocation5 + $0x38] sm:$0xff]
    %v225 = vld [vmem:[#allocation5 + $0x40] sm:$0xff]
    %v226 = vld [vmem:[#allocation5 + $0x48] sm:$0xff]
    %v227 = vld [vmem:[#allocation5 + $0x50] sm:$0xff]
    %v228 = vld [vmem:[#allocation5 + $0x58] sm:$0xff]
    %v229 = vld [vmem:[#allocation5 + $0x60] sm:$0xff]
    %v230 = vld [vmem:[#allocation5 + $0x68] sm:$0xff]
    %v231 = vld [vmem:[#allocation5 + $0x70] sm:$0xff]
    %v232 = vld [vmem:[#allocation5 + $0x78] sm:$0xff]
    %v233 = vld [vmem:[#allocation5 + $0x80] sm:$0xff]
    %v234 = vld [vmem:[#allocation5 + $0x88] sm:$0xff]
    %v235 = vld [vmem:[#allocation5 + $0x90] sm:$0xff]
    %v236 = vld [vmem:[#allocation5 + $0x98] sm:$0xff]
    %v237 = vld [vmem:[#allocation5 + $0xa0] sm:$0xff]
    %v238 = vld [vmem:[#allocation5 + $0xa8] sm:$0xff]
    %v239 = vld [vmem:[#allocation5 + $0xb0] sm:$0xff]
    %v240 = vld [vmem:[#allocation5 + $0xb8] sm:$0xff]
    %v241 = vld [vmem:[#allocation5 + $0xc0] sm:$0xff]
    %v242 = vld [vmem:[#allocation5 + $0xc8] sm:$0xff]
    %v243 = vld [vmem:[#allocation5 + $0xd0] sm:$0xff]
    %v244 = vld [vmem:[#allocation5 + $0xd8] sm:$0xff]
    %v245 = vld [vmem:[#allocation5 + $0xe0] sm:$0xff]
    %v246 = vld [vmem:[#allocation5 + $0xe8] sm:$0xff]
    %v247 = vld [vmem:[#allocation5 + $0xf0] sm:$0xff]
    %v248 = vld [vmem:[#allocation5 + $0xf8] sm:$0xff]
    %v249 = vld [vmem:[#allocation5 + $0x100] sm:$0xff]
    %v250 = vld [vmem:[#allocation5 + $0x108] sm:$0xff]
    %v251 = vld [vmem:[#allocation5 + $0x110] sm:$0xff]
    %v252 = vld [vmem:[#allocation5 + $0x118] sm:$0xff]
    %v253 = vld [vmem:[#allocation5 + $0x120] sm:$0xff]
    %v254 = vld [vmem:[#allocation5 + $0x128] sm:$0xff]
    %v255 = vld [vmem:[#allocation5 + $0x130] sm:$0xff]
    %v256 = vld [vmem:[#allocation5 + $0x138] sm:$0xff]
    %v257 = vld [vmem:[#allocation5 + $0x140] sm:$0xff]
    %v258 = vld [vmem:[#allocation5 + $0x148] sm:$0xff]
    %v259 = vld [vmem:[#allocation5 + $0x150] sm:$0xff]
    %v260 = vld [vmem:[#allocation5 + $0x158] sm:$0xff]
    %v261 = vld [vmem:[#allocation5 + $0x160] sm:$0xff]
    %v262 = vld [vmem:[#allocation5 + $0x168] sm:$0xff]
    %v263 = vld [vmem:[#allocation5 + $0x170] sm:$0xff]
    %v264 = vld [vmem:[#allocation5 + $0x178] sm:$0xff]
    %v265 = vld [vmem:[#allocation5 + $0x180] sm:$0xff]
    %v266 = vld [vmem:[#allocation5 + $0x188] sm:$0xff]
    %v267 = vld [vmem:[#allocation5 + $0x190] sm:$0xff]
    %v268 = vld [vmem:[#allocation5 + $0x198] sm:$0xff]
    %v269 = vld [vmem:[#allocation5 + $0x1a0] sm:$0xff]
    %v270 = vld [vmem:[#allocation5 + $0x1a8] sm:$0xff]
    %v271 = vld [vmem:[#allocation5 + $0x1b0] sm:$0xff]
    %v272 = vld [vmem:[#allocation5 + $0x1b8] sm:$0xff]
    %v273 = vld [vmem:[#allocation5 + $0x1c0] sm:$0xff]
    %v274 = vld [vmem:[#allocation5 + $0x1c8] sm:$0xff]
    %v275 = vld [vmem:[#allocation5 + $0x1d0] sm:$0xff]
    %v276 = vld [vmem:[#allocation5 + $0x1d8] sm:$0xff]
    %v277 = vld [vmem:[#allocation5 + $0x1e0] sm:$0xff]
    %v278 = vld [vmem:[#allocation5 + $0x1e8] sm:$0xff]
    %v279 = vld [vmem:[#allocation5 + $0x1f0] sm:$0xff]
    %v280 = vld [vmem:[#allocation5 + $0x1f8] sm:$0xff]
    %v281 = vld [vmem:[#allocation5 + $0x200] sm:$0xff]
    %v282 = vld [vmem:[#allocation5 + $0x208] sm:$0xff]
    %v283 = vld [vmem:[#allocation5 + $0x210] sm:$0xff]
    %v284 = vld [vmem:[#allocation5 + $0x218] sm:$0xff]
    %v285 = vld [vmem:[#allocation5 + $0x220] sm:$0xff]
    %v286 = vld [vmem:[#allocation5 + $0x228] sm:$0xff]
    %v287 = vld [vmem:[#allocation5 + $0x230] sm:$0xff]
    %v288 = vld [vmem:[#allocation5 + $0x238] sm:$0xff]
    %v289 = vld [vmem:[#allocation5 + $0x240] sm:$0xff]
    %v290 = vld [vmem:[#allocation5 + $0x248] sm:$0xff]
    %v291 = vld [vmem:[#allocation5 + $0x250] sm:$0xff]
    %v292 = vld [vmem:[#allocation5 + $0x258] sm:$0xff]
    %v293 = vld [vmem:[#allocation5 + $0x260] sm:$0xff]
    %v294 = vld [vmem:[#allocation5 + $0x268] sm:$0xff]
    %v295 = vld [vmem:[#allocation5 + $0x270] sm:$0xff]
    %v296 = vld [vmem:[#allocation5 + $0x278] sm:$0xff]
    %v297 = vld [vmem:[#allocation5 + $0x280] sm:$0xff]
    %v298 = vld [vmem:[#allocation5 + $0x288] sm:$0xff]
    %v299 = vld [vmem:[#allocation5 + $0x290] sm:$0xff]
    %v300 = vld [vmem:[#allocation5 + $0x298] sm:$0xff]
    %v301 = vld [vmem:[#allocation5 + $0x2a0] sm:$0xff]
    %v302 = vld [vmem:[#allocation5 + $0x2a8] sm:$0xff]
    %v303 = vld [vmem:[#allocation5 + $0x2b0] sm:$0xff]
    %v304 = vld [vmem:[#allocation5 + $0x2b8] sm:$0xff]
    %v305 = vld [vmem:[#allocation5 + $0x2c0] sm:$0xff]
    %v306 = vld [vmem:[#allocation5 + $0x2c8] sm:$0xff]
    %v307 = vld [vmem:[#allocation5 + $0x2d0] sm:$0xff]
    %v308 = vld [vmem:[#allocation5 + $0x2d8] sm:$0xff]
    %v309 = vld [vmem:[#allocation5 + $0x2e0] sm:$0xff]
    %v310 = vld [vmem:[#allocation5 + $0x2e8] sm:$0xff]
    %v311 = vld [vmem:[#allocation5 + $0x2f0] sm:$0xff]
    %v312 = vld [vmem:[#allocation5 + $0x2f8] sm:$0xff]
    %v313 = vld [vmem:[#allocation5 + $0x300] sm:$0xff]
    %v314 = vld [vmem:[#allocation5 + $0x308] sm:$0xff]
    %v315 = vld [vmem:[#allocation5 + $0x310] sm:$0xff]
    %v316 = vld [vmem:[#allocation5 + $0x318] sm:$0xff]
    %v317 = vld [vmem:[#allocation5 + $0x320] sm:$0xff]
    %v318 = vld [vmem:[#allocation5 + $0x328] sm:$0xff]
    %v319 = vld [vmem:[#allocation5 + $0x330] sm:$0xff]
    %v320 = vld [vmem:[#allocation5 + $0x338] sm:$0xff]
    %v321 = vld [vmem:[#allocation5 + $0x340] sm:$0xff]
    %v322 = vld [vmem:[#allocation5 + $0x348] sm:$0xff]
    %v323 = vld [vmem:[#allocation5 + $0x350] sm:$0xff]
    %v324 = vld [vmem:[#allocation5 + $0x358] sm:$0xff]
    %v325 = vld [vmem:[#allocation5 + $0x360] sm:$0xff]
    %v326 = vld [vmem:[#allocation5 + $0x368] sm:$0xff]
    %v327 = vld [vmem:[#allocation5 + $0x370] sm:$0xff]
    %v328 = vld [vmem:[#allocation5 + $0x378] sm:$0xff]
    %v329 = vld [vmem:[#allocation5 + $0x380] sm:$0xff]
    %v330 = vld [vmem:[#allocation5 + $0x388] sm:$0xff]
    %v331 = vld [vmem:[#allocation5 + $0x390] sm:$0xff]
    %v332 = vld [vmem:[#allocation5 + $0x398] sm:$0xff]
    %v333 = vld [vmem:[#allocation5 + $0x3a0] sm:$0xff]
    %v334 = vld [vmem:[#allocation5 + $0x3a8] sm:$0xff]
    %v335 = vld [vmem:[#allocation5 + $0x3b0] sm:$0xff]
    %v336 = vld [vmem:[#allocation5 + $0x3b8] sm:$0xff]
    %v337 = vld [vmem:[#allocation5 + $0x3c0] sm:$0xff]
    %v338 = vld [vmem:[#allocation5 + $0x3c8] sm:$0xff]
    %v339 = vld [vmem:[#allocation5 + $0x3d0] sm:$0xff]
    %v340 = vld [vmem:[#allocation5 + $0x3d8] sm:$0xff]
    %v341 = vld [vmem:[#allocation5 + $0x3e0] sm:$0xff]
    %v342 = vld [vmem:[#allocation5 + $0x3e8] sm:$0xff]
    %v343 = vld [vmem:[#allocation5 + $0x3f0] sm:$0xff]
    %v344 = vld [vmem:[#allocation5 + $0x3f8] sm:$0xff]
    %345 = vmatprep.subr.mxu0 %v278
    %346 = vmatpush1.msra.mxu0 %v277
    %347 = vmatprep.subr.mxu0 %v274
    %348 = vmatpush1.msra.mxu0 %v273
    %349 = vmatprep.subr.mxu0 %v270
    %350 = vmatpush1.msra.mxu0 %v269
    %351 = vmatprep.subr.mxu0 %v266
    %352 = vmatpush1.msra.mxu0 %v265
    %353 = vmatprep.subr.mxu0 %v262
    %354 = vmatpush1.msra.mxu0 %v261
    %355 = vmatprep.subr.mxu0 %v258
    %356 = vmatpush1.msra.mxu0 %v257
    %357 = vmatprep.subr.mxu0 %v254
    %358 = vmatpush1.msra.mxu0 %v253
    %359 = vmatprep.subr.mxu0 %v250
    %360 = vmatpush1.msra.mxu0 %v249
    %361 = vmatprep.subr.mxu0 %v246
    %362 = vmatpush1.msra.mxu0 %v245
    %363 = vmatprep.subr.mxu0 %v242
    %364 = vmatpush1.msra.mxu0 %v241
    %365 = vmatprep.subr.mxu0 %v238
    %366 = vmatpush1.msra.mxu0 %v237
    %367 = vmatprep.subr.mxu0 %v234
    %368 = vmatpush1.msra.mxu0 %v233
    %369 = vmatprep.subr.mxu0 %v230
    %370 = vmatpush1.msra.mxu0 %v229
    %371 = vmatprep.subr.mxu0 %v226
    %372 = vmatpush1.msra.mxu0 %v225
    %373 = vmatprep.subr.mxu0 %v222
    %374 = vmatpush1.msra.mxu0 %v221
    %375 = vmatprep.subr.mxu0 %v218
    %376 = vmatpush1.msra.mxu0 %v217
    %377 = vmatprep.subr.mxu0 %v342
    %378 = vmatpush2.msra.mxu0 %v341
    %379 = vmatprep.subr.mxu0 %v338
    %380 = vmatpush2.msra.mxu0 %v337
    %381 = vmatprep.subr.mxu0 %v334
    %382 = vmatpush2.msra.mxu0 %v333
    %383 = vmatprep.subr.mxu0 %v330
    %384 = vmatpush2.msra.mxu0 %v329
    %385 = vmatprep.subr.mxu0 %v326
    %386 = vmatpush2.msra.mxu0 %v325
    %387 = vmatprep.subr.mxu0 %v322
    %388 = vmatpush2.msra.mxu0 %v321
    %389 = vmatprep.subr.mxu0 %v318
    %390 = vmatpush2.msra.mxu0 %v317
    %391 = vmatprep.subr.mxu0 %v314
    %392 = vmatpush2.msra.mxu0 %v313
    %393 = vmatprep.subr.mxu0 %v310
    %394 = vmatpush2.msra.mxu0 %v309
    %395 = vmatprep.subr.mxu0 %v306
    %396 = vmatpush2.msra.mxu0 %v305
    %397 = vmatprep.subr.mxu0 %v302
    %398 = vmatpush2.msra.mxu0 %v301
    %399 = vmatprep.subr.mxu0 %v298
    %400 = vmatpush2.msra.mxu0 %v297
    %401 = vmatprep.subr.mxu0 %v294
    %402 = vmatpush2.msra.mxu0 %v293
    %403 = vmatprep.subr.mxu0 %v290
    %404 = vmatpush2.msra.mxu0 %v289
    %405 = vmatprep.subr.mxu0 %v286
    %406 = vmatpush2.msra.mxu0 %v285
    %407 = vmatprep.subr.mxu0 %v282
    %408 = vmatpush2.msra.mxu0 %v281
    %409 = vmatprep.mubr.f32.mxu0 %v186
    %410 = vmatmul.mubr.f32.gmra.mxu0 %v185
    %v411 = vpop.f32.mrf.mxu0
    %v412 = vadd.f32 0.0, %v411
    %v413 = vpop.f32.mrf.mxu0
    %v414 = vadd.f32 0.0, %v413
    %415 = vmatprep.mubr.f32.mxu0 %v188
    %416 = vmatmul.mubr.f32.gmra.mxu0 %v187
    %v417 = vpop.f32.mrf.mxu0
    %v418 = vadd.f32 0.0, %v417
    %v419 = vpop.f32.mrf.mxu0
    %v420 = vadd.f32 0.0, %v419
    %421 = vmatprep.mubr.f32.mxu0 %v190
    %422 = vmatmul.mubr.f32.gmra.mxu0 %v189
    %v423 = vpop.f32.mrf.mxu0
    %v424 = vadd.f32 0.0, %v423
    %v425 = vpop.f32.mrf.mxu0
    %v426 = vadd.f32 0.0, %v425
    %427 = vmatprep.mubr.f32.mxu0 %v192
    %428 = vmatmul.mubr.f32.gmra.mxu0 %v191
    %v429 = vpop.f32.mrf.mxu0
    %v430 = vadd.f32 0.0, %v429
    %v431 = vpop.f32.mrf.mxu0
    %v432 = vadd.f32 0.0, %v431
    %433 = vmatprep.mubr.f32.mxu0 %v194
    %434 = vmatmul.mubr.f32.gmra.mxu0 %v193
    %v435 = vpop.f32.mrf.mxu0
    %v436 = vadd.f32 0.0, %v435
    %v437 = vpop.f32.mrf.mxu0
    %v438 = vadd.f32 0.0, %v437
    %439 = vmatprep.mubr.f32.mxu0 %v196
    %440 = vmatmul.mubr.f32.gmra.mxu0 %v195
    %v441 = vpop.f32.mrf.mxu0
    %v442 = vadd.f32 0.0, %v441
    %v443 = vpop.f32.mrf.mxu0
    %v444 = vadd.f32 0.0, %v443
    %445 = vmatprep.mubr.f32.mxu0 %v198
    %446 = vmatmul.mubr.f32.gmra.mxu0 %v197
    %v447 = vpop.f32.mrf.mxu0
    %v448 = vadd.f32 0.0, %v447
    %v449 = vpop.f32.mrf.mxu0
    %v450 = vadd.f32 0.0, %v449
    %451 = vmatprep.mubr.f32.mxu0 %v200
    %452 = vmatmul.mubr.f32.gmra.mxu0 %v199
    %v453 = vpop.f32.mrf.mxu0
    %v454 = vadd.f32 0.0, %v453
    %v455 = vpop.f32.mrf.mxu0
    %v456 = vadd.f32 0.0, %v455
    %457 = vmatprep.mubr.f32.mxu0 %v202
    %458 = vmatmul.mubr.f32.gmra.mxu0 %v201
    %v459 = vpop.f32.mrf.mxu0
    %v460 = vadd.f32 0.0, %v459
    %v461 = vpop.f32.mrf.mxu0
    %v462 = vadd.f32 0.0, %v461
    %463 = vmatprep.mubr.f32.mxu0 %v204
    %464 = vmatmul.mubr.f32.gmra.mxu0 %v203
    %v465 = vpop.f32.mrf.mxu0
    %v466 = vadd.f32 0.0, %v465
    %v467 = vpop.f32.mrf.mxu0
    %v468 = vadd.f32 0.0, %v467
    %469 = vmatprep.mubr.f32.mxu0 %v206
    %470 = vmatmul.mubr.f32.gmra.mxu0 %v205
    %v471 = vpop.f32.mrf.mxu0
    %v472 = vadd.f32 0.0, %v471
    %v473 = vpop.f32.mrf.mxu0
    %v474 = vadd.f32 0.0, %v473
    %475 = vmatprep.mubr.f32.mxu0 %v208
    %476 = vmatmul.mubr.f32.gmra.mxu0 %v207
    %v477 = vpop.f32.mrf.mxu0
    %v478 = vadd.f32 0.0, %v477
    %v479 = vpop.f32.mrf.mxu0
    %v480 = vadd.f32 0.0, %v479
    %481 = vmatprep.mubr.f32.mxu0 %v210
    %482 = vmatmul.mubr.f32.gmra.mxu0 %v209
    %v483 = vpop.f32.mrf.mxu0
    %v484 = vadd.f32 0.0, %v483
    %v485 = vpop.f32.mrf.mxu0
    %v486 = vadd.f32 0.0, %v485
    %487 = vmatprep.mubr.f32.mxu0 %v212
    %488 = vmatmul.mubr.f32.gmra.mxu0 %v211
    %v489 = vpop.f32.mrf.mxu0
    %v490 = vadd.f32 0.0, %v489
    %v491 = vpop.f32.mrf.mxu0
    %v492 = vadd.f32 0.0, %v491
    %493 = vmatprep.mubr.f32.mxu0 %v214
    %494 = vmatmul.mubr.f32.gmra.mxu0 %v213
    %v495 = vpop.f32.mrf.mxu0
    %v496 = vadd.f32 0.0, %v495
    %v497 = vpop.f32.mrf.mxu0
    %v498 = vadd.f32 0.0, %v497
    %499 = vmatprep.mubr.f32.mxu0 %v216
    %500 = vmatmul.mubr.f32.gmra.mxu0 %v215
    %v501 = vpop.f32.mrf.mxu0
    %v502 = vadd.f32 0.0, %v501
    %v503 = vpop.f32.mrf.mxu0
    %v504 = vadd.f32 0.0, %v503
    %505 = vdwg.mxu0
    %506 = vmatprep.subr.mxu0 %v280
    %507 = vmatpush1.msra.mxu0 %v279
    %508 = vmatprep.subr.mxu0 %v276
    %509 = vmatpush1.msra.mxu0 %v275
    %510 = vmatprep.subr.mxu0 %v272
    %511 = vmatpush1.msra.mxu0 %v271
    %512 = vmatprep.subr.mxu0 %v268
    %513 = vmatpush1.msra.mxu0 %v267
    %514 = vmatprep.subr.mxu0 %v264
    %515 = vmatpush1.msra.mxu0 %v263
    %516 = vmatprep.subr.mxu0 %v260
    %517 = vmatpush1.msra.mxu0 %v259
    %518 = vmatprep.subr.mxu0 %v256
    %519 = vmatpush1.msra.mxu0 %v255
    %520 = vmatprep.subr.mxu0 %v252
    %521 = vmatpush1.msra.mxu0 %v251
    %522 = vmatprep.subr.mxu0 %v248
    %523 = vmatpush1.msra.mxu0 %v247
    %524 = vmatprep.subr.mxu0 %v244
    %525 = vmatpush1.msra.mxu0 %v243
    %526 = vmatprep.subr.mxu0 %v240
    %527 = vmatpush1.msra.mxu0 %v239
    %528 = vmatprep.subr.mxu0 %v236
    %529 = vmatpush1.msra.mxu0 %v235
    %530 = vmatprep.subr.mxu0 %v232
    %531 = vmatpush1.msra.mxu0 %v231
    %532 = vmatprep.subr.mxu0 %v228
    %533 = vmatpush1.msra.mxu0 %v227
    %534 = vmatprep.subr.mxu0 %v224
    %535 = vmatpush1.msra.mxu0 %v223
    %536 = vmatprep.subr.mxu0 %v220
    %537 = vmatpush1.msra.mxu0 %v219
    %538 = vmatprep.subr.mxu0 %v344
    %539 = vmatpush2.msra.mxu0 %v343
    %540 = vmatprep.subr.mxu0 %v340
    %541 = vmatpush2.msra.mxu0 %v339
    %542 = vmatprep.subr.mxu0 %v336
    %543 = vmatpush2.msra.mxu0 %v335
    %544 = vmatprep.subr.mxu0 %v332
    %545 = vmatpush2.msra.mxu0 %v331
    %546 = vmatprep.subr.mxu0 %v328
    %547 = vmatpush2.msra.mxu0 %v327
    %548 = vmatprep.subr.mxu0 %v324
    %549 = vmatpush2.msra.mxu0 %v323
    %550 = vmatprep.subr.mxu0 %v320
    %551 = vmatpush2.msra.mxu0 %v319
    %552 = vmatprep.subr.mxu0 %v316
    %553 = vmatpush2.msra.mxu0 %v315
    %554 = vmatprep.subr.mxu0 %v312
    %555 = vmatpush2.msra.mxu0 %v311
    %556 = vmatprep.subr.mxu0 %v308
    %557 = vmatpush2.msra.mxu0 %v307
    %558 = vmatprep.subr.mxu0 %v304
    %559 = vmatpush2.msra.mxu0 %v303
    %560 = vmatprep.subr.mxu0 %v300
    %561 = vmatpush2.msra.mxu0 %v299
    %562 = vmatprep.subr.mxu0 %v296
    %563 = vmatpush2.msra.mxu0 %v295
    %564 = vmatprep.subr.mxu0 %v292
    %565 = vmatpush2.msra.mxu0 %v291
    %566 = vmatprep.subr.mxu0 %v288
    %567 = vmatpush2.msra.mxu0 %v287
    %568 = vmatprep.subr.mxu0 %v284
    %569 = vmatpush2.msra.mxu0 %v283
    %570 = vmatprep.mubr.f32.mxu0 %v186
    %571 = vmatmul.mubr.f32.gmra.mxu0 %v185
    %v572 = vpop.f32.mrf.mxu0
    %v573 = vadd.f32 0.0, %v572
    %v574 = vpop.f32.mrf.mxu0
    %v575 = vadd.f32 0.0, %v574
    %576 = vmatprep.mubr.f32.mxu0 %v188
    %577 = vmatmul.mubr.f32.gmra.mxu0 %v187
    %v578 = vpop.f32.mrf.mxu0
    %v579 = vadd.f32 0.0, %v578
    %v580 = vpop.f32.mrf.mxu0
    %v581 = vadd.f32 0.0, %v580
    %582 = vmatprep.mubr.f32.mxu0 %v190
    %583 = vmatmul.mubr.f32.gmra.mxu0 %v189
    %v584 = vpop.f32.mrf.mxu0
    %v585 = vadd.f32 0.0, %v584
    %v586 = vpop.f32.mrf.mxu0
    %v587 = vadd.f32 0.0, %v586
    %588 = vmatprep.mubr.f32.mxu0 %v192
    %589 = vmatmul.mubr.f32.gmra.mxu0 %v191
    %v590 = vpop.f32.mrf.mxu0
    %v591 = vadd.f32 0.0, %v590
    %v592 = vpop.f32.mrf.mxu0
    %v593 = vadd.f32 0.0, %v592
    %594 = vmatprep.mubr.f32.mxu0 %v194
    %595 = vmatmul.mubr.f32.gmra.mxu0 %v193
    %v596 = vpop.f32.mrf.mxu0
    %v597 = vadd.f32 0.0, %v596
    %v598 = vpop.f32.mrf.mxu0
    %v599 = vadd.f32 0.0, %v598
    %600 = vmatprep.mubr.f32.mxu0 %v196
    %601 = vmatmul.mubr.f32.gmra.mxu0 %v195
    %v602 = vpop.f32.mrf.mxu0
    %v603 = vadd.f32 0.0, %v602
    %v604 = vpop.f32.mrf.mxu0
    %v605 = vadd.f32 0.0, %v604
    %606 = vmatprep.mubr.f32.mxu0 %v198
    %607 = vmatmul.mubr.f32.gmra.mxu0 %v197
    %v608 = vpop.f32.mrf.mxu0
    %v609 = vadd.f32 0.0, %v608
    %v610 = vpop.f32.mrf.mxu0
    %v611 = vadd.f32 0.0, %v610
    %612 = vmatprep.mubr.f32.mxu0 %v200
    %613 = vmatmul.mubr.f32.gmra.mxu0 %v199
    %v614 = vpop.f32.mrf.mxu0
    %v615 = vadd.f32 0.0, %v614
    %v616 = vpop.f32.mrf.mxu0
    %v617 = vadd.f32 0.0, %v616
    %618 = vmatprep.mubr.f32.mxu0 %v202
    %619 = vmatmul.mubr.f32.gmra.mxu0 %v201
    %v620 = vpop.f32.mrf.mxu0
    %v621 = vadd.f32 0.0, %v620
    %v622 = vpop.f32.mrf.mxu0
    %v623 = vadd.f32 0.0, %v622
    %624 = vmatprep.mubr.f32.mxu0 %v204
    %625 = vmatmul.mubr.f32.gmra.mxu0 %v203
    %v626 = vpop.f32.mrf.mxu0
    %v627 = vadd.f32 0.0, %v626
    %v628 = vpop.f32.mrf.mxu0
    %v629 = vadd.f32 0.0, %v628
    %630 = vmatprep.mubr.f32.mxu0 %v206
    %631 = vmatmul.mubr.f32.gmra.mxu0 %v205
    %v632 = vpop.f32.mrf.mxu0
    %v633 = vadd.f32 0.0, %v632
    %v634 = vpop.f32.mrf.mxu0
    %v635 = vadd.f32 0.0, %v634
    %636 = vmatprep.mubr.f32.mxu0 %v208
    %637 = vmatmul.mubr.f32.gmra.mxu0 %v207
    %v638 = vpop.f32.mrf.mxu0
    %v639 = vadd.f32 0.0, %v638
    %v640 = vpop.f32.mrf.mxu0
    %v641 = vadd.f32 0.0, %v640
    %642 = vmatprep.mubr.f32.mxu0 %v210
    %643 = vmatmul.mubr.f32.gmra.mxu0 %v209
    %v644 = vpop.f32.mrf.mxu0
    %v645 = vadd.f32 0.0, %v644
    %v646 = vpop.f32.mrf.mxu0
    %v647 = vadd.f32 0.0, %v646
    %648 = vmatprep.mubr.f32.mxu0 %v212
    %649 = vmatmul.mubr.f32.gmra.mxu0 %v211
    %v650 = vpop.f32.mrf.mxu0
    %v651 = vadd.f32 0.0, %v650
    %v652 = vpop.f32.mrf.mxu0
    %v653 = vadd.f32 0.0, %v652
    %654 = vmatprep.mubr.f32.mxu0 %v214
    %655 = vmatmul.mubr.f32.gmra.mxu0 %v213
    %v656 = vpop.f32.mrf.mxu0
    %v657 = vadd.f32 0.0, %v656
    %v658 = vpop.f32.mrf.mxu0
    %v659 = vadd.f32 0.0, %v658
    %660 = vmatprep.mubr.f32.mxu0 %v216
    %661 = vmatmul.mubr.f32.gmra.mxu0 %v215
    %v662 = vpop.f32.mrf.mxu0
    %v663 = vadd.f32 0.0, %v662
    %v664 = vpop.f32.mrf.mxu0
    %v665 = vadd.f32 0.0, %v664
    %666 = vdwg.mxu0
    %v667 = vadd.f32 %v121, %v412
    %v668 = vadd.f32 %v122, %v414
    %v669 = vadd.f32 %v123, %v573
    %v670 = vadd.f32 %v124, %v575
    %v671 = vadd.f32 %v125, %v418
    %v672 = vadd.f32 %v126, %v420
    %v673 = vadd.f32 %v127, %v579
    %v674 = vadd.f32 %v128, %v581
    %v675 = vadd.f32 %v129, %v424
    %v676 = vadd.f32 %v130, %v426
    %v677 = vadd.f32 %v131, %v585
    %v678 = vadd.f32 %v132, %v587
    %v679 = vadd.f32 %v133, %v430
    %v680 = vadd.f32 %v134, %v432
    %v681 = vadd.f32 %v135, %v591
    %v682 = vadd.f32 %v136, %v593
    %v683 = vadd.f32 %v137, %v436
    %v684 = vadd.f32 %v138, %v438
    %v685 = vadd.f32 %v139, %v597
    %v686 = vadd.f32 %v140, %v599
    %v687 = vadd.f32 %v141, %v442
    %v688 = vadd.f32 %v142, %v444
    %v689 = vadd.f32 %v143, %v603
    %v690 = vadd.f32 %v144, %v605
    %v691 = vadd.f32 %v145, %v448
    %v692 = vadd.f32 %v146, %v450
    %v693 = vadd.f32 %v147, %v609
    %v694 = vadd.f32 %v148, %v611
    %v695 = vadd.f32 %v149, %v454
    %v696 = vadd.f32 %v150, %v456
    %v697 = vadd.f32 %v151, %v615
    %v698 = vadd.f32 %v152, %v617
    %v699 = vadd.f32 %v153, %v460
    %v700 = vadd.f32 %v154, %v462
    %v701 = vadd.f32 %v155, %v621
    %v702 = vadd.f32 %v156, %v623
    %v703 = vadd.f32 %v157, %v466
    %v704 = vadd.f32 %v158, %v468
    %v705 = vadd.f32 %v159, %v627
    %v706 = vadd.f32 %v160, %v629
    %v707 = vadd.f32 %v161, %v472
    %v708 = vadd.f32 %v162, %v474
    %v709 = vadd.f32 %v163, %v633
    %v710 = vadd.f32 %v164, %v635
    %v711 = vadd.f32 %v165, %v478
    %v712 = vadd.f32 %v166, %v480
    %v713 = vadd.f32 %v167, %v639
    %v714 = vadd.f32 %v168, %v641
    %v715 = vadd.f32 %v169, %v484
    %v716 = vadd.f32 %v170, %v486
    %v717 = vadd.f32 %v171, %v645
    %v718 = vadd.f32 %v172, %v647
    %v719 = vadd.f32 %v173, %v490
    %v720 = vadd.f32 %v174, %v492
    %v721 = vadd.f32 %v175, %v651
    %v722 = vadd.f32 %v176, %v653
    %v723 = vadd.f32 %v177, %v496
    %v724 = vadd.f32 %v178, %v498
    %v725 = vadd.f32 %v179, %v657
    %v726 = vadd.f32 %v180, %v659
    %v727 = vadd.f32 %v181, %v502
    %v728 = vadd.f32 %v182, %v504
    %v729 = vadd.f32 %v183, %v663
    %v730 = vadd.f32 %v184, %v665
    %731 = vst [vmem:[#allocation2] sm:$0xff] %v667
    %732 = vst [vmem:[#allocation2 + $0x8] sm:$0xff] %v668
    %733 = vst [vmem:[#allocation2 + $0x10] sm:$0xff] %v669
    %734 = vst [vmem:[#allocation2 + $0x18] sm:$0xff] %v670
    %735 = vst [vmem:[#allocation2 + $0x20] sm:$0xff] %v671
    %736 = vst [vmem:[#allocation2 + $0x28] sm:$0xff] %v672
    %737 = vst [vmem:[#allocation2 + $0x30] sm:$0xff] %v673
    %738 = vst [vmem:[#allocation2 + $0x38] sm:$0xff] %v674
    %739 = vst [vmem:[#allocation2 + $0x40] sm:$0xff] %v675
    %740 = vst [vmem:[#allocation2 + $0x48] sm:$0xff] %v676
    %741 = vst [vmem:[#allocation2 + $0x50] sm:$0xff] %v677
    %742 = vst [vmem:[#allocation2 + $0x58] sm:$0xff] %v678
    %743 = vst [vmem:[#allocation2 + $0x60] sm:$0xff] %v679
    %744 = vst [vmem:[#allocation2 + $0x68] sm:$0xff] %v680
    %745 = vst [vmem:[#allocation2 + $0x70] sm:$0xff] %v681
    %746 = vst [vmem:[#allocation2 + $0x78] sm:$0xff] %v682
    %747 = vst [vmem:[#allocation2 + $0x80] sm:$0xff] %v683
    %748 = vst [vmem:[#allocation2 + $0x88] sm:$0xff] %v684
    %749 = vst [vmem:[#allocation2 + $0x90] sm:$0xff] %v685
    %750 = vst [vmem:[#allocation2 + $0x98] sm:$0xff] %v686
    %751 = vst [vmem:[#allocation2 + $0xa0] sm:$0xff] %v687
    %752 = vst [vmem:[#allocation2 + $0xa8] sm:$0xff] %v688
    %753 = vst [vmem:[#allocation2 + $0xb0] sm:$0xff] %v689
    %754 = vst [vmem:[#allocation2 + $0xb8] sm:$0xff] %v690
    %755 = vst [vmem:[#allocation2 + $0xc0] sm:$0xff] %v691
    %756 = vst [vmem:[#allocation2 + $0xc8] sm:$0xff] %v692
    %757 = vst [vmem:[#allocation2 + $0xd0] sm:$0xff] %v693
    %758 = vst [vmem:[#allocation2 + $0xd8] sm:$0xff] %v694
    %759 = vst [vmem:[#allocation2 + $0xe0] sm:$0xff] %v695
    %760 = vst [vmem:[#allocation2 + $0xe8] sm:$0xff] %v696
    %761 = vst [vmem:[#allocation2 + $0xf0] sm:$0xff] %v697
    %762 = vst [vmem:[#allocation2 + $0xf8] sm:$0xff] %v698
    %763 = vst [vmem:[#allocation2 + $0x100] sm:$0xff] %v699
    %764 = vst [vmem:[#allocation2 + $0x108] sm:$0xff] %v700
    %765 = vst [vmem:[#allocation2 + $0x110] sm:$0xff] %v701
    %766 = vst [vmem:[#allocation2 + $0x118] sm:$0xff] %v702
    %767 = vst [vmem:[#allocation2 + $0x120] sm:$0xff] %v703
    %768 = vst [vmem:[#allocation2 + $0x128] sm:$0xff] %v704
    %769 = vst [vmem:[#allocation2 + $0x130] sm:$0xff] %v705
    %770 = vst [vmem:[#allocation2 + $0x138] sm:$0xff] %v706
    %771 = vst [vmem:[#allocation2 + $0x140] sm:$0xff] %v707
    %772 = vst [vmem:[#allocation2 + $0x148] sm:$0xff] %v708
    %773 = vst [vmem:[#allocation2 + $0x150] sm:$0xff] %v709
    %774 = vst [vmem:[#allocation2 + $0x158] sm:$0xff] %v710
    %775 = vst [vmem:[#allocation2 + $0x160] sm:$0xff] %v711
    %776 = vst [vmem:[#allocation2 + $0x168] sm:$0xff] %v712
    %777 = vst [vmem:[#allocation2 + $0x170] sm:$0xff] %v713
    %778 = vst [vmem:[#allocation2 + $0x178] sm:$0xff] %v714
    %779 = vst [vmem:[#allocation2 + $0x180] sm:$0xff] %v715
    %780 = vst [vmem:[#allocation2 + $0x188] sm:$0xff] %v716
    %781 = vst [vmem:[#allocation2 + $0x190] sm:$0xff] %v717
    %782 = vst [vmem:[#allocation2 + $0x198] sm:$0xff] %v718
    %783 = vst [vmem:[#allocation2 + $0x1a0] sm:$0xff] %v719
    %784 = vst [vmem:[#allocation2 + $0x1a8] sm:$0xff] %v720
    %785 = vst [vmem:[#allocation2 + $0x1b0] sm:$0xff] %v721
    %786 = vst [vmem:[#allocation2 + $0x1b8] sm:$0xff] %v722
    %787 = vst [vmem:[#allocation2 + $0x1c0] sm:$0xff] %v723
    %788 = vst [vmem:[#allocation2 + $0x1c8] sm:$0xff] %v724
    %789 = vst [vmem:[#allocation2 + $0x1d0] sm:$0xff] %v725
    %790 = vst [vmem:[#allocation2 + $0x1d8] sm:$0xff] %v726
    %791 = vst [vmem:[#allocation2 + $0x1e0] sm:$0xff] %v727
    %792 = vst [vmem:[#allocation2 + $0x1e8] sm:$0xff] %v728
    %793 = vst [vmem:[#allocation2 + $0x1f0] sm:$0xff] %v729
    %794 = vst [vmem:[#allocation2 + $0x1f8] sm:$0xff] %v730
    // Predicated region
    $region30: #{forward_ffn.3} parent=1 // pred_check
      %p795 = pneg %p53
    $region31: #{forward_ffn.3} parent=1 // pred_check_branch
      %797 = sbr.rel (%p795) target = $region33
    $region32: #{forward_ffn.3} parent=1 // pred_region
      %v798 = vld [vmem:[#allocation2] sm:$0xff]
      %v799 = vld [vmem:[#allocation2 + $0x8] sm:$0xff]
      %v800 = vld [vmem:[#allocation2 + $0x10] sm:$0xff]
      %v801 = vld [vmem:[#allocation2 + $0x18] sm:$0xff]
      %v802 = vld [vmem:[#allocation2 + $0x20] sm:$0xff]
      %v803 = vld [vmem:[#allocation2 + $0x28] sm:$0xff]
      %v804 = vld [vmem:[#allocation2 + $0x30] sm:$0xff]
      %v805 = vld [vmem:[#allocation2 + $0x38] sm:$0xff]
      %v806 = vld [vmem:[#allocation2 + $0x40] sm:$0xff]
      %v807 = vld [vmem:[#allocation2 + $0x48] sm:$0xff]
      %v808 = vld [vmem:[#allocation2 + $0x50] sm:$0xff]
      %v809 = vld [vmem:[#allocation2 + $0x58] sm:$0xff]
      %v810 = vld [vmem:[#allocation2 + $0x60] sm:$0xff]
      %v811 = vld [vmem:[#allocation2 + $0x68] sm:$0xff]
      %v812 = vld [vmem:[#allocation2 + $0x70] sm:$0xff]
      %v813 = vld [vmem:[#allocation2 + $0x78] sm:$0xff]
      %v814 = vld [vmem:[#allocation2 + $0x80] sm:$0xff]
      %v815 = vld [vmem:[#allocation2 + $0x88] sm:$0xff]
      %v816 = vld [vmem:[#allocation2 + $0x90] sm:$0xff]
      %v817 = vld [vmem:[#allocation2 + $0x98] sm:$0xff]
      %v818 = vld [vmem:[#allocation2 + $0xa0] sm:$0xff]
      %v819 = vld [vmem:[#allocation2 + $0xa8] sm:$0xff]
      %v820 = vld [vmem:[#allocation2 + $0xb0] sm:$0xff]
      %v821 = vld [vmem:[#allocation2 + $0xb8] sm:$0xff]
      %v822 = vld [vmem:[#allocation2 + $0xc0] sm:$0xff]
      %v823 = vld [vmem:[#allocation2 + $0xc8] sm:$0xff]
      %v824 = vld [vmem:[#allocation2 + $0xd0] sm:$0xff]
      %v825 = vld [vmem:[#allocation2 + $0xd8] sm:$0xff]
      %v826 = vld [vmem:[#allocation2 + $0xe0] sm:$0xff]
      %v827 = vld [vmem:[#allocation2 + $0xe8] sm:$0xff]
      %v828 = vld [vmem:[#allocation2 + $0xf0] sm:$0xff]
      %v829 = vld [vmem:[#allocation2 + $0xf8] sm:$0xff]
      %v830 = vld [vmem:[#allocation2 + $0x100] sm:$0xff]
      %v831 = vld [vmem:[#allocation2 + $0x108] sm:$0xff]
      %v832 = vld [vmem:[#allocation2 + $0x110] sm:$0xff]
      %v833 = vld [vmem:[#allocation2 + $0x118] sm:$0xff]
      %v834 = vld [vmem:[#allocation2 + $0x120] sm:$0xff]
      %v835 = vld [vmem:[#allocation2 + $0x128] sm:$0xff]
      %v836 = vld [vmem:[#allocation2 + $0x130] sm:$0xff]
      %v837 = vld [vmem:[#allocation2 + $0x138] sm:$0xff]
      %v838 = vld [vmem:[#allocation2 + $0x140] sm:$0xff]
      %v839 = vld [vmem:[#allocation2 + $0x148] sm:$0xff]
      %v840 = vld [vmem:[#allocation2 + $0x150] sm:$0xff]
      %v841 = vld [vmem:[#allocation2 + $0x158] sm:$0xff]
      %v842 = vld [vmem:[#allocation2 + $0x160] sm:$0xff]
      %v843 = vld [vmem:[#allocation2 + $0x168] sm:$0xff]
      %v844 = vld [vmem:[#allocation2 + $0x170] sm:$0xff]
      %v845 = vld [vmem:[#allocation2 + $0x178] sm:$0xff]
      %v846 = vld [vmem:[#allocation2 + $0x180] sm:$0xff]
      %v847 = vld [vmem:[#allocation2 + $0x188] sm:$0xff]
      %v848 = vld [vmem:[#allocation2 + $0x190] sm:$0xff]
      %v849 = vld [vmem:[#allocation2 + $0x198] sm:$0xff]
      %v850 = vld [vmem:[#allocation2 + $0x1a0] sm:$0xff]
      %v851 = vld [vmem:[#allocation2 + $0x1a8] sm:$0xff]
      %v852 = vld [vmem:[#allocation2 + $0x1b0] sm:$0xff]
      %v853 = vld [vmem:[#allocation2 + $0x1b8] sm:$0xff]
      %v854 = vld [vmem:[#allocation2 + $0x1c0] sm:$0xff]
      %v855 = vld [vmem:[#allocation2 + $0x1c8] sm:$0xff]
      %v856 = vld [vmem:[#allocation2 + $0x1d0] sm:$0xff]
      %v857 = vld [vmem:[#allocation2 + $0x1d8] sm:$0xff]
      %v858 = vld [vmem:[#allocation2 + $0x1e0] sm:$0xff]
      %v859 = vld [vmem:[#allocation2 + $0x1e8] sm:$0xff]
      %v860 = vld [vmem:[#allocation2 + $0x1f0] sm:$0xff]
      %v861 = vld [vmem:[#allocation2 + $0x1f8] sm:$0xff]
      %v862 = vld [vmem:[#allocation7] sm:$0xf]
      %v864 = vlaneseq
      %v865 = vshrl.u32 %v864, 7
      %v866 = vsub.s32 0, %v865
      %v867 = vrot.slane %v862, %v866
      %v868 = vlaneseq
      %v869 = vshrl.u32 %v868, 7
      %v870 = vsub.s32 1, %v869
      %v871 = vrot.slane %v862, %v870
      %v872 = vlaneseq
      %v873 = vshrl.u32 %v872, 7
      %v874 = vsub.s32 2, %v873
      %v875 = vrot.slane %v862, %v874
      %v876 = vlaneseq
      %v877 = vshrl.u32 %v876, 7
      %v878 = vsub.s32 3, %v877
      %v879 = vrot.slane %v862, %v878
      %v884 = vadd.f32 %v798, %v867
      %v885 = vadd.f32 %v799, %v871
      %v886 = vadd.f32 %v800, %v875
      %v887 = vadd.f32 %v801, %v879
      %v888 = vadd.f32 %v802, %v867
      %v889 = vadd.f32 %v803, %v871
      %v890 = vadd.f32 %v804, %v875
      %v891 = vadd.f32 %v805, %v879
      %v892 = vadd.f32 %v806, %v867
      %v893 = vadd.f32 %v807, %v871
      %v894 = vadd.f32 %v808, %v875
      %v895 = vadd.f32 %v809, %v879
      %v896 = vadd.f32 %v810, %v867
      %v897 = vadd.f32 %v811, %v871
      %v898 = vadd.f32 %v812, %v875
      %v899 = vadd.f32 %v813, %v879
      %v900 = vadd.f32 %v814, %v867
      %v901 = vadd.f32 %v815, %v871
      %v902 = vadd.f32 %v816, %v875
      %v903 = vadd.f32 %v817, %v879
      %v904 = vadd.f32 %v818, %v867
      %v905 = vadd.f32 %v819, %v871
      %v906 = vadd.f32 %v820, %v875
      %v907 = vadd.f32 %v821, %v879
      %v908 = vadd.f32 %v822, %v867
      %v909 = vadd.f32 %v823, %v871
      %v910 = vadd.f32 %v824, %v875
      %v911 = vadd.f32 %v825, %v879
      %v912 = vadd.f32 %v826, %v867
      %v913 = vadd.f32 %v827, %v871
      %v914 = vadd.f32 %v828, %v875
      %v915 = vadd.f32 %v829, %v879
      %v916 = vadd.f32 %v830, %v867
      %v917 = vadd.f32 %v831, %v871
      %v918 = vadd.f32 %v832, %v875
      %v919 = vadd.f32 %v833, %v879
      %v920 = vadd.f32 %v834, %v867
      %v921 = vadd.f32 %v835, %v871
      %v922 = vadd.f32 %v836, %v875
      %v923 = vadd.f32 %v837, %v879
      %v924 = vadd.f32 %v838, %v867
      %v925 = vadd.f32 %v839, %v871
      %v926 = vadd.f32 %v840, %v875
      %v927 = vadd.f32 %v841, %v879
      %v928 = vadd.f32 %v842, %v867
      %v929 = vadd.f32 %v843, %v871
      %v930 = vadd.f32 %v844, %v875
      %v931 = vadd.f32 %v845, %v879
      %v932 = vadd.f32 %v846, %v867
      %v933 = vadd.f32 %v847, %v871
      %v934 = vadd.f32 %v848, %v875
      %v935 = vadd.f32 %v849, %v879
      %v936 = vadd.f32 %v850, %v867
      %v937 = vadd.f32 %v851, %v871
      %v938 = vadd.f32 %v852, %v875
      %v939 = vadd.f32 %v853, %v879
      %v940 = vadd.f32 %v854, %v867
      %v941 = vadd.f32 %v855, %v871
      %v942 = vadd.f32 %v856, %v875
      %v943 = vadd.f32 %v857, %v879
      %v944 = vadd.f32 %v858, %v867
      %v945 = vadd.f32 %v859, %v871
      %v946 = vadd.f32 %v860, %v875
      %v947 = vadd.f32 %v861, %v879
      %v948 = vmax.f32 %v884, 0.0
      %v949 = vmax.f32 %v885, 0.0
      %v950 = vmax.f32 %v886, 0.0
      %v951 = vmax.f32 %v887, 0.0
      %v952 = vmax.f32 %v888, 0.0
      %v953 = vmax.f32 %v889, 0.0
      %v954 = vmax.f32 %v890, 0.0
      %v955 = vmax.f32 %v891, 0.0
      %v956 = vmax.f32 %v892, 0.0
      %v957 = vmax.f32 %v893, 0.0
      %v958 = vmax.f32 %v894, 0.0
      %v959 = vmax.f32 %v895, 0.0
      %v960 = vmax.f32 %v896, 0.0
      %v961 = vmax.f32 %v897, 0.0
      %v962 = vmax.f32 %v898, 0.0
      %v963 = vmax.f32 %v899, 0.0
      %v964 = vmax.f32 %v900, 0.0
      %v965 = vmax.f32 %v901, 0.0
      %v966 = vmax.f32 %v902, 0.0
      %v967 = vmax.f32 %v903, 0.0
      %v968 = vmax.f32 %v904, 0.0
      %v969 = vmax.f32 %v905, 0.0
      %v970 = vmax.f32 %v906, 0.0
      %v971 = vmax.f32 %v907, 0.0
      %v972 = vmax.f32 %v908, 0.0
      %v973 = vmax.f32 %v909, 0.0
      %v974 = vmax.f32 %v910, 0.0
      %v975 = vmax.f32 %v911, 0.0
      %v976 = vmax.f32 %v912, 0.0
      %v977 = vmax.f32 %v913, 0.0
      %v978 = vmax.f32 %v914, 0.0
      %v979 = vmax.f32 %v915, 0.0
      %v980 = vmax.f32 %v916, 0.0
      %v981 = vmax.f32 %v917, 0.0
      %v982 = vmax.f32 %v918, 0.0
      %v983 = vmax.f32 %v919, 0.0
      %v984 = vmax.f32 %v920, 0.0
      %v985 = vmax.f32 %v921, 0.0
      %v986 = vmax.f32 %v922, 0.0
      %v987 = vmax.f32 %v923, 0.0
      %v988 = vmax.f32 %v924, 0.0
      %v989 = vmax.f32 %v925, 0.0
      %v990 = vmax.f32 %v926, 0.0
      %v991 = vmax.f32 %v927, 0.0
      %v992 = vmax.f32 %v928, 0.0
      %v993 = vmax.f32 %v929, 0.0
      %v994 = vmax.f32 %v930, 0.0
      %v995 = vmax.f32 %v931, 0.0
      %v996 = vmax.f32 %v932, 0.0
      %v997 = vmax.f32 %v933, 0.0
      %v998 = vmax.f32 %v934, 0.0
      %v999 = vmax.f32 %v935, 0.0
      %v1000 = vmax.f32 %v936, 0.0
      %v1001 = vmax.f32 %v937, 0.0
      %v1002 = vmax.f32 %v938, 0.0
      %v1003 = vmax.f32 %v939, 0.0
      %v1004 = vmax.f32 %v940, 0.0
      %v1005 = vmax.f32 %v941, 0.0
      %v1006 = vmax.f32 %v942, 0.0
      %v1007 = vmax.f32 %v943, 0.0
      %v1008 = vmax.f32 %v944, 0.0
      %v1009 = vmax.f32 %v945, 0.0
      %v1010 = vmax.f32 %v946, 0.0
      %v1011 = vmax.f32 %v947, 0.0
      %1012 = vst [vmem:[%s3] sm:$0xff] %v948
      %1013 = vst [vmem:[%s3 + $0x8] sm:$0xff] %v949
      %1014 = vst [vmem:[%s3 + $0x10] sm:$0xff] %v950
      %1015 = vst [vmem:[%s3 + $0x18] sm:$0xff] %v951
      %1016 = vst [vmem:[%s3 + $0x20] sm:$0xff] %v952
      %1017 = vst [vmem:[%s3 + $0x28] sm:$0xff] %v953
      %1018 = vst [vmem:[%s3 + $0x30] sm:$0xff] %v954
      %1019 = vst [vmem:[%s3 + $0x38] sm:$0xff] %v955
      %1020 = vst [vmem:[%s3 + $0x40] sm:$0xff] %v956
      %1021 = vst [vmem:[%s3 + $0x48] sm:$0xff] %v957
      %1022 = vst [vmem:[%s3 + $0x50] sm:$0xff] %v958
      %1023 = vst [vmem:[%s3 + $0x58] sm:$0xff] %v959
      %1024 = vst [vmem:[%s3 + $0x60] sm:$0xff] %v960
      %1025 = vst [vmem:[%s3 + $0x68] sm:$0xff] %v961
      %1026 = vst [vmem:[%s3 + $0x70] sm:$0xff] %v962
      %1027 = vst [vmem:[%s3 + $0x78] sm:$0xff] %v963
      %1028 = vst [vmem:[%s3 + $0x80] sm:$0xff] %v964
      %1029 = vst [vmem:[%s3 + $0x88] sm:$0xff] %v965
      %1030 = vst [vmem:[%s3 + $0x90] sm:$0xff] %v966
      %1031 = vst [vmem:[%s3 + $0x98] sm:$0xff] %v967
      %1032 = vst [vmem:[%s3 + $0xa0] sm:$0xff] %v968
      %1033 = vst [vmem:[%s3 + $0xa8] sm:$0xff] %v969
      %1034 = vst [vmem:[%s3 + $0xb0] sm:$0xff] %v970
      %1035 = vst [vmem:[%s3 + $0xb8] sm:$0xff] %v971
      %1036 = vst [vmem:[%s3 + $0xc0] sm:$0xff] %v972
      %1037 = vst [vmem:[%s3 + $0xc8] sm:$0xff] %v973
      %1038 = vst [vmem:[%s3 + $0xd0] sm:$0xff] %v974
      %1039 = vst [vmem:[%s3 + $0xd8] sm:$0xff] %v975
      %1040 = vst [vmem:[%s3 + $0xe0] sm:$0xff] %v976
      %1041 = vst [vmem:[%s3 + $0xe8] sm:$0xff] %v977
      %1042 = vst [vmem:[%s3 + $0xf0] sm:$0xff] %v978
      %1043 = vst [vmem:[%s3 + $0xf8] sm:$0xff] %v979
      %1044 = vst [vmem:[%s3 + $0x100] sm:$0xff] %v980
      %1045 = vst [vmem:[%s3 + $0x108] sm:$0xff] %v981
      %1046 = vst [vmem:[%s3 + $0x110] sm:$0xff] %v982
      %1047 = vst [vmem:[%s3 + $0x118] sm:$0xff] %v983
      %1048 = vst [vmem:[%s3 + $0x120] sm:$0xff] %v984
      %1049 = vst [vmem:[%s3 + $0x128] sm:$0xff] %v985
      %1050 = vst [vmem:[%s3 + $0x130] sm:$0xff] %v986
      %1051 = vst [vmem:[%s3 + $0x138] sm:$0xff] %v987
      %1052 = vst [vmem:[%s3 + $0x140] sm:$0xff] %v988
      %1053 = vst [vmem:[%s3 + $0x148] sm:$0xff] %v989
      %1054 = vst [vmem:[%s3 + $0x150] sm:$0xff] %v990
      %1055 = vst [vmem:[%s3 + $0x158] sm:$0xff] %v991
      %1056 = vst [vmem:[%s3 + $0x160] sm:$0xff] %v992
      %1057 = vst [vmem:[%s3 + $0x168] sm:$0xff] %v993
      %1058 = vst [vmem:[%s3 + $0x170] sm:$0xff] %v994
      %1059 = vst [vmem:[%s3 + $0x178] sm:$0xff] %v995
      %1060 = vst [vmem:[%s3 + $0x180] sm:$0xff] %v996
      %1061 = vst [vmem:[%s3 + $0x188] sm:$0xff] %v997
      %1062 = vst [vmem:[%s3 + $0x190] sm:$0xff] %v998
      %1063 = vst [vmem:[%s3 + $0x198] sm:$0xff] %v999
      %1064 = vst [vmem:[%s3 + $0x1a0] sm:$0xff] %v1000
      %1065 = vst [vmem:[%s3 + $0x1a8] sm:$0xff] %v1001
      %1066 = vst [vmem:[%s3 + $0x1b0] sm:$0xff] %v1002
      %1067 = vst [vmem:[%s3 + $0x1b8] sm:$0xff] %v1003
      %1068 = vst [vmem:[%s3 + $0x1c0] sm:$0xff] %v1004
      %1069 = vst [vmem:[%s3 + $0x1c8] sm:$0xff] %v1005
      %1070 = vst [vmem:[%s3 + $0x1d0] sm:$0xff] %v1006
      %1071 = vst [vmem:[%s3 + $0x1d8] sm:$0xff] %v1007
      %1072 = vst [vmem:[%s3 + $0x1e0] sm:$0xff] %v1008
      %1073 = vst [vmem:[%s3 + $0x1e8] sm:$0xff] %v1009
      %1074 = vst [vmem:[%s3 + $0x1f0] sm:$0xff] %v1010
      %1075 = vst [vmem:[%s3 + $0x1f8] sm:$0xff] %v1011
    $region33: #{forward_ffn.3} parent=1 // pred_fallthru
      _
    // Predicated region
    $region34: #{forward_ffn.3} parent=1 // pred_check
      _
    $region35: #{forward_ffn.3} parent=1 // pred_check_branch
      %1077 = sbr.rel (0) target = $region37
    $region36: #{forward_ffn.3} parent=1 // pred_region
      _
    $region37: #{forward_ffn.3} parent=1 // pred_fallthru
      _
    // Predicated region
    $region38: #{forward_ffn.3} parent=1 // pred_check
      _
    $region39: #{forward_ffn.3} parent=1 // pred_check_branch
      %1079 = sbr.rel (0) target = $region41
    $region40: #{forward_ffn.3} parent=1 // pred_region
      _
    $region41: #{forward_ffn.3} parent=1 // pred_fallthru
      _
    %1080 = vsyncpa [#allocation4], 1
    %1081 = vsyncpa [#allocation6], 1

</llo_original>
